<compile_context>
chip_gen: v6e
topology: v6e:2x2x1
jax: 0.10.0
libtpu: 0.0.40
codegen_flags: <defaults>
</compile_context>

<pallas_src>
import functools
import math

import jax
import jax.numpy as jnp
from jax.experimental import pallas as pl
from jax.experimental.pallas import tpu as pltpu


def _layernorm(h, gamma, beta, eps=1e-5):
    mu = jnp.mean(h, axis=-1, keepdims=True)
    var = jnp.mean((h - mu) ** 2, axis=-1, keepdims=True)
    return (h - mu) * jax.lax.rsqrt(var + eps) * gamma + beta


def _linear(h, w, b):
    # y = h @ w.T + b  (w is (out, in)); contract on last dims, no explicit transpose.
    return jax.lax.dot_general(h, w, (((1,), (1,)), ((), ())),
                               preferred_element_type=jnp.float32) + b


def transformer_kernel(x_ref,
                       wq_ref, bq_ref, wk_ref, bk_ref, wv_ref, bv_ref,
                       wo_ref, bo_ref, g1_ref, b1_ref, g2_ref, b2_ref,
                       w1_ref, bf1_ref, w2_ref, bf2_ref,
                       fcw_ref, fcb_ref, fc2w_ref, fc2b_ref,
                       out_ref, *, num_heads):
    B, S, D = x_ref.shape
    L = wq_ref.shape[0]
    H = num_heads
    dh = D // H

    # All linears / LayerNorms operate on the fused (B*S, D) slab (M = B*S).
    h = x_ref[...].reshape(B * S, D)

    # Per-head feature masks along the lane dim, hoisted out of the layer loop.
    lane = jax.lax.broadcasted_iota(jnp.int32, (1, D), 1)
    head_masks = [((lane >= hd * dh) & (lane < (hd + 1) * dh)).astype(jnp.float32)
                  for hd in range(H)]

    for l in range(L):                                   # static unrolled loop (L small)
        # --- multi-head self-attention (post-norm, norm_first=False) ---
        # Q scale (1/sqrt(dh)) is already folded into wq/bq on the host.
        q = _linear(h, wq_ref[l], bq_ref[l]).reshape(B, S, D)
        k = _linear(h, wk_ref[l], bk_ref[l]).reshape(B, S, D)
        v = _linear(h, wv_ref[l], bv_ref[l]).reshape(B, S, D)

        attn = jnp.zeros((B, S, D), jnp.float32)
        for hd in range(H):
            m = head_masks[hd]                           # (1, D) 0/1 mask for this head
            kh = k * m                                   # zero other heads' features
            sc = jnp.einsum('bqd,bkd->bqk', q, kh,
                            preferred_element_type=jnp.float32)       # (B, S, S)
            sc = sc - jnp.max(sc, axis=-1, keepdims=True)
            p = jnp.exp(sc)
            p = p * pl.reciprocal(jnp.sum(p, axis=-1, keepdims=True), approx=True)
            oh = jnp.einsum('bqk,bkd->bqd', p, v,
                            preferred_element_type=jnp.float32)       # (B, S, D)
            attn = attn + oh * m                         # keep only this head's columns

        attn = _linear(attn.reshape(B * S, D), wo_ref[l], bo_ref[l])   # out_proj
        h = _layernorm(h + attn, g1_ref[l], b1_ref[l])

        # --- feed-forward block (ReLU is the TransformerEncoderLayer default) ---
        ff = _linear(h, w1_ref[l], bf1_ref[l])
        ff = jnp.maximum(ff, 0.0)
        ff = _linear(ff, w2_ref[l], bf2_ref[l])
        h = _layernorm(h + ff, g2_ref[l], b2_ref[l])

    # --- head: mean over seq, fc -> LeakyReLU(0.01) -> fc2 -> sigmoid (all B rows at once) ---
    pooled = jnp.mean(h.reshape(B, S, D), axis=1)        # (B, D)
    z = _linear(pooled, fcw_ref[...], fcb_ref[...])      # (B, linear_size)
    z = jnp.where(z > 0, z, 0.01 * z)
    z = _linear(z, fc2w_ref[...], fc2b_ref[...])         # (B, num_classes)
    # numerically stable sigmoid (tiny, exact divide is fine here)
    e = jnp.exp(-jnp.abs(z))
    r = 1.0 / (1.0 + e)
    out_ref[...] = jnp.where(z >= 0, r, e * r)           # single direct (B, C) store


_PARAM_ORDER = ['wq', 'bq', 'wk', 'bk', 'wv', 'bv', 'wo', 'bo',
                'g1', 'b1', 'g2', 'b2', 'w1', 'bf1', 'w2', 'bf2',
                'fcw', 'fcb', 'fc2w', 'fc2b']


def transformer_forward(x, params, num_heads):
    """params must be kernel-ready (attention scale already folded into wq/bq)."""
    B, S, D = x.shape
    C = params['fc2w'].shape[0]
    args = [x] + [params[k] for k in _PARAM_ORDER]
    kernel = functools.partial(transformer_kernel, num_heads=num_heads)
    return pl.pallas_call(
        kernel,
        out_shape=jax.ShapeDtypeStruct((B, C), jnp.float32),
        in_specs=[pl.BlockSpec(memory_space=pltpu.MemorySpace.VMEM) for _ in args],
        out_specs=pl.BlockSpec(memory_space=pltpu.MemorySpace.VMEM),
    )(*args)


def init_params(key, num_classes, input_size, hidden_size, num_layers, linear_size):
    """Nominal (PyTorch-convention, unscaled) parameters."""
    D, Hd, L = input_size, hidden_size, num_layers
    ks = jax.random.split(key, 14)
    s = 0.1
    p = {}
    p['wq'] = jax.random.normal(ks[0], (L, D, D), jnp.float32) * s
    p['bq'] = jax.random.normal(ks[1], (L, 1, D), jnp.float32) * s
    p['wk'] = jax.random.normal(ks[2], (L, D, D), jnp.float32) * s
    p['bk'] = jax.random.normal(ks[3], (L, 1, D), jnp.float32) * s
    p['wv'] = jax.random.normal(ks[4], (L, D, D), jnp.float32) * s
    p['bv'] = jax.random.normal(ks[5], (L, 1, D), jnp.float32) * s
    p['wo'] = jax.random.normal(ks[6], (L, D, D), jnp.float32) * s
    p['bo'] = jax.random.normal(ks[7], (L, 1, D), jnp.float32) * s
    p['g1'] = jnp.ones((L, 1, D), jnp.float32)
    p['b1'] = jnp.zeros((L, 1, D), jnp.float32)
    p['g2'] = jnp.ones((L, 1, D), jnp.float32)
    p['b2'] = jnp.zeros((L, 1, D), jnp.float32)
    p['w1'] = jax.random.normal(ks[8], (L, Hd, D), jnp.float32) * s
    p['bf1'] = jax.random.normal(ks[9], (L, 1, Hd), jnp.float32) * s
    p['w2'] = jax.random.normal(ks[10], (L, D, Hd), jnp.float32) * s
    p['bf2'] = jax.random.normal(ks[11], (L, 1, D), jnp.float32) * s
    p['fcw'] = jax.random.normal(ks[12], (linear_size, D), jnp.float32) * s
    p['fcb'] = jnp.zeros((1, linear_size), jnp.float32)
    p['fc2w'] = jax.random.normal(ks[13], (num_classes, linear_size), jnp.float32) * s
    p['fc2b'] = jnp.zeros((1, num_classes), jnp.float32)
    return p


def fold_attention_scale(params, num_heads):
    """One-time host-side prep: fold 1/sqrt(dh) into the Q projection."""
    D = params['wq'].shape[-1]
    scale = 1.0 / math.sqrt(D // num_heads)
    kp = dict(params)
    kp['wq'] = params['wq'] * scale
    kp['bq'] = params['bq'] * scale
    return kp


def forward_ref(x, p, num_heads):
    """Pure-JAX reference of the PyTorch forward (eval mode), using nominal params."""
    B, S, D = x.shape
    L = p['wq'].shape[0]
    dh = D // num_heads
    scale = 1.0 / math.sqrt(dh)
    h = x
    for l in range(L):
        q = h @ p['wq'][l].T + p['bq'][l]
        k = h @ p['wk'][l].T + p['bk'][l]
        v = h @ p['wv'][l].T + p['bv'][l]
        qh = q.reshape(B, S, num_heads, dh).transpose(0, 2, 1, 3) * scale
        kh = k.reshape(B, S, num_heads, dh).transpose(0, 2, 1, 3)
        vh = v.reshape(B, S, num_heads, dh).transpose(0, 2, 1, 3)
        att = jax.nn.softmax(qh @ kh.transpose(0, 1, 3, 2), axis=-1)
        o = (att @ vh).transpose(0, 2, 1, 3).reshape(B, S, D)
        o = o @ p['wo'][l].T + p['bo'][l]
        h = _layernorm(h + o, p['g1'][l], p['b1'][l])
        ff = jax.nn.relu(h @ p['w1'][l].T + p['bf1'][l])
        ff = ff @ p['w2'][l].T + p['bf2'][l]
        h = _layernorm(h + ff, p['g2'][l], p['b2'][l])
    pooled = h.mean(axis=1)
    z = pooled @ p['fcw'].T + p['fcb']
    z = jnp.where(z > 0, z, 0.01 * z)
    z = z @ p['fc2w'].T + p['fc2b']
    return jax.nn.sigmoid(z)


if __name__ == "__main__":
    # Small shapes consistent with the module:
    B, S = 2, 8
    num_classes, input_size, hidden_size = 3, 32, 64
    num_layers, num_heads, linear_size = 2, 4, 6

    key = jax.random.PRNGKey(0)
    kx, kp = jax.random.split(key)
    x = jax.random.normal(kx, (B, S, input_size), dtype=jnp.float32)
    params = init_params(kp, num_classes, input_size, hidden_size, num_layers, linear_size)
    kparams = fold_attention_scale(params, num_heads)

    out = transformer_forward(x, kparams, num_heads)
    out = jax.block_until_ready(out)
    assert out.shape == (B, num_classes), out.shape

    ref = forward_ref(x, params, num_heads)
    # Tolerance accounts for the approximate EUP reciprocal used in softmax normalization.
    if not jnp.allclose(out, ref, atol=3e-3, rtol=3e-3):
        raise AssertionError(f"mismatch: max abs err {jnp.max(jnp.abs(out - ref))}")

    print("KERNEL_OK")
</pallas_src>

<mosaic_0001>
module attributes {stable_mosaic.version = 11 : i64} {
  func.func @transformer_kernel(%arg0: memref<2x8x32xf32, #tpu.memory_space<vmem>>, %arg1: memref<2x32x32xf32, #tpu.memory_space<vmem>>, %arg2: memref<2x1x32xf32, #tpu.memory_space<vmem>>, %arg3: memref<2x32x32xf32, #tpu.memory_space<vmem>>, %arg4: memref<2x1x32xf32, #tpu.memory_space<vmem>>, %arg5: memref<2x32x32xf32, #tpu.memory_space<vmem>>, %arg6: memref<2x1x32xf32, #tpu.memory_space<vmem>>, %arg7: memref<2x32x32xf32, #tpu.memory_space<vmem>>, %arg8: memref<2x1x32xf32, #tpu.memory_space<vmem>>, %arg9: memref<2x1x32xf32, #tpu.memory_space<vmem>>, %arg10: memref<2x1x32xf32, #tpu.memory_space<vmem>>, %arg11: memref<2x1x32xf32, #tpu.memory_space<vmem>>, %arg12: memref<2x1x32xf32, #tpu.memory_space<vmem>>, %arg13: memref<2x64x32xf32, #tpu.memory_space<vmem>>, %arg14: memref<2x1x64xf32, #tpu.memory_space<vmem>>, %arg15: memref<2x32x64xf32, #tpu.memory_space<vmem>>, %arg16: memref<2x1x32xf32, #tpu.memory_space<vmem>>, %arg17: memref<6x32xf32, #tpu.memory_space<vmem>>, %arg18: memref<1x6xf32, #tpu.memory_space<vmem>>, %arg19: memref<3x6xf32, #tpu.memory_space<vmem>>, %arg20: memref<1x3xf32, #tpu.memory_space<vmem>>, %arg21: memref<2x3xf32, #tpu.memory_space<vmem>>) attributes {dimension_semantics = [], scalar_prefetch = 0 : i64, scratch_operands = 0 : i64, tpu.core_type = #tpu.core_type<tc>} {
    %c0 = arith.constant 0 : index
    %c0_0 = arith.constant 0 : index
    %c0_1 = arith.constant 0 : index
    %0 = vector.load %arg0[%c0, %c0_0, %c0_1] : memref<2x8x32xf32, #tpu.memory_space<vmem>>, vector<2x8x32xf32>
    %1 = vector.shape_cast %0 : vector<2x8x32xf32> to vector<16x32xf32>
    %2 = tpu.iota {dimensions = array<i32: 1>} : vector<1x32xi32>
    %c0_i32 = arith.constant 0 : i32
    %3 = vector.broadcast %c0_i32 : i32 to vector<1x32xi32>
    %4 = arith.cmpi sge, %2, %3 : vector<1x32xi32>
    %c8_i32 = arith.constant 8 : i32
    %5 = vector.broadcast %c8_i32 : i32 to vector<1x32xi32>
    %6 = arith.cmpi slt, %2, %5 : vector<1x32xi32>
    %7 = arith.andi %4, %6 : vector<1x32xi1>
    %8 = arith.extui %7 : vector<1x32xi1> to vector<1x32xi32>
    %9 = arith.sitofp %8 : vector<1x32xi32> to vector<1x32xf32>
    %c8_i32_2 = arith.constant 8 : i32
    %10 = vector.broadcast %c8_i32_2 : i32 to vector<1x32xi32>
    %11 = arith.cmpi sge, %2, %10 : vector<1x32xi32>
    %c16_i32 = arith.constant 16 : i32
    %12 = vector.broadcast %c16_i32 : i32 to vector<1x32xi32>
    %13 = arith.cmpi slt, %2, %12 : vector<1x32xi32>
    %14 = arith.andi %11, %13 : vector<1x32xi1>
    %15 = arith.extui %14 : vector<1x32xi1> to vector<1x32xi32>
    %16 = arith.sitofp %15 : vector<1x32xi32> to vector<1x32xf32>
    %c16_i32_3 = arith.constant 16 : i32
    %17 = vector.broadcast %c16_i32_3 : i32 to vector<1x32xi32>
    %18 = arith.cmpi sge, %2, %17 : vector<1x32xi32>
    %c24_i32 = arith.constant 24 : i32
    %19 = vector.broadcast %c24_i32 : i32 to vector<1x32xi32>
    %20 = arith.cmpi slt, %2, %19 : vector<1x32xi32>
    %21 = arith.andi %18, %20 : vector<1x32xi1>
    %22 = arith.extui %21 : vector<1x32xi1> to vector<1x32xi32>
    %23 = arith.sitofp %22 : vector<1x32xi32> to vector<1x32xf32>
    %c24_i32_4 = arith.constant 24 : i32
    %24 = vector.broadcast %c24_i32_4 : i32 to vector<1x32xi32>
    %25 = arith.cmpi sge, %2, %24 : vector<1x32xi32>
    %c32_i32 = arith.constant 32 : i32
    %26 = vector.broadcast %c32_i32 : i32 to vector<1x32xi32>
    %27 = arith.cmpi slt, %2, %26 : vector<1x32xi32>
    %28 = arith.andi %25, %27 : vector<1x32xi1>
    %29 = arith.extui %28 : vector<1x32xi1> to vector<1x32xi32>
    %30 = arith.sitofp %29 : vector<1x32xi32> to vector<1x32xf32>
    %c0_5 = arith.constant 0 : index
    %c0_6 = arith.constant 0 : index
    %c0_7 = arith.constant 0 : index
    %31 = vector.load %arg1[%c0_5, %c0_6, %c0_7] : memref<2x32x32xf32, #tpu.memory_space<vmem>>, vector<1x32x32xf32>
    %32 = vector.shape_cast %31 : vector<1x32x32xf32> to vector<32x32xf32>
    %c0_8 = arith.constant 0 : index
    %c0_9 = arith.constant 0 : index
    %c0_10 = arith.constant 0 : index
    %33 = vector.load %arg2[%c0_8, %c0_9, %c0_10] : memref<2x1x32xf32, #tpu.memory_space<vmem>>, vector<1x1x32xf32>
    %34 = vector.shape_cast %33 : vector<1x1x32xf32> to vector<1x32xf32>
    %cst = arith.constant dense<0.000000e+00> : vector<16x32xf32>
    %35 = tpu.matmul %1, %32, %cst {dimension_numbers = #tpu.dot_dimension_numbers<[1], [1], [0], [0], [0, 0, 1, 0], [], []>} : vector<16x32xf32>, vector<32x32xf32>, vector<16x32xf32> -> vector<16x32xf32>
    %36 = vector.broadcast %34 : vector<1x32xf32> to vector<16x32xf32>
    %37 = arith.addf %35, %36 : vector<16x32xf32>
    %38 = vector.shape_cast %37 : vector<16x32xf32> to vector<2x8x32xf32>
    %c0_11 = arith.constant 0 : index
    %c0_12 = arith.constant 0 : index
    %c0_13 = arith.constant 0 : index
    %39 = vector.load %arg3[%c0_11, %c0_12, %c0_13] : memref<2x32x32xf32, #tpu.memory_space<vmem>>, vector<1x32x32xf32>
    %40 = vector.shape_cast %39 : vector<1x32x32xf32> to vector<32x32xf32>
    %c0_14 = arith.constant 0 : index
    %c0_15 = arith.constant 0 : index
    %c0_16 = arith.constant 0 : index
    %41 = vector.load %arg4[%c0_14, %c0_15, %c0_16] : memref<2x1x32xf32, #tpu.memory_space<vmem>>, vector<1x1x32xf32>
    %42 = vector.shape_cast %41 : vector<1x1x32xf32> to vector<1x32xf32>
    %cst_17 = arith.constant dense<0.000000e+00> : vector<16x32xf32>
    %43 = tpu.matmul %1, %40, %cst_17 {dimension_numbers = #tpu.dot_dimension_numbers<[1], [1], [0], [0], [0, 0, 1, 0], [], []>} : vector<16x32xf32>, vector<32x32xf32>, vector<16x32xf32> -> vector<16x32xf32>
    %44 = vector.broadcast %42 : vector<1x32xf32> to vector<16x32xf32>
    %45 = arith.addf %43, %44 : vector<16x32xf32>
    %46 = vector.shape_cast %45 : vector<16x32xf32> to vector<2x8x32xf32>
    %c0_18 = arith.constant 0 : index
    %c0_19 = arith.constant 0 : index
    %c0_20 = arith.constant 0 : index
    %47 = vector.load %arg5[%c0_18, %c0_19, %c0_20] : memref<2x32x32xf32, #tpu.memory_space<vmem>>, vector<1x32x32xf32>
    %48 = vector.shape_cast %47 : vector<1x32x32xf32> to vector<32x32xf32>
    %c0_21 = arith.constant 0 : index
    %c0_22 = arith.constant 0 : index
    %c0_23 = arith.constant 0 : index
    %49 = vector.load %arg6[%c0_21, %c0_22, %c0_23] : memref<2x1x32xf32, #tpu.memory_space<vmem>>, vector<1x1x32xf32>
    %50 = vector.shape_cast %49 : vector<1x1x32xf32> to vector<1x32xf32>
    %cst_24 = arith.constant dense<0.000000e+00> : vector<16x32xf32>
    %51 = tpu.matmul %1, %48, %cst_24 {dimension_numbers = #tpu.dot_dimension_numbers<[1], [1], [0], [0], [0, 0, 1, 0], [], []>} : vector<16x32xf32>, vector<32x32xf32>, vector<16x32xf32> -> vector<16x32xf32>
    %52 = vector.broadcast %50 : vector<1x32xf32> to vector<16x32xf32>
    %53 = arith.addf %51, %52 : vector<16x32xf32>
    %54 = vector.shape_cast %53 : vector<16x32xf32> to vector<2x8x32xf32>
    %cst_25 = arith.constant 0.000000e+00 : f32
    %55 = vector.broadcast %cst_25 : f32 to vector<2x8x32xf32>
    %56 = vector.shape_cast %9 : vector<1x32xf32> to vector<1x1x32xf32>
    %57 = vector.broadcast %56 : vector<1x1x32xf32> to vector<2x8x32xf32>
    %58 = arith.mulf %46, %57 : vector<2x8x32xf32>
    "tpu.trace_start"() <{level = 10 : i32, message = "bqd,bkd->bqk"}> : () -> ()
    %cst_26 = arith.constant dense<0.000000e+00> : vector<2x8x8xf32>
    %59 = tpu.matmul %38, %58, %cst_26 {dimension_numbers = #tpu.dot_dimension_numbers<[2], [2], [1], [1], [0, 0, 0, 1, 1, 1], [0], [0]>} : vector<2x8x32xf32>, vector<2x8x32xf32>, vector<2x8x8xf32> -> vector<2x8x8xf32>
    "tpu.trace_stop"() : () -> ()
    %cst_27 = arith.constant dense<0xFF800000> : vector<2x8xf32>
    %60 = vector.multi_reduction <maximumf>, %59, %cst_27 [2] : vector<2x8x8xf32> to vector<2x8xf32>
    %61 = vector.shape_cast %60 : vector<2x8xf32> to vector<2x8x1xf32>
    %62 = vector.broadcast %61 : vector<2x8x1xf32> to vector<2x8x8xf32>
    %63 = arith.subf %59, %62 : vector<2x8x8xf32>
    %64 = math.exp %63 : vector<2x8x8xf32>
    %cst_28 = arith.constant dense<0.000000e+00> : vector<2x8xf32>
    %65 = vector.multi_reduction <add>, %64, %cst_28 [2] : vector<2x8x8xf32> to vector<2x8xf32>
    %66 = vector.shape_cast %65 : vector<2x8xf32> to vector<2x8x1xf32>
    %67 = tpu.reciprocal %66 {approx = true} : vector<2x8x1xf32> -> vector<2x8x1xf32>
    %68 = vector.broadcast %67 : vector<2x8x1xf32> to vector<2x8x8xf32>
    %69 = arith.mulf %64, %68 : vector<2x8x8xf32>
    "tpu.trace_start"() <{level = 10 : i32, message = "bqk,bkd->bqd"}> : () -> ()
    %cst_29 = arith.constant dense<0.000000e+00> : vector<2x8x32xf32>
    %70 = tpu.matmul %69, %54, %cst_29 {dimension_numbers = #tpu.dot_dimension_numbers<[2], [1], [1], [2], [0, 0, 0, 1, 1, 2], [0], [0]>} : vector<2x8x8xf32>, vector<2x8x32xf32>, vector<2x8x32xf32> -> vector<2x8x32xf32>
    "tpu.trace_stop"() : () -> ()
    %71 = vector.shape_cast %9 : vector<1x32xf32> to vector<1x1x32xf32>
    %72 = vector.broadcast %71 : vector<1x1x32xf32> to vector<2x8x32xf32>
    %73 = arith.mulf %70, %72 : vector<2x8x32xf32>
    %74 = arith.addf %55, %73 : vector<2x8x32xf32>
    %75 = vector.shape_cast %16 : vector<1x32xf32> to vector<1x1x32xf32>
    %76 = vector.broadcast %75 : vector<1x1x32xf32> to vector<2x8x32xf32>
    %77 = arith.mulf %46, %76 : vector<2x8x32xf32>
    "tpu.trace_start"() <{level = 10 : i32, message = "bqd,bkd->bqk"}> : () -> ()
    %cst_30 = arith.constant dense<0.000000e+00> : vector<2x8x8xf32>
    %78 = tpu.matmul %38, %77, %cst_30 {dimension_numbers = #tpu.dot_dimension_numbers<[2], [2], [1], [1], [0, 0, 0, 1, 1, 1], [0], [0]>} : vector<2x8x32xf32>, vector<2x8x32xf32>, vector<2x8x8xf32> -> vector<2x8x8xf32>
    "tpu.trace_stop"() : () -> ()
    %cst_31 = arith.constant dense<0xFF800000> : vector<2x8xf32>
    %79 = vector.multi_reduction <maximumf>, %78, %cst_31 [2] : vector<2x8x8xf32> to vector<2x8xf32>
    %80 = vector.shape_cast %79 : vector<2x8xf32> to vector<2x8x1xf32>
    %81 = vector.broadcast %80 : vector<2x8x1xf32> to vector<2x8x8xf32>
    %82 = arith.subf %78, %81 : vector<2x8x8xf32>
    %83 = math.exp %82 : vector<2x8x8xf32>
    %cst_32 = arith.constant dense<0.000000e+00> : vector<2x8xf32>
    %84 = vector.multi_reduction <add>, %83, %cst_32 [2] : vector<2x8x8xf32> to vector<2x8xf32>
    %85 = vector.shape_cast %84 : vector<2x8xf32> to vector<2x8x1xf32>
    %86 = tpu.reciprocal %85 {approx = true} : vector<2x8x1xf32> -> vector<2x8x1xf32>
    %87 = vector.broadcast %86 : vector<2x8x1xf32> to vector<2x8x8xf32>
    %88 = arith.mulf %83, %87 : vector<2x8x8xf32>
    "tpu.trace_start"() <{level = 10 : i32, message = "bqk,bkd->bqd"}> : () -> ()
    %cst_33 = arith.constant dense<0.000000e+00> : vector<2x8x32xf32>
    %89 = tpu.matmul %88, %54, %cst_33 {dimension_numbers = #tpu.dot_dimension_numbers<[2], [1], [1], [2], [0, 0, 0, 1, 1, 2], [0], [0]>} : vector<2x8x8xf32>, vector<2x8x32xf32>, vector<2x8x32xf32> -> vector<2x8x32xf32>
    "tpu.trace_stop"() : () -> ()
    %90 = vector.shape_cast %16 : vector<1x32xf32> to vector<1x1x32xf32>
    %91 = vector.broadcast %90 : vector<1x1x32xf32> to vector<2x8x32xf32>
    %92 = arith.mulf %89, %91 : vector<2x8x32xf32>
    %93 = arith.addf %74, %92 : vector<2x8x32xf32>
    %94 = vector.shape_cast %23 : vector<1x32xf32> to vector<1x1x32xf32>
    %95 = vector.broadcast %94 : vector<1x1x32xf32> to vector<2x8x32xf32>
    %96 = arith.mulf %46, %95 : vector<2x8x32xf32>
    "tpu.trace_start"() <{level = 10 : i32, message = "bqd,bkd->bqk"}> : () -> ()
    %cst_34 = arith.constant dense<0.000000e+00> : vector<2x8x8xf32>
    %97 = tpu.matmul %38, %96, %cst_34 {dimension_numbers = #tpu.dot_dimension_numbers<[2], [2], [1], [1], [0, 0, 0, 1, 1, 1], [0], [0]>} : vector<2x8x32xf32>, vector<2x8x32xf32>, vector<2x8x8xf32> -> vector<2x8x8xf32>
    "tpu.trace_stop"() : () -> ()
    %cst_35 = arith.constant dense<0xFF800000> : vector<2x8xf32>
    %98 = vector.multi_reduction <maximumf>, %97, %cst_35 [2] : vector<2x8x8xf32> to vector<2x8xf32>
    %99 = vector.shape_cast %98 : vector<2x8xf32> to vector<2x8x1xf32>
    %100 = vector.broadcast %99 : vector<2x8x1xf32> to vector<2x8x8xf32>
    %101 = arith.subf %97, %100 : vector<2x8x8xf32>
    %102 = math.exp %101 : vector<2x8x8xf32>
    %cst_36 = arith.constant dense<0.000000e+00> : vector<2x8xf32>
    %103 = vector.multi_reduction <add>, %102, %cst_36 [2] : vector<2x8x8xf32> to vector<2x8xf32>
    %104 = vector.shape_cast %103 : vector<2x8xf32> to vector<2x8x1xf32>
    %105 = tpu.reciprocal %104 {approx = true} : vector<2x8x1xf32> -> vector<2x8x1xf32>
    %106 = vector.broadcast %105 : vector<2x8x1xf32> to vector<2x8x8xf32>
    %107 = arith.mulf %102, %106 : vector<2x8x8xf32>
    "tpu.trace_start"() <{level = 10 : i32, message = "bqk,bkd->bqd"}> : () -> ()
    %cst_37 = arith.constant dense<0.000000e+00> : vector<2x8x32xf32>
    %108 = tpu.matmul %107, %54, %cst_37 {dimension_numbers = #tpu.dot_dimension_numbers<[2], [1], [1], [2], [0, 0, 0, 1, 1, 2], [0], [0]>} : vector<2x8x8xf32>, vector<2x8x32xf32>, vector<2x8x32xf32> -> vector<2x8x32xf32>
    "tpu.trace_stop"() : () -> ()
    %109 = vector.shape_cast %23 : vector<1x32xf32> to vector<1x1x32xf32>
    %110 = vector.broadcast %109 : vector<1x1x32xf32> to vector<2x8x32xf32>
    %111 = arith.mulf %108, %110 : vector<2x8x32xf32>
    %112 = arith.addf %93, %111 : vector<2x8x32xf32>
    %113 = vector.shape_cast %30 : vector<1x32xf32> to vector<1x1x32xf32>
    %114 = vector.broadcast %113 : vector<1x1x32xf32> to vector<2x8x32xf32>
    %115 = arith.mulf %46, %114 : vector<2x8x32xf32>
    "tpu.trace_start"() <{level = 10 : i32, message = "bqd,bkd->bqk"}> : () -> ()
    %cst_38 = arith.constant dense<0.000000e+00> : vector<2x8x8xf32>
    %116 = tpu.matmul %38, %115, %cst_38 {dimension_numbers = #tpu.dot_dimension_numbers<[2], [2], [1], [1], [0, 0, 0, 1, 1, 1], [0], [0]>} : vector<2x8x32xf32>, vector<2x8x32xf32>, vector<2x8x8xf32> -> vector<2x8x8xf32>
    "tpu.trace_stop"() : () -> ()
    %cst_39 = arith.constant dense<0xFF800000> : vector<2x8xf32>
    %117 = vector.multi_reduction <maximumf>, %116, %cst_39 [2] : vector<2x8x8xf32> to vector<2x8xf32>
    %118 = vector.shape_cast %117 : vector<2x8xf32> to vector<2x8x1xf32>
    %119 = vector.broadcast %118 : vector<2x8x1xf32> to vector<2x8x8xf32>
    %120 = arith.subf %116, %119 : vector<2x8x8xf32>
    %121 = math.exp %120 : vector<2x8x8xf32>
    %cst_40 = arith.constant dense<0.000000e+00> : vector<2x8xf32>
    %122 = vector.multi_reduction <add>, %121, %cst_40 [2] : vector<2x8x8xf32> to vector<2x8xf32>
    %123 = vector.shape_cast %122 : vector<2x8xf32> to vector<2x8x1xf32>
    %124 = tpu.reciprocal %123 {approx = true} : vector<2x8x1xf32> -> vector<2x8x1xf32>
    %125 = vector.broadcast %124 : vector<2x8x1xf32> to vector<2x8x8xf32>
    %126 = arith.mulf %121, %125 : vector<2x8x8xf32>
    "tpu.trace_start"() <{level = 10 : i32, message = "bqk,bkd->bqd"}> : () -> ()
    %cst_41 = arith.constant dense<0.000000e+00> : vector<2x8x32xf32>
    %127 = tpu.matmul %126, %54, %cst_41 {dimension_numbers = #tpu.dot_dimension_numbers<[2], [1], [1], [2], [0, 0, 0, 1, 1, 2], [0], [0]>} : vector<2x8x8xf32>, vector<2x8x32xf32>, vector<2x8x32xf32> -> vector<2x8x32xf32>
    "tpu.trace_stop"() : () -> ()
    %128 = vector.shape_cast %30 : vector<1x32xf32> to vector<1x1x32xf32>
    %129 = vector.broadcast %128 : vector<1x1x32xf32> to vector<2x8x32xf32>
    %130 = arith.mulf %127, %129 : vector<2x8x32xf32>
    %131 = arith.addf %112, %130 : vector<2x8x32xf32>
    %132 = vector.shape_cast %131 : vector<2x8x32xf32> to vector<16x32xf32>
    %c0_42 = arith.constant 0 : index
    %c0_43 = arith.constant 0 : index
    %c0_44 = arith.constant 0 : index
    %133 = vector.load %arg7[%c0_42, %c0_43, %c0_44] : memref<2x32x32xf32, #tpu.memory_space<vmem>>, vector<1x32x32xf32>
    %134 = vector.shape_cast %133 : vector<1x32x32xf32> to vector<32x32xf32>
    %c0_45 = arith.constant 0 : index
    %c0_46 = arith.constant 0 : index
    %c0_47 = arith.constant 0 : index
    %135 = vector.load %arg8[%c0_45, %c0_46, %c0_47] : memref<2x1x32xf32, #tpu.memory_space<vmem>>, vector<1x1x32xf32>
    %136 = vector.shape_cast %135 : vector<1x1x32xf32> to vector<1x32xf32>
    %cst_48 = arith.constant dense<0.000000e+00> : vector<16x32xf32>
    %137 = tpu.matmul %132, %134, %cst_48 {dimension_numbers = #tpu.dot_dimension_numbers<[1], [1], [0], [0], [0, 0, 1, 0], [], []>} : vector<16x32xf32>, vector<32x32xf32>, vector<16x32xf32> -> vector<16x32xf32>
    %138 = vector.broadcast %136 : vector<1x32xf32> to vector<16x32xf32>
    %139 = arith.addf %137, %138 : vector<16x32xf32>
    %140 = arith.addf %1, %139 : vector<16x32xf32>
    %c0_49 = arith.constant 0 : index
    %c0_50 = arith.constant 0 : index
    %c0_51 = arith.constant 0 : index
    %141 = vector.load %arg9[%c0_49, %c0_50, %c0_51] : memref<2x1x32xf32, #tpu.memory_space<vmem>>, vector<1x1x32xf32>
    %142 = vector.shape_cast %141 : vector<1x1x32xf32> to vector<1x32xf32>
    %c0_52 = arith.constant 0 : index
    %c0_53 = arith.constant 0 : index
    %c0_54 = arith.constant 0 : index
    %143 = vector.load %arg10[%c0_52, %c0_53, %c0_54] : memref<2x1x32xf32, #tpu.memory_space<vmem>>, vector<1x1x32xf32>
    %144 = vector.shape_cast %143 : vector<1x1x32xf32> to vector<1x32xf32>
    %cst_55 = arith.constant dense<0.000000e+00> : vector<16xf32>
    %145 = vector.multi_reduction <add>, %140, %cst_55 [1] : vector<16x32xf32> to vector<16xf32>
    %146 = vector.shape_cast %145 : vector<16xf32> to vector<16x1xf32>
    %cst_56 = arith.constant 3.200000e+01 : f32
    %147 = vector.broadcast %cst_56 : f32 to vector<16x1xf32>
    %148 = arith.divf %146, %147 : vector<16x1xf32>
    %149 = vector.broadcast %148 : vector<16x1xf32> to vector<16x32xf32>
    %150 = arith.subf %140, %149 : vector<16x32xf32>
    %151 = arith.mulf %150, %150 : vector<16x32xf32>
    %cst_57 = arith.constant dense<0.000000e+00> : vector<16xf32>
    %152 = vector.multi_reduction <add>, %151, %cst_57 [1] : vector<16x32xf32> to vector<16xf32>
    %153 = vector.shape_cast %152 : vector<16xf32> to vector<16x1xf32>
    %cst_58 = arith.constant 3.200000e+01 : f32
    %154 = vector.broadcast %cst_58 : f32 to vector<16x1xf32>
    %155 = arith.divf %153, %154 : vector<16x1xf32>
    %156 = vector.broadcast %148 : vector<16x1xf32> to vector<16x32xf32>
    %157 = arith.subf %140, %156 : vector<16x32xf32>
    %cst_59 = arith.constant 9.99999974E-6 : f32
    %158 = vector.broadcast %cst_59 : f32 to vector<16x1xf32>
    %159 = arith.addf %155, %158 : vector<16x1xf32>
    %160 = math.rsqrt %159 : vector<16x1xf32>
    %161 = vector.broadcast %160 : vector<16x1xf32> to vector<16x32xf32>
    %162 = arith.mulf %157, %161 : vector<16x32xf32>
    %163 = vector.broadcast %142 : vector<1x32xf32> to vector<16x32xf32>
    %164 = arith.mulf %162, %163 : vector<16x32xf32>
    %165 = vector.broadcast %144 : vector<1x32xf32> to vector<16x32xf32>
    %166 = arith.addf %164, %165 : vector<16x32xf32>
    %c0_60 = arith.constant 0 : index
    %c0_61 = arith.constant 0 : index
    %c0_62 = arith.constant 0 : index
    %167 = vector.load %arg13[%c0_60, %c0_61, %c0_62] : memref<2x64x32xf32, #tpu.memory_space<vmem>>, vector<1x64x32xf32>
    %168 = vector.shape_cast %167 : vector<1x64x32xf32> to vector<64x32xf32>
    %c0_63 = arith.constant 0 : index
    %c0_64 = arith.constant 0 : index
    %c0_65 = arith.constant 0 : index
    %169 = vector.load %arg14[%c0_63, %c0_64, %c0_65] : memref<2x1x64xf32, #tpu.memory_space<vmem>>, vector<1x1x64xf32>
    %170 = vector.shape_cast %169 : vector<1x1x64xf32> to vector<1x64xf32>
    %cst_66 = arith.constant dense<0.000000e+00> : vector<16x64xf32>
    %171 = tpu.matmul %166, %168, %cst_66 {dimension_numbers = #tpu.dot_dimension_numbers<[1], [1], [0], [0], [0, 0, 1, 0], [], []>} : vector<16x32xf32>, vector<64x32xf32>, vector<16x64xf32> -> vector<16x64xf32>
    %172 = vector.broadcast %170 : vector<1x64xf32> to vector<16x64xf32>
    %173 = arith.addf %171, %172 : vector<16x64xf32>
    %cst_67 = arith.constant 0.000000e+00 : f32
    %174 = vector.broadcast %cst_67 : f32 to vector<16x64xf32>
    %175 = arith.maximumf %173, %174 : vector<16x64xf32>
    %c0_68 = arith.constant 0 : index
    %c0_69 = arith.constant 0 : index
    %c0_70 = arith.constant 0 : index
    %176 = vector.load %arg15[%c0_68, %c0_69, %c0_70] : memref<2x32x64xf32, #tpu.memory_space<vmem>>, vector<1x32x64xf32>
    %177 = vector.shape_cast %176 : vector<1x32x64xf32> to vector<32x64xf32>
    %c0_71 = arith.constant 0 : index
    %c0_72 = arith.constant 0 : index
    %c0_73 = arith.constant 0 : index
    %178 = vector.load %arg16[%c0_71, %c0_72, %c0_73] : memref<2x1x32xf32, #tpu.memory_space<vmem>>, vector<1x1x32xf32>
    %179 = vector.shape_cast %178 : vector<1x1x32xf32> to vector<1x32xf32>
    %cst_74 = arith.constant dense<0.000000e+00> : vector<16x32xf32>
    %180 = tpu.matmul %175, %177, %cst_74 {dimension_numbers = #tpu.dot_dimension_numbers<[1], [1], [0], [0], [0, 0, 1, 0], [], []>} : vector<16x64xf32>, vector<32x64xf32>, vector<16x32xf32> -> vector<16x32xf32>
    %181 = vector.broadcast %179 : vector<1x32xf32> to vector<16x32xf32>
    %182 = arith.addf %180, %181 : vector<16x32xf32>
    %183 = arith.addf %166, %182 : vector<16x32xf32>
    %c0_75 = arith.constant 0 : index
    %c0_76 = arith.constant 0 : index
    %c0_77 = arith.constant 0 : index
    %184 = vector.load %arg11[%c0_75, %c0_76, %c0_77] : memref<2x1x32xf32, #tpu.memory_space<vmem>>, vector<1x1x32xf32>
    %185 = vector.shape_cast %184 : vector<1x1x32xf32> to vector<1x32xf32>
    %c0_78 = arith.constant 0 : index
    %c0_79 = arith.constant 0 : index
    %c0_80 = arith.constant 0 : index
    %186 = vector.load %arg12[%c0_78, %c0_79, %c0_80] : memref<2x1x32xf32, #tpu.memory_space<vmem>>, vector<1x1x32xf32>
    %187 = vector.shape_cast %186 : vector<1x1x32xf32> to vector<1x32xf32>
    %cst_81 = arith.constant dense<0.000000e+00> : vector<16xf32>
    %188 = vector.multi_reduction <add>, %183, %cst_81 [1] : vector<16x32xf32> to vector<16xf32>
    %189 = vector.shape_cast %188 : vector<16xf32> to vector<16x1xf32>
    %cst_82 = arith.constant 3.200000e+01 : f32
    %190 = vector.broadcast %cst_82 : f32 to vector<16x1xf32>
    %191 = arith.divf %189, %190 : vector<16x1xf32>
    %192 = vector.broadcast %191 : vector<16x1xf32> to vector<16x32xf32>
    %193 = arith.subf %183, %192 : vector<16x32xf32>
    %194 = arith.mulf %193, %193 : vector<16x32xf32>
    %cst_83 = arith.constant dense<0.000000e+00> : vector<16xf32>
    %195 = vector.multi_reduction <add>, %194, %cst_83 [1] : vector<16x32xf32> to vector<16xf32>
    %196 = vector.shape_cast %195 : vector<16xf32> to vector<16x1xf32>
    %cst_84 = arith.constant 3.200000e+01 : f32
    %197 = vector.broadcast %cst_84 : f32 to vector<16x1xf32>
    %198 = arith.divf %196, %197 : vector<16x1xf32>
    %199 = vector.broadcast %191 : vector<16x1xf32> to vector<16x32xf32>
    %200 = arith.subf %183, %199 : vector<16x32xf32>
    %cst_85 = arith.constant 9.99999974E-6 : f32
    %201 = vector.broadcast %cst_85 : f32 to vector<16x1xf32>
    %202 = arith.addf %198, %201 : vector<16x1xf32>
    %203 = math.rsqrt %202 : vector<16x1xf32>
    %204 = vector.broadcast %203 : vector<16x1xf32> to vector<16x32xf32>
    %205 = arith.mulf %200, %204 : vector<16x32xf32>
    %206 = vector.broadcast %185 : vector<1x32xf32> to vector<16x32xf32>
    %207 = arith.mulf %205, %206 : vector<16x32xf32>
    %208 = vector.broadcast %187 : vector<1x32xf32> to vector<16x32xf32>
    %209 = arith.addf %207, %208 : vector<16x32xf32>
    %c1 = arith.constant 1 : index
    %c0_86 = arith.constant 0 : index
    %c0_87 = arith.constant 0 : index
    %210 = vector.load %arg1[%c1, %c0_86, %c0_87] : memref<2x32x32xf32, #tpu.memory_space<vmem>>, vector<1x32x32xf32>
    %211 = vector.shape_cast %210 : vector<1x32x32xf32> to vector<32x32xf32>
    %c1_88 = arith.constant 1 : index
    %c0_89 = arith.constant 0 : index
    %c0_90 = arith.constant 0 : index
    %212 = vector.load %arg2[%c1_88, %c0_89, %c0_90] : memref<2x1x32xf32, #tpu.memory_space<vmem>>, vector<1x1x32xf32>
    %213 = vector.shape_cast %212 : vector<1x1x32xf32> to vector<1x32xf32>
    %cst_91 = arith.constant dense<0.000000e+00> : vector<16x32xf32>
    %214 = tpu.matmul %209, %211, %cst_91 {dimension_numbers = #tpu.dot_dimension_numbers<[1], [1], [0], [0], [0, 0, 1, 0], [], []>} : vector<16x32xf32>, vector<32x32xf32>, vector<16x32xf32> -> vector<16x32xf32>
    %215 = vector.broadcast %213 : vector<1x32xf32> to vector<16x32xf32>
    %216 = arith.addf %214, %215 : vector<16x32xf32>
    %217 = vector.shape_cast %216 : vector<16x32xf32> to vector<2x8x32xf32>
    %c1_92 = arith.constant 1 : index
    %c0_93 = arith.constant 0 : index
    %c0_94 = arith.constant 0 : index
    %218 = vector.load %arg3[%c1_92, %c0_93, %c0_94] : memref<2x32x32xf32, #tpu.memory_space<vmem>>, vector<1x32x32xf32>
    %219 = vector.shape_cast %218 : vector<1x32x32xf32> to vector<32x32xf32>
    %c1_95 = arith.constant 1 : index
    %c0_96 = arith.constant 0 : index
    %c0_97 = arith.constant 0 : index
    %220 = vector.load %arg4[%c1_95, %c0_96, %c0_97] : memref<2x1x32xf32, #tpu.memory_space<vmem>>, vector<1x1x32xf32>
    %221 = vector.shape_cast %220 : vector<1x1x32xf32> to vector<1x32xf32>
    %cst_98 = arith.constant dense<0.000000e+00> : vector<16x32xf32>
    %222 = tpu.matmul %209, %219, %cst_98 {dimension_numbers = #tpu.dot_dimension_numbers<[1], [1], [0], [0], [0, 0, 1, 0], [], []>} : vector<16x32xf32>, vector<32x32xf32>, vector<16x32xf32> -> vector<16x32xf32>
    %223 = vector.broadcast %221 : vector<1x32xf32> to vector<16x32xf32>
    %224 = arith.addf %222, %223 : vector<16x32xf32>
    %225 = vector.shape_cast %224 : vector<16x32xf32> to vector<2x8x32xf32>
    %c1_99 = arith.constant 1 : index
    %c0_100 = arith.constant 0 : index
    %c0_101 = arith.constant 0 : index
    %226 = vector.load %arg5[%c1_99, %c0_100, %c0_101] : memref<2x32x32xf32, #tpu.memory_space<vmem>>, vector<1x32x32xf32>
    %227 = vector.shape_cast %226 : vector<1x32x32xf32> to vector<32x32xf32>
    %c1_102 = arith.constant 1 : index
    %c0_103 = arith.constant 0 : index
    %c0_104 = arith.constant 0 : index
    %228 = vector.load %arg6[%c1_102, %c0_103, %c0_104] : memref<2x1x32xf32, #tpu.memory_space<vmem>>, vector<1x1x32xf32>
    %229 = vector.shape_cast %228 : vector<1x1x32xf32> to vector<1x32xf32>
    %cst_105 = arith.constant dense<0.000000e+00> : vector<16x32xf32>
    %230 = tpu.matmul %209, %227, %cst_105 {dimension_numbers = #tpu.dot_dimension_numbers<[1], [1], [0], [0], [0, 0, 1, 0], [], []>} : vector<16x32xf32>, vector<32x32xf32>, vector<16x32xf32> -> vector<16x32xf32>
    %231 = vector.broadcast %229 : vector<1x32xf32> to vector<16x32xf32>
    %232 = arith.addf %230, %231 : vector<16x32xf32>
    %233 = vector.shape_cast %232 : vector<16x32xf32> to vector<2x8x32xf32>
    %cst_106 = arith.constant 0.000000e+00 : f32
    %234 = vector.broadcast %cst_106 : f32 to vector<2x8x32xf32>
    %235 = vector.shape_cast %9 : vector<1x32xf32> to vector<1x1x32xf32>
    %236 = vector.broadcast %235 : vector<1x1x32xf32> to vector<2x8x32xf32>
    %237 = arith.mulf %225, %236 : vector<2x8x32xf32>
    "tpu.trace_start"() <{level = 10 : i32, message = "bqd,bkd->bqk"}> : () -> ()
    %cst_107 = arith.constant dense<0.000000e+00> : vector<2x8x8xf32>
    %238 = tpu.matmul %217, %237, %cst_107 {dimension_numbers = #tpu.dot_dimension_numbers<[2], [2], [1], [1], [0, 0, 0, 1, 1, 1], [0], [0]>} : vector<2x8x32xf32>, vector<2x8x32xf32>, vector<2x8x8xf32> -> vector<2x8x8xf32>
    "tpu.trace_stop"() : () -> ()
    %cst_108 = arith.constant dense<0xFF800000> : vector<2x8xf32>
    %239 = vector.multi_reduction <maximumf>, %238, %cst_108 [2] : vector<2x8x8xf32> to vector<2x8xf32>
    %240 = vector.shape_cast %239 : vector<2x8xf32> to vector<2x8x1xf32>
    %241 = vector.broadcast %240 : vector<2x8x1xf32> to vector<2x8x8xf32>
    %242 = arith.subf %238, %241 : vector<2x8x8xf32>
    %243 = math.exp %242 : vector<2x8x8xf32>
    %cst_109 = arith.constant dense<0.000000e+00> : vector<2x8xf32>
    %244 = vector.multi_reduction <add>, %243, %cst_109 [2] : vector<2x8x8xf32> to vector<2x8xf32>
    %245 = vector.shape_cast %244 : vector<2x8xf32> to vector<2x8x1xf32>
    %246 = tpu.reciprocal %245 {approx = true} : vector<2x8x1xf32> -> vector<2x8x1xf32>
    %247 = vector.broadcast %246 : vector<2x8x1xf32> to vector<2x8x8xf32>
    %248 = arith.mulf %243, %247 : vector<2x8x8xf32>
    "tpu.trace_start"() <{level = 10 : i32, message = "bqk,bkd->bqd"}> : () -> ()
    %cst_110 = arith.constant dense<0.000000e+00> : vector<2x8x32xf32>
    %249 = tpu.matmul %248, %233, %cst_110 {dimension_numbers = #tpu.dot_dimension_numbers<[2], [1], [1], [2], [0, 0, 0, 1, 1, 2], [0], [0]>} : vector<2x8x8xf32>, vector<2x8x32xf32>, vector<2x8x32xf32> -> vector<2x8x32xf32>
    "tpu.trace_stop"() : () -> ()
    %250 = vector.shape_cast %9 : vector<1x32xf32> to vector<1x1x32xf32>
    %251 = vector.broadcast %250 : vector<1x1x32xf32> to vector<2x8x32xf32>
    %252 = arith.mulf %249, %251 : vector<2x8x32xf32>
    %253 = arith.addf %234, %252 : vector<2x8x32xf32>
    %254 = vector.shape_cast %16 : vector<1x32xf32> to vector<1x1x32xf32>
    %255 = vector.broadcast %254 : vector<1x1x32xf32> to vector<2x8x32xf32>
    %256 = arith.mulf %225, %255 : vector<2x8x32xf32>
    "tpu.trace_start"() <{level = 10 : i32, message = "bqd,bkd->bqk"}> : () -> ()
    %cst_111 = arith.constant dense<0.000000e+00> : vector<2x8x8xf32>
    %257 = tpu.matmul %217, %256, %cst_111 {dimension_numbers = #tpu.dot_dimension_numbers<[2], [2], [1], [1], [0, 0, 0, 1, 1, 1], [0], [0]>} : vector<2x8x32xf32>, vector<2x8x32xf32>, vector<2x8x8xf32> -> vector<2x8x8xf32>
    "tpu.trace_stop"() : () -> ()
    %cst_112 = arith.constant dense<0xFF800000> : vector<2x8xf32>
    %258 = vector.multi_reduction <maximumf>, %257, %cst_112 [2] : vector<2x8x8xf32> to vector<2x8xf32>
    %259 = vector.shape_cast %258 : vector<2x8xf32> to vector<2x8x1xf32>
    %260 = vector.broadcast %259 : vector<2x8x1xf32> to vector<2x8x8xf32>
    %261 = arith.subf %257, %260 : vector<2x8x8xf32>
    %262 = math.exp %261 : vector<2x8x8xf32>
    %cst_113 = arith.constant dense<0.000000e+00> : vector<2x8xf32>
    %263 = vector.multi_reduction <add>, %262, %cst_113 [2] : vector<2x8x8xf32> to vector<2x8xf32>
    %264 = vector.shape_cast %263 : vector<2x8xf32> to vector<2x8x1xf32>
    %265 = tpu.reciprocal %264 {approx = true} : vector<2x8x1xf32> -> vector<2x8x1xf32>
    %266 = vector.broadcast %265 : vector<2x8x1xf32> to vector<2x8x8xf32>
    %267 = arith.mulf %262, %266 : vector<2x8x8xf32>
    "tpu.trace_start"() <{level = 10 : i32, message = "bqk,bkd->bqd"}> : () -> ()
    %cst_114 = arith.constant dense<0.000000e+00> : vector<2x8x32xf32>
    %268 = tpu.matmul %267, %233, %cst_114 {dimension_numbers = #tpu.dot_dimension_numbers<[2], [1], [1], [2], [0, 0, 0, 1, 1, 2], [0], [0]>} : vector<2x8x8xf32>, vector<2x8x32xf32>, vector<2x8x32xf32> -> vector<2x8x32xf32>
    "tpu.trace_stop"() : () -> ()
    %269 = vector.shape_cast %16 : vector<1x32xf32> to vector<1x1x32xf32>
    %270 = vector.broadcast %269 : vector<1x1x32xf32> to vector<2x8x32xf32>
    %271 = arith.mulf %268, %270 : vector<2x8x32xf32>
    %272 = arith.addf %253, %271 : vector<2x8x32xf32>
    %273 = vector.shape_cast %23 : vector<1x32xf32> to vector<1x1x32xf32>
    %274 = vector.broadcast %273 : vector<1x1x32xf32> to vector<2x8x32xf32>
    %275 = arith.mulf %225, %274 : vector<2x8x32xf32>
    "tpu.trace_start"() <{level = 10 : i32, message = "bqd,bkd->bqk"}> : () -> ()
    %cst_115 = arith.constant dense<0.000000e+00> : vector<2x8x8xf32>
    %276 = tpu.matmul %217, %275, %cst_115 {dimension_numbers = #tpu.dot_dimension_numbers<[2], [2], [1], [1], [0, 0, 0, 1, 1, 1], [0], [0]>} : vector<2x8x32xf32>, vector<2x8x32xf32>, vector<2x8x8xf32> -> vector<2x8x8xf32>
    "tpu.trace_stop"() : () -> ()
    %cst_116 = arith.constant dense<0xFF800000> : vector<2x8xf32>
    %277 = vector.multi_reduction <maximumf>, %276, %cst_116 [2] : vector<2x8x8xf32> to vector<2x8xf32>
    %278 = vector.shape_cast %277 : vector<2x8xf32> to vector<2x8x1xf32>
    %279 = vector.broadcast %278 : vector<2x8x1xf32> to vector<2x8x8xf32>
    %280 = arith.subf %276, %279 : vector<2x8x8xf32>
    %281 = math.exp %280 : vector<2x8x8xf32>
    %cst_117 = arith.constant dense<0.000000e+00> : vector<2x8xf32>
    %282 = vector.multi_reduction <add>, %281, %cst_117 [2] : vector<2x8x8xf32> to vector<2x8xf32>
    %283 = vector.shape_cast %282 : vector<2x8xf32> to vector<2x8x1xf32>
    %284 = tpu.reciprocal %283 {approx = true} : vector<2x8x1xf32> -> vector<2x8x1xf32>
    %285 = vector.broadcast %284 : vector<2x8x1xf32> to vector<2x8x8xf32>
    %286 = arith.mulf %281, %285 : vector<2x8x8xf32>
    "tpu.trace_start"() <{level = 10 : i32, message = "bqk,bkd->bqd"}> : () -> ()
    %cst_118 = arith.constant dense<0.000000e+00> : vector<2x8x32xf32>
    %287 = tpu.matmul %286, %233, %cst_118 {dimension_numbers = #tpu.dot_dimension_numbers<[2], [1], [1], [2], [0, 0, 0, 1, 1, 2], [0], [0]>} : vector<2x8x8xf32>, vector<2x8x32xf32>, vector<2x8x32xf32> -> vector<2x8x32xf32>
    "tpu.trace_stop"() : () -> ()
    %288 = vector.shape_cast %23 : vector<1x32xf32> to vector<1x1x32xf32>
    %289 = vector.broadcast %288 : vector<1x1x32xf32> to vector<2x8x32xf32>
    %290 = arith.mulf %287, %289 : vector<2x8x32xf32>
    %291 = arith.addf %272, %290 : vector<2x8x32xf32>
    %292 = vector.shape_cast %30 : vector<1x32xf32> to vector<1x1x32xf32>
    %293 = vector.broadcast %292 : vector<1x1x32xf32> to vector<2x8x32xf32>
    %294 = arith.mulf %225, %293 : vector<2x8x32xf32>
    "tpu.trace_start"() <{level = 10 : i32, message = "bqd,bkd->bqk"}> : () -> ()
    %cst_119 = arith.constant dense<0.000000e+00> : vector<2x8x8xf32>
    %295 = tpu.matmul %217, %294, %cst_119 {dimension_numbers = #tpu.dot_dimension_numbers<[2], [2], [1], [1], [0, 0, 0, 1, 1, 1], [0], [0]>} : vector<2x8x32xf32>, vector<2x8x32xf32>, vector<2x8x8xf32> -> vector<2x8x8xf32>
    "tpu.trace_stop"() : () -> ()
    %cst_120 = arith.constant dense<0xFF800000> : vector<2x8xf32>
    %296 = vector.multi_reduction <maximumf>, %295, %cst_120 [2] : vector<2x8x8xf32> to vector<2x8xf32>
    %297 = vector.shape_cast %296 : vector<2x8xf32> to vector<2x8x1xf32>
    %298 = vector.broadcast %297 : vector<2x8x1xf32> to vector<2x8x8xf32>
    %299 = arith.subf %295, %298 : vector<2x8x8xf32>
    %300 = math.exp %299 : vector<2x8x8xf32>
    %cst_121 = arith.constant dense<0.000000e+00> : vector<2x8xf32>
    %301 = vector.multi_reduction <add>, %300, %cst_121 [2] : vector<2x8x8xf32> to vector<2x8xf32>
    %302 = vector.shape_cast %301 : vector<2x8xf32> to vector<2x8x1xf32>
    %303 = tpu.reciprocal %302 {approx = true} : vector<2x8x1xf32> -> vector<2x8x1xf32>
    %304 = vector.broadcast %303 : vector<2x8x1xf32> to vector<2x8x8xf32>
    %305 = arith.mulf %300, %304 : vector<2x8x8xf32>
    "tpu.trace_start"() <{level = 10 : i32, message = "bqk,bkd->bqd"}> : () -> ()
    %cst_122 = arith.constant dense<0.000000e+00> : vector<2x8x32xf32>
    %306 = tpu.matmul %305, %233, %cst_122 {dimension_numbers = #tpu.dot_dimension_numbers<[2], [1], [1], [2], [0, 0, 0, 1, 1, 2], [0], [0]>} : vector<2x8x8xf32>, vector<2x8x32xf32>, vector<2x8x32xf32> -> vector<2x8x32xf32>
    "tpu.trace_stop"() : () -> ()
    %307 = vector.shape_cast %30 : vector<1x32xf32> to vector<1x1x32xf32>
    %308 = vector.broadcast %307 : vector<1x1x32xf32> to vector<2x8x32xf32>
    %309 = arith.mulf %306, %308 : vector<2x8x32xf32>
    %310 = arith.addf %291, %309 : vector<2x8x32xf32>
    %311 = vector.shape_cast %310 : vector<2x8x32xf32> to vector<16x32xf32>
    %c1_123 = arith.constant 1 : index
    %c0_124 = arith.constant 0 : index
    %c0_125 = arith.constant 0 : index
    %312 = vector.load %arg7[%c1_123, %c0_124, %c0_125] : memref<2x32x32xf32, #tpu.memory_space<vmem>>, vector<1x32x32xf32>
    %313 = vector.shape_cast %312 : vector<1x32x32xf32> to vector<32x32xf32>
    %c1_126 = arith.constant 1 : index
    %c0_127 = arith.constant 0 : index
    %c0_128 = arith.constant 0 : index
    %314 = vector.load %arg8[%c1_126, %c0_127, %c0_128] : memref<2x1x32xf32, #tpu.memory_space<vmem>>, vector<1x1x32xf32>
    %315 = vector.shape_cast %314 : vector<1x1x32xf32> to vector<1x32xf32>
    %cst_129 = arith.constant dense<0.000000e+00> : vector<16x32xf32>
    %316 = tpu.matmul %311, %313, %cst_129 {dimension_numbers = #tpu.dot_dimension_numbers<[1], [1], [0], [0], [0, 0, 1, 0], [], []>} : vector<16x32xf32>, vector<32x32xf32>, vector<16x32xf32> -> vector<16x32xf32>
    %317 = vector.broadcast %315 : vector<1x32xf32> to vector<16x32xf32>
    %318 = arith.addf %316, %317 : vector<16x32xf32>
    %319 = arith.addf %209, %318 : vector<16x32xf32>
    %c1_130 = arith.constant 1 : index
    %c0_131 = arith.constant 0 : index
    %c0_132 = arith.constant 0 : index
    %320 = vector.load %arg9[%c1_130, %c0_131, %c0_132] : memref<2x1x32xf32, #tpu.memory_space<vmem>>, vector<1x1x32xf32>
    %321 = vector.shape_cast %320 : vector<1x1x32xf32> to vector<1x32xf32>
    %c1_133 = arith.constant 1 : index
    %c0_134 = arith.constant 0 : index
    %c0_135 = arith.constant 0 : index
    %322 = vector.load %arg10[%c1_133, %c0_134, %c0_135] : memref<2x1x32xf32, #tpu.memory_space<vmem>>, vector<1x1x32xf32>
    %323 = vector.shape_cast %322 : vector<1x1x32xf32> to vector<1x32xf32>
    %cst_136 = arith.constant dense<0.000000e+00> : vector<16xf32>
    %324 = vector.multi_reduction <add>, %319, %cst_136 [1] : vector<16x32xf32> to vector<16xf32>
    %325 = vector.shape_cast %324 : vector<16xf32> to vector<16x1xf32>
    %cst_137 = arith.constant 3.200000e+01 : f32
    %326 = vector.broadcast %cst_137 : f32 to vector<16x1xf32>
    %327 = arith.divf %325, %326 : vector<16x1xf32>
    %328 = vector.broadcast %327 : vector<16x1xf32> to vector<16x32xf32>
    %329 = arith.subf %319, %328 : vector<16x32xf32>
    %330 = arith.mulf %329, %329 : vector<16x32xf32>
    %cst_138 = arith.constant dense<0.000000e+00> : vector<16xf32>
    %331 = vector.multi_reduction <add>, %330, %cst_138 [1] : vector<16x32xf32> to vector<16xf32>
    %332 = vector.shape_cast %331 : vector<16xf32> to vector<16x1xf32>
    %cst_139 = arith.constant 3.200000e+01 : f32
    %333 = vector.broadcast %cst_139 : f32 to vector<16x1xf32>
    %334 = arith.divf %332, %333 : vector<16x1xf32>
    %335 = vector.broadcast %327 : vector<16x1xf32> to vector<16x32xf32>
    %336 = arith.subf %319, %335 : vector<16x32xf32>
    %cst_140 = arith.constant 9.99999974E-6 : f32
    %337 = vector.broadcast %cst_140 : f32 to vector<16x1xf32>
    %338 = arith.addf %334, %337 : vector<16x1xf32>
    %339 = math.rsqrt %338 : vector<16x1xf32>
    %340 = vector.broadcast %339 : vector<16x1xf32> to vector<16x32xf32>
    %341 = arith.mulf %336, %340 : vector<16x32xf32>
    %342 = vector.broadcast %321 : vector<1x32xf32> to vector<16x32xf32>
    %343 = arith.mulf %341, %342 : vector<16x32xf32>
    %344 = vector.broadcast %323 : vector<1x32xf32> to vector<16x32xf32>
    %345 = arith.addf %343, %344 : vector<16x32xf32>
    %c1_141 = arith.constant 1 : index
    %c0_142 = arith.constant 0 : index
    %c0_143 = arith.constant 0 : index
    %346 = vector.load %arg13[%c1_141, %c0_142, %c0_143] : memref<2x64x32xf32, #tpu.memory_space<vmem>>, vector<1x64x32xf32>
    %347 = vector.shape_cast %346 : vector<1x64x32xf32> to vector<64x32xf32>
    %c1_144 = arith.constant 1 : index
    %c0_145 = arith.constant 0 : index
    %c0_146 = arith.constant 0 : index
    %348 = vector.load %arg14[%c1_144, %c0_145, %c0_146] : memref<2x1x64xf32, #tpu.memory_space<vmem>>, vector<1x1x64xf32>
    %349 = vector.shape_cast %348 : vector<1x1x64xf32> to vector<1x64xf32>
    %cst_147 = arith.constant dense<0.000000e+00> : vector<16x64xf32>
    %350 = tpu.matmul %345, %347, %cst_147 {dimension_numbers = #tpu.dot_dimension_numbers<[1], [1], [0], [0], [0, 0, 1, 0], [], []>} : vector<16x32xf32>, vector<64x32xf32>, vector<16x64xf32> -> vector<16x64xf32>
    %351 = vector.broadcast %349 : vector<1x64xf32> to vector<16x64xf32>
    %352 = arith.addf %350, %351 : vector<16x64xf32>
    %cst_148 = arith.constant 0.000000e+00 : f32
    %353 = vector.broadcast %cst_148 : f32 to vector<16x64xf32>
    %354 = arith.maximumf %352, %353 : vector<16x64xf32>
    %c1_149 = arith.constant 1 : index
    %c0_150 = arith.constant 0 : index
    %c0_151 = arith.constant 0 : index
    %355 = vector.load %arg15[%c1_149, %c0_150, %c0_151] : memref<2x32x64xf32, #tpu.memory_space<vmem>>, vector<1x32x64xf32>
    %356 = vector.shape_cast %355 : vector<1x32x64xf32> to vector<32x64xf32>
    %c1_152 = arith.constant 1 : index
    %c0_153 = arith.constant 0 : index
    %c0_154 = arith.constant 0 : index
    %357 = vector.load %arg16[%c1_152, %c0_153, %c0_154] : memref<2x1x32xf32, #tpu.memory_space<vmem>>, vector<1x1x32xf32>
    %358 = vector.shape_cast %357 : vector<1x1x32xf32> to vector<1x32xf32>
    %cst_155 = arith.constant dense<0.000000e+00> : vector<16x32xf32>
    %359 = tpu.matmul %354, %356, %cst_155 {dimension_numbers = #tpu.dot_dimension_numbers<[1], [1], [0], [0], [0, 0, 1, 0], [], []>} : vector<16x64xf32>, vector<32x64xf32>, vector<16x32xf32> -> vector<16x32xf32>
    %360 = vector.broadcast %358 : vector<1x32xf32> to vector<16x32xf32>
    %361 = arith.addf %359, %360 : vector<16x32xf32>
    %362 = arith.addf %345, %361 : vector<16x32xf32>
    %c1_156 = arith.constant 1 : index
    %c0_157 = arith.constant 0 : index
    %c0_158 = arith.constant 0 : index
    %363 = vector.load %arg11[%c1_156, %c0_157, %c0_158] : memref<2x1x32xf32, #tpu.memory_space<vmem>>, vector<1x1x32xf32>
    %364 = vector.shape_cast %363 : vector<1x1x32xf32> to vector<1x32xf32>
    %c1_159 = arith.constant 1 : index
    %c0_160 = arith.constant 0 : index
    %c0_161 = arith.constant 0 : index
    %365 = vector.load %arg12[%c1_159, %c0_160, %c0_161] : memref<2x1x32xf32, #tpu.memory_space<vmem>>, vector<1x1x32xf32>
    %366 = vector.shape_cast %365 : vector<1x1x32xf32> to vector<1x32xf32>
    %cst_162 = arith.constant dense<0.000000e+00> : vector<16xf32>
    %367 = vector.multi_reduction <add>, %362, %cst_162 [1] : vector<16x32xf32> to vector<16xf32>
    %368 = vector.shape_cast %367 : vector<16xf32> to vector<16x1xf32>
    %cst_163 = arith.constant 3.200000e+01 : f32
    %369 = vector.broadcast %cst_163 : f32 to vector<16x1xf32>
    %370 = arith.divf %368, %369 : vector<16x1xf32>
    %371 = vector.broadcast %370 : vector<16x1xf32> to vector<16x32xf32>
    %372 = arith.subf %362, %371 : vector<16x32xf32>
    %373 = arith.mulf %372, %372 : vector<16x32xf32>
    %cst_164 = arith.constant dense<0.000000e+00> : vector<16xf32>
    %374 = vector.multi_reduction <add>, %373, %cst_164 [1] : vector<16x32xf32> to vector<16xf32>
    %375 = vector.shape_cast %374 : vector<16xf32> to vector<16x1xf32>
    %cst_165 = arith.constant 3.200000e+01 : f32
    %376 = vector.broadcast %cst_165 : f32 to vector<16x1xf32>
    %377 = arith.divf %375, %376 : vector<16x1xf32>
    %378 = vector.broadcast %370 : vector<16x1xf32> to vector<16x32xf32>
    %379 = arith.subf %362, %378 : vector<16x32xf32>
    %cst_166 = arith.constant 9.99999974E-6 : f32
    %380 = vector.broadcast %cst_166 : f32 to vector<16x1xf32>
    %381 = arith.addf %377, %380 : vector<16x1xf32>
    %382 = math.rsqrt %381 : vector<16x1xf32>
    %383 = vector.broadcast %382 : vector<16x1xf32> to vector<16x32xf32>
    %384 = arith.mulf %379, %383 : vector<16x32xf32>
    %385 = vector.broadcast %364 : vector<1x32xf32> to vector<16x32xf32>
    %386 = arith.mulf %384, %385 : vector<16x32xf32>
    %387 = vector.broadcast %366 : vector<1x32xf32> to vector<16x32xf32>
    %388 = arith.addf %386, %387 : vector<16x32xf32>
    %389 = vector.shape_cast %388 : vector<16x32xf32> to vector<2x8x32xf32>
    %cst_167 = arith.constant dense<0.000000e+00> : vector<2x32xf32>
    %390 = vector.multi_reduction <add>, %389, %cst_167 [1] : vector<2x8x32xf32> to vector<2x32xf32>
    %cst_168 = arith.constant 8.000000e+00 : f32
    %391 = vector.broadcast %cst_168 : f32 to vector<2x32xf32>
    %392 = arith.divf %390, %391 : vector<2x32xf32>
    %c0_169 = arith.constant 0 : index
    %c0_170 = arith.constant 0 : index
    %393 = vector.load %arg17[%c0_169, %c0_170] : memref<6x32xf32, #tpu.memory_space<vmem>>, vector<6x32xf32>
    %c0_171 = arith.constant 0 : index
    %c0_172 = arith.constant 0 : index
    %394 = vector.load %arg18[%c0_171, %c0_172] : memref<1x6xf32, #tpu.memory_space<vmem>>, vector<1x6xf32>
    %cst_173 = arith.constant dense<0.000000e+00> : vector<2x6xf32>
    %395 = tpu.matmul %392, %393, %cst_173 {dimension_numbers = #tpu.dot_dimension_numbers<[1], [1], [0], [0], [0, 0, 1, 0], [], []>} : vector<2x32xf32>, vector<6x32xf32>, vector<2x6xf32> -> vector<2x6xf32>
    %396 = vector.broadcast %394 : vector<1x6xf32> to vector<2x6xf32>
    %397 = arith.addf %395, %396 : vector<2x6xf32>
    %cst_174 = arith.constant 0.000000e+00 : f32
    %398 = vector.broadcast %cst_174 : f32 to vector<2x6xf32>
    %399 = arith.cmpf ogt, %397, %398 : vector<2x6xf32>
    %cst_175 = arith.constant 0.00999999977 : f32
    %400 = vector.broadcast %cst_175 : f32 to vector<2x6xf32>
    %401 = arith.mulf %400, %397 : vector<2x6xf32>
    %402 = arith.select %399, %397, %401 : vector<2x6xi1>, vector<2x6xf32>
    %c0_176 = arith.constant 0 : index
    %c0_177 = arith.constant 0 : index
    %403 = vector.load %arg19[%c0_176, %c0_177] : memref<3x6xf32, #tpu.memory_space<vmem>>, vector<3x6xf32>
    %c0_178 = arith.constant 0 : index
    %c0_179 = arith.constant 0 : index
    %404 = vector.load %arg20[%c0_178, %c0_179] : memref<1x3xf32, #tpu.memory_space<vmem>>, vector<1x3xf32>
    %cst_180 = arith.constant dense<0.000000e+00> : vector<2x3xf32>
    %405 = tpu.matmul %402, %403, %cst_180 {dimension_numbers = #tpu.dot_dimension_numbers<[1], [1], [0], [0], [0, 0, 1, 0], [], []>} : vector<2x6xf32>, vector<3x6xf32>, vector<2x3xf32> -> vector<2x3xf32>
    %406 = vector.broadcast %404 : vector<1x3xf32> to vector<2x3xf32>
    %407 = arith.addf %405, %406 : vector<2x3xf32>
    %408 = math.absf %407 : vector<2x3xf32>
    %cst_181 = arith.constant 0.000000e+00 : f32
    %409 = vector.broadcast %cst_181 : f32 to vector<2x3xf32>
    %410 = arith.subf %409, %408 : vector<2x3xf32>
    %411 = math.exp %410 : vector<2x3xf32>
    %cst_182 = arith.constant 1.000000e+00 : f32
    %412 = vector.broadcast %cst_182 : f32 to vector<2x3xf32>
    %413 = arith.addf %412, %411 : vector<2x3xf32>
    %cst_183 = arith.constant 1.000000e+00 : f32
    %414 = vector.broadcast %cst_183 : f32 to vector<2x3xf32>
    %415 = arith.divf %414, %413 : vector<2x3xf32>
    %cst_184 = arith.constant 0.000000e+00 : f32
    %416 = vector.broadcast %cst_184 : f32 to vector<2x3xf32>
    %417 = arith.cmpf oge, %407, %416 : vector<2x3xf32>
    %418 = arith.mulf %411, %415 : vector<2x3xf32>
    %419 = arith.select %417, %415, %418 : vector<2x3xi1>, vector<2x3xf32>
    %c0_185 = arith.constant 0 : index
    %c0_186 = arith.constant 0 : index
    %420 = vector.load %arg21[%c0_185, %c0_186] : memref<2x3xf32, #tpu.memory_space<vmem>>, vector<2x3xf32>
    tpu.vector_store %arg21[%c0_185, %c0_186], %419 {strides = array<i32>} : memref<2x3xf32, #tpu.memory_space<vmem>>, vector<2x3xf32>,
    return
  }
}

</mosaic_0001>

<llo_original>
// kernel: tpu_custom_call.1
$region0: #{tpu_custom_call.1}
  #allocation0 [shape = 'u32[]', space=smem, size = 0x4, offset = 0x4, fixed_abs, tag = 'smem constant byte address 0x4 - core index']
  #allocation1 [shape = 'u32[144,128]{1,0:T(1,128)}', space=vmem, size = 0x12000, scoped, tag = 'internal scratch']
  %s0 = inlined_call_operand.hbm [shape: f32[2,8,32], index: 0, kind: input, shape index: {}]
  %s1 = inlined_call_operand.vmem [shape: f32[2,32,32], index: 1, kind: input, shape index: {}]
  %s2 = inlined_call_operand.vmem [shape: f32[2,1,32], index: 2, kind: input, shape index: {}]
  %s3 = inlined_call_operand.vmem [shape: f32[2,32,32], index: 3, kind: input, shape index: {}]
  %s4 = inlined_call_operand.hbm [shape: f32[2,1,32], index: 4, kind: input, shape index: {}]
  %s5 = inlined_call_operand.vmem [shape: f32[2,32,32], index: 5, kind: input, shape index: {}]
  %s6 = inlined_call_operand.hbm [shape: f32[2,1,32], index: 6, kind: input, shape index: {}]
  %s7 = inlined_call_operand.hbm [shape: f32[2,32,32], index: 7, kind: input, shape index: {}]
  %s8 = inlined_call_operand.hbm [shape: f32[2,1,32], index: 8, kind: input, shape index: {}]
  %s9 = inlined_call_operand.hbm [shape: f32[2,1,32], index: 9, kind: input, shape index: {}]
  %s10 = inlined_call_operand.vmem [shape: f32[2,1,32], index: 10, kind: input, shape index: {}]
  %s11 = inlined_call_operand.vmem [shape: f32[2,1,32], index: 11, kind: input, shape index: {}]
  %s12 = inlined_call_operand.vmem [shape: f32[2,1,32], index: 12, kind: input, shape index: {}]
  %s13 = inlined_call_operand.vmem [shape: f32[2,64,32], index: 13, kind: input, shape index: {}]
  %s14 = inlined_call_operand.vmem [shape: f32[2,1,64], index: 14, kind: input, shape index: {}]
  %s15 = inlined_call_operand.hbm [shape: f32[2,32,64], index: 15, kind: input, shape index: {}]
  %s16 = inlined_call_operand.vmem [shape: f32[2,1,32], index: 16, kind: input, shape index: {}]
  %s17 = inlined_call_operand.vmem [shape: f32[6,32], index: 17, kind: input, shape index: {}]
  %s18 = inlined_call_operand.vmem [shape: f32[1,6], index: 18, kind: input, shape index: {}]
  %s19 = inlined_call_operand.vmem [shape: f32[3,6], index: 19, kind: input, shape index: {}]
  %s20 = inlined_call_operand.vmem [shape: f32[1,3], index: 20, kind: input, shape index: {}]
  %s21 = inlined_call_operand.hbm [shape: f32[2,3], index: 21, kind: output, shape index: {}]
  %s22 = sld [smem:[#allocation0]]
  $region122: #{tpu_custom_call.1} parent=0
    _
  %s24 = ssub.s32 1, %s22
  %s25 = scalar_select 0, %s24, %s22
  $region1: #{tpu_custom_call.1} parent=0
    #allocation2 [shape = 'u8[8192]{0}', space=vmem, size = 0x2000, scoped, tag = 'input window, operand 0, single buffered']
    #allocation3 [shape = 's32[1]{0}', space=sflag, size = 0x4, scoped, tag = 'scoped memory for tpu_custom_call.1']
    #allocation4 [shape = 's32[1]{0}', space=sflag, size = 0x4, scoped, tag = 'scoped memory for tpu_custom_call.1']
    #allocation5 [shape = 'u8[1024]{0}', space=vmem, size = 0x400, scoped, tag = 'input window, operand 4, single buffered']
    #allocation6 [shape = 's32[1]{0}', space=sflag, size = 0x4, scoped, tag = 'scoped memory for tpu_custom_call.1']
    #allocation7 [shape = 'u8[1024]{0}', space=vmem, size = 0x400, scoped, tag = 'input window, operand 6, single buffered']
    #allocation8 [shape = 'u8[32768]{0}', space=vmem, size = 0x8000, scoped, tag = 'input window, operand 7, single buffered']
    #allocation9 [shape = 's32[1]{0}', space=sflag, size = 0x4, scoped, tag = 'scoped memory for tpu_custom_call.1']
    #allocation10 [shape = 'u8[1024]{0}', space=vmem, size = 0x400, scoped, tag = 'input window, operand 8, single buffered']
    #allocation11 [shape = 'u8[1024]{0}', space=vmem, size = 0x400, scoped, tag = 'input window, operand 9, single buffered']
    #allocation12 [shape = 's32[1]{0}', space=sflag, size = 0x4, scoped, tag = 'scoped memory for tpu_custom_call.1']
    #allocation13 [shape = 'u8[32768]{0}', space=vmem, size = 0x8000, scoped, tag = 'input window, operand 15, single buffered']
    #allocation14 [shape = 'u8[1024]{0}', space=vmem, size = 0x400, scoped, tag = 'output window, operand 0, single buffered']
    %26 = vsyncpa [#allocation3], 0
    %27 = vsyncpa [#allocation6], 0
    %28 = vsyncpa [#allocation9], 0
    %29 = vsyncpa [#allocation12], 0
    %30 = vsyncpa [#allocation4], 0
    // Predicated region
    $region2: #{tpu_custom_call.1} parent=1 // pred_check
      _
    $region3: #{tpu_custom_call.1} parent=1 // pred_check_branch
      %32 = sbr.rel (0) target = $region5
    $region4: #{tpu_custom_call.1} parent=1 // pred_region
      %s34 = ssub.s32 256, 256
      %35 = vsyncadd [#allocation3], %s34
      %s36 = sshll.u32 [#allocation2], 4
      %s37 = int_to_ptr.vmem [resolvable:$true] %s36
      %42 = dma.hbm_to_vmem [thread:$0]  %s0, 256, %s37, [#allocation3], 128, 128, 8
    $region5: #{tpu_custom_call.1} parent=1 // pred_fallthru
      _
    // Predicated region
    $region6: #{tpu_custom_call.1} parent=1 // pred_check
      _
    $region7: #{tpu_custom_call.1} parent=1 // pred_check_branch
      %44 = sbr.rel (0) target = $region9
    $region8: #{tpu_custom_call.1} parent=1 // pred_region
      _
    $region9: #{tpu_custom_call.1} parent=1 // pred_fallthru
      _
    // Predicated region
    $region10: #{tpu_custom_call.1} parent=1 // pred_check
      _
    $region11: #{tpu_custom_call.1} parent=1 // pred_check_branch
      %46 = sbr.rel (0) target = $region13
    $region12: #{tpu_custom_call.1} parent=1 // pred_region
      _
    $region13: #{tpu_custom_call.1} parent=1 // pred_fallthru
      _
    // Predicated region
    $region14: #{tpu_custom_call.1} parent=1 // pred_check
      _
    $region15: #{tpu_custom_call.1} parent=1 // pred_check_branch
      %48 = sbr.rel (0) target = $region17
    $region16: #{tpu_custom_call.1} parent=1 // pred_region
      _
    $region17: #{tpu_custom_call.1} parent=1 // pred_fallthru
      _
    // Predicated region
    $region18: #{tpu_custom_call.1} parent=1 // pred_check
      _
    $region19: #{tpu_custom_call.1} parent=1 // pred_check_branch
      %50 = sbr.rel (0) target = $region21
    $region20: #{tpu_custom_call.1} parent=1 // pred_region
      %s52 = ssub.s32 32, 32
      %53 = vsyncadd [#allocation6], %s52
      %s54 = sshll.u32 [#allocation5], 4
      %s55 = int_to_ptr.vmem [resolvable:$true] %s54
      %60 = dma.hbm_to_vmem [thread:$0]  %s4, 32, %s55, [#allocation6], 16, 16, 1
    $region21: #{tpu_custom_call.1} parent=1 // pred_fallthru
      _
    // Predicated region
    $region22: #{tpu_custom_call.1} parent=1 // pred_check
      _
    $region23: #{tpu_custom_call.1} parent=1 // pred_check_branch
      %62 = sbr.rel (0) target = $region25
    $region24: #{tpu_custom_call.1} parent=1 // pred_region
      _
    $region25: #{tpu_custom_call.1} parent=1 // pred_fallthru
      _
    // Predicated region
    $region26: #{tpu_custom_call.1} parent=1 // pred_check
      _
    $region27: #{tpu_custom_call.1} parent=1 // pred_check_branch
      %64 = sbr.rel (0) target = $region29
    $region28: #{tpu_custom_call.1} parent=1 // pred_region
      %s66 = ssub.s32 32, 32
      %67 = vsyncadd [#allocation6], %s66
      %s68 = sshll.u32 [#allocation7], 4
      %s69 = int_to_ptr.vmem [resolvable:$true] %s68
      %74 = dma.hbm_to_vmem [thread:$0]  %s6, 32, %s69, [#allocation6], 16, 16, 1
    $region29: #{tpu_custom_call.1} parent=1 // pred_fallthru
      _
    // Predicated region
    $region30: #{tpu_custom_call.1} parent=1 // pred_check
      _
    $region31: #{tpu_custom_call.1} parent=1 // pred_check_branch
      %76 = sbr.rel (0) target = $region33
    $region32: #{tpu_custom_call.1} parent=1 // pred_region
      %s78 = ssub.s32 1024, 1024
      %79 = vsyncadd [#allocation9], %s78
      %s80 = sshll.u32 [#allocation8], 4
      %s81 = int_to_ptr.vmem [resolvable:$true] %s80
      %86 = dma.hbm_to_vmem [thread:$0]  %s7, 1024, %s81, [#allocation9], 128, 128, 8
    $region33: #{tpu_custom_call.1} parent=1 // pred_fallthru
      _
    // Predicated region
    $region34: #{tpu_custom_call.1} parent=1 // pred_check
      _
    $region35: #{tpu_custom_call.1} parent=1 // pred_check_branch
      %88 = sbr.rel (0) target = $region37
    $region36: #{tpu_custom_call.1} parent=1 // pred_region
      %s90 = ssub.s32 32, 32
      %91 = vsyncadd [#allocation9], %s90
      %s92 = sshll.u32 [#allocation10], 4
      %s93 = int_to_ptr.vmem [resolvable:$true] %s92
      %98 = dma.hbm_to_vmem [thread:$0]  %s8, 32, %s93, [#allocation9], 16, 16, 1
    $region37: #{tpu_custom_call.1} parent=1 // pred_fallthru
      _
    // Predicated region
    $region38: #{tpu_custom_call.1} parent=1 // pred_check
      _
    $region39: #{tpu_custom_call.1} parent=1 // pred_check_branch
      %100 = sbr.rel (0) target = $region41
    $region40: #{tpu_custom_call.1} parent=1 // pred_region
      %s102 = ssub.s32 32, 32
      %103 = vsyncadd [#allocation12], %s102
      %s104 = sshll.u32 [#allocation11], 4
      %s105 = int_to_ptr.vmem [resolvable:$true] %s104
      %110 = dma.hbm_to_vmem [thread:$0]  %s9, 32, %s105, [#allocation12], 16, 16, 1
    $region41: #{tpu_custom_call.1} parent=1 // pred_fallthru
      _
    // Predicated region
    $region42: #{tpu_custom_call.1} parent=1 // pred_check
      _
    $region43: #{tpu_custom_call.1} parent=1 // pred_check_branch
      %112 = sbr.rel (0) target = $region45
    $region44: #{tpu_custom_call.1} parent=1 // pred_region
      _
    $region45: #{tpu_custom_call.1} parent=1 // pred_fallthru
      _
    // Predicated region
    $region46: #{tpu_custom_call.1} parent=1 // pred_check
      _
    $region47: #{tpu_custom_call.1} parent=1 // pred_check_branch
      %114 = sbr.rel (0) target = $region49
    $region48: #{tpu_custom_call.1} parent=1 // pred_region
      _
    $region49: #{tpu_custom_call.1} parent=1 // pred_fallthru
      _
    // Predicated region
    $region50: #{tpu_custom_call.1} parent=1 // pred_check
      _
    $region51: #{tpu_custom_call.1} parent=1 // pred_check_branch
      %116 = sbr.rel (0) target = $region53
    $region52: #{tpu_custom_call.1} parent=1 // pred_region
      _
    $region53: #{tpu_custom_call.1} parent=1 // pred_fallthru
      _
    // Predicated region
    $region54: #{tpu_custom_call.1} parent=1 // pred_check
      _
    $region55: #{tpu_custom_call.1} parent=1 // pred_check_branch
      %118 = sbr.rel (0) target = $region57
    $region56: #{tpu_custom_call.1} parent=1 // pred_region
      _
    $region57: #{tpu_custom_call.1} parent=1 // pred_fallthru
      _
    // Predicated region
    $region58: #{tpu_custom_call.1} parent=1 // pred_check
      _
    $region59: #{tpu_custom_call.1} parent=1 // pred_check_branch
      %120 = sbr.rel (0) target = $region61
    $region60: #{tpu_custom_call.1} parent=1 // pred_region
      _
    $region61: #{tpu_custom_call.1} parent=1 // pred_fallthru
      _
    // Predicated region
    $region62: #{tpu_custom_call.1} parent=1 // pred_check
      _
    $region63: #{tpu_custom_call.1} parent=1 // pred_check_branch
      %122 = sbr.rel (0) target = $region65
    $region64: #{tpu_custom_call.1} parent=1 // pred_region
      %s124 = ssub.s32 1024, 1024
      %125 = vsyncadd [#allocation12], %s124
      %s126 = sshll.u32 [#allocation13], 4
      %s127 = int_to_ptr.vmem [resolvable:$true] %s126
      %132 = dma.hbm_to_vmem [thread:$0]  %s15, 1024, %s127, [#allocation12], 128, 128, 8
    $region65: #{tpu_custom_call.1} parent=1 // pred_fallthru
      _
    // Predicated region
    $region66: #{tpu_custom_call.1} parent=1 // pred_check
      _
    $region67: #{tpu_custom_call.1} parent=1 // pred_check_branch
      %134 = sbr.rel (0) target = $region69
    $region68: #{tpu_custom_call.1} parent=1 // pred_region
      _
    $region69: #{tpu_custom_call.1} parent=1 // pred_fallthru
      _
    // Predicated region
    $region70: #{tpu_custom_call.1} parent=1 // pred_check
      _
    $region71: #{tpu_custom_call.1} parent=1 // pred_check_branch
      %136 = sbr.rel (0) target = $region73
    $region72: #{tpu_custom_call.1} parent=1 // pred_region
      _
    $region73: #{tpu_custom_call.1} parent=1 // pred_fallthru
      _
    // Predicated region
    $region74: #{tpu_custom_call.1} parent=1 // pred_check
      _
    $region75: #{tpu_custom_call.1} parent=1 // pred_check_branch
      %138 = sbr.rel (0) target = $region77
    $region76: #{tpu_custom_call.1} parent=1 // pred_region
      _
    $region77: #{tpu_custom_call.1} parent=1 // pred_fallthru
      _
    // Predicated region
    $region78: #{tpu_custom_call.1} parent=1 // pred_check
      _
    $region79: #{tpu_custom_call.1} parent=1 // pred_check_branch
      %140 = sbr.rel (0) target = $region81
    $region80: #{tpu_custom_call.1} parent=1 // pred_region
      _
    $region81: #{tpu_custom_call.1} parent=1 // pred_fallthru
      _
    // Predicated region
    $region82: #{tpu_custom_call.1} parent=1 // pred_check
      _
    $region83: #{tpu_custom_call.1} parent=1 // pred_check_branch
      %142 = sbr.rel (0) target = $region85
    $region84: #{tpu_custom_call.1} parent=1 // pred_region
      _
    $region85: #{tpu_custom_call.1} parent=1 // pred_fallthru
      _
    // Predicated region
    $region86: #{tpu_custom_call.1} parent=1 // pred_check
      _
    $region87: #{tpu_custom_call.1} parent=1 // pred_check_branch
      %144 = sbr.rel (0) target = $region89
    $region88: #{tpu_custom_call.1} parent=1 // pred_region
      %145 = dma.done [#allocation3], 256
    $region89: #{tpu_custom_call.1} parent=1 // pred_fallthru
      _
    // Predicated region
    $region90: #{tpu_custom_call.1} parent=1 // pred_check
      _
    $region91: #{tpu_custom_call.1} parent=1 // pred_check_branch
      %147 = sbr.rel (0) target = $region93
    $region92: #{tpu_custom_call.1} parent=1 // pred_region
      %148 = dma.done [#allocation6], 32
    $region93: #{tpu_custom_call.1} parent=1 // pred_fallthru
      _
    // Predicated region
    $region94: #{tpu_custom_call.1} parent=1 // pred_check
      _
    $region95: #{tpu_custom_call.1} parent=1 // pred_check_branch
      %150 = sbr.rel (0) target = $region97
    $region96: #{tpu_custom_call.1} parent=1 // pred_region
      %151 = dma.done [#allocation6], 32
    $region97: #{tpu_custom_call.1} parent=1 // pred_fallthru
      _
    // Predicated region
    $region98: #{tpu_custom_call.1} parent=1 // pred_check
      _
    $region99: #{tpu_custom_call.1} parent=1 // pred_check_branch
      %153 = sbr.rel (0) target = $region101
    $region100: #{tpu_custom_call.1} parent=1 // pred_region
      %154 = dma.done [#allocation9], 1024
    $region101: #{tpu_custom_call.1} parent=1 // pred_fallthru
      _
    // Predicated region
    $region102: #{tpu_custom_call.1} parent=1 // pred_check
      _
    $region103: #{tpu_custom_call.1} parent=1 // pred_check_branch
      %156 = sbr.rel (0) target = $region105
    $region104: #{tpu_custom_call.1} parent=1 // pred_region
      %157 = dma.done [#allocation9], 32
    $region105: #{tpu_custom_call.1} parent=1 // pred_fallthru
      _
    // Predicated region
    $region106: #{tpu_custom_call.1} parent=1 // pred_check
      _
    $region107: #{tpu_custom_call.1} parent=1 // pred_check_branch
      %159 = sbr.rel (0) target = $region109
    $region108: #{tpu_custom_call.1} parent=1 // pred_region
      %160 = dma.done [#allocation12], 32
    $region109: #{tpu_custom_call.1} parent=1 // pred_fallthru
      _
    // Predicated region
    $region110: #{tpu_custom_call.1} parent=1 // pred_check
      _
    $region111: #{tpu_custom_call.1} parent=1 // pred_check_branch
      %162 = sbr.rel (0) target = $region113
    $region112: #{tpu_custom_call.1} parent=1 // pred_region
      %163 = dma.done [#allocation12], 1024
    $region113: #{tpu_custom_call.1} parent=1 // pred_fallthru
      _
    %v164 = vld [vmem:[#allocation2] sm:$0xff]
    %v165 = vld [vmem:[#allocation2 + $0x8] sm:$0xff]
    %v166 = vlaneseq
    %v167 = vand.u32 %v166, 127
    %vm168 = vcmp.ge.s32.totalorder %v167, 0
    %vm169 = vcmp.lt.s32.totalorder %v167, 8
    %vm170 = vmand %vm168, %vm169
    %v171 = vsel %vm170, 1, 0
    %v172 = vcvt.s32.f32 %v171
    %vm173 = vcmp.ge.s32.totalorder %v167, 8
    %vm174 = vcmp.lt.s32.totalorder %v167, 16
    %vm175 = vmand %vm173, %vm174
    %v176 = vsel %vm175, 1, 0
    %v177 = vcvt.s32.f32 %v176
    %vm178 = vcmp.ge.s32.totalorder %v167, 16
    %vm179 = vcmp.lt.s32.totalorder %v167, 24
    %vm180 = vmand %vm178, %vm179
    %v181 = vsel %vm180, 1, 0
    %v182 = vcvt.s32.f32 %v181
    %vm183 = vcmp.ge.s32.totalorder %v167, 24
    %vm184 = vcmp.lt.s32.totalorder %v167, 32
    %vm185 = vmand %vm183, %vm184
    %v186 = vsel %vm185, 1, 0
    %v187 = vcvt.s32.f32 %v186
    %v188 = vld [vmem:[%s1] sm:$0xff]
    %v189 = vld [vmem:[%s1 + $0x8] sm:$0xff]
    %v190 = vld [vmem:[%s1 + $0x10] sm:$0xff]
    %v191 = vld [vmem:[%s1 + $0x18] sm:$0xff]
    %v192 = vld [vmem:[%s2] sm:$0x1]
    %v194 = vlaneseq
    %v195 = vshrl.u32 %v194, 7
    %v196 = vsub.s32 0, %v195
    %v197 = vrot.slane %v192, %v196
    %vm199 = vcmask 261120
    %v201 = vsel %vm199, %v164, 0
    %v204 = vsel %vm199, %v165, 0
    %v207 = vsel %vm199, %v188, 0
    %v210 = vsel %vm199, %v189, 0
    %v213 = vsel %vm199, %v190, 0
    %v216 = vsel %vm199, %v191, 0
    %218 = vmatprep.subr.mxu0 0.0
    %219 = vmatpush1.xpose.msra.mxu0 0.0
    %220 = vmatprep.subr.mxu0 0.0
    %221 = vmatpush1.xpose.msra.mxu0 0.0
    %222 = vmatprep.subr.mxu0 0.0
    %223 = vmatpush1.xpose.msra.mxu0 0.0
    %224 = vmatprep.subr.mxu0 0.0
    %225 = vmatpush1.xpose.msra.mxu0 0.0
    %226 = vmatprep.subr.mxu0 0.0
    %227 = vmatpush1.xpose.msra.mxu0 0.0
    %228 = vmatprep.subr.mxu0 0.0
    %229 = vmatpush1.xpose.msra.mxu0 0.0
    %230 = vmatprep.subr.mxu0 0.0
    %231 = vmatpush1.xpose.msra.mxu0 0.0
    %232 = vmatprep.subr.mxu0 0.0
    %233 = vmatpush1.xpose.msra.mxu0 0.0
    %234 = vmatprep.subr.mxu0 0.0
    %235 = vmatpush1.xpose.msra.mxu0 0.0
    %236 = vmatprep.subr.mxu0 0.0
    %237 = vmatpush1.xpose.msra.mxu0 0.0
    %238 = vmatprep.subr.mxu0 0.0
    %239 = vmatpush1.xpose.msra.mxu0 0.0
    %240 = vmatprep.subr.mxu0 0.0
    %241 = vmatpush1.xpose.msra.mxu0 0.0
    %242 = vmatprep.subr.mxu0 0.0
    %243 = vmatpush1.xpose.msra.mxu0 %v216
    %244 = vmatprep.subr.mxu0 0.0
    %245 = vmatpush1.xpose.msra.mxu0 %v213
    %246 = vmatprep.subr.mxu0 0.0
    %247 = vmatpush1.xpose.msra.mxu0 %v210
    %248 = vmatprep.subr.mxu0 0.0
    %249 = vmatpush1.xpose.msra.mxu0 %v207
    %250 = vmatprep.subr.mxu0 0.0
    %251 = vmatpush2.xpose.msra.mxu0 0.0
    %252 = vmatprep.subr.mxu0 0.0
    %253 = vmatpush2.xpose.msra.mxu0 0.0
    %254 = vmatprep.subr.mxu0 0.0
    %255 = vmatpush2.xpose.msra.mxu0 0.0
    %256 = vmatprep.subr.mxu0 0.0
    %257 = vmatpush2.xpose.msra.mxu0 0.0
    %258 = vmatprep.subr.mxu0 0.0
    %259 = vmatpush2.xpose.msra.mxu0 0.0
    %260 = vmatprep.subr.mxu0 0.0
    %261 = vmatpush2.xpose.msra.mxu0 0.0
    %262 = vmatprep.subr.mxu0 0.0
    %263 = vmatpush2.xpose.msra.mxu0 0.0
    %264 = vmatprep.subr.mxu0 0.0
    %265 = vmatpush2.xpose.msra.mxu0 0.0
    %266 = vmatprep.subr.mxu0 0.0
    %267 = vmatpush2.xpose.msra.mxu0 0.0
    %268 = vmatprep.subr.mxu0 0.0
    %269 = vmatpush2.xpose.msra.mxu0 0.0
    %270 = vmatprep.subr.mxu0 0.0
    %271 = vmatpush2.xpose.msra.mxu0 0.0
    %272 = vmatprep.subr.mxu0 0.0
    %273 = vmatpush2.xpose.msra.mxu0 0.0
    %274 = vmatprep.subr.mxu0 0.0
    %275 = vmatpush2.xpose.msra.mxu0 0.0
    %276 = vmatprep.subr.mxu0 0.0
    %277 = vmatpush2.xpose.msra.mxu0 0.0
    %278 = vmatprep.subr.mxu0 0.0
    %279 = vmatpush2.xpose.msra.mxu0 0.0
    %280 = vmatprep.subr.mxu0 0.0
    %281 = vmatpush2.xpose.msra.mxu0 0.0
    %282 = vmatprep.mubr.f32.mxu0 0.0
    %283 = vmatmul.mubr.f32.gmra.mxu0 %v201
    %v284 = vpop.f32.mrf.mxu0
    %v285 = vadd.f32 %v197, %v284
    %v286 = vpop.f32.mrf.mxu0
    %287 = vmatprep.mubr.f32.mxu0 0.0
    %288 = vmatmul.mubr.f32.gmra.mxu0 %v204
    %v289 = vpop.f32.mrf.mxu0
    %v290 = vadd.f32 %v197, %v289
    %v291 = vpop.f32.mrf.mxu0
    %292 = vdwg.mxu0
    %v293 = vld [vmem:[%s3] sm:$0xff]
    %v294 = vld [vmem:[%s3 + $0x8] sm:$0xff]
    %v295 = vld [vmem:[%s3 + $0x10] sm:$0xff]
    %v296 = vld [vmem:[%s3 + $0x18] sm:$0xff]
    %v297 = vld [vmem:[#allocation5] sm:$0x1]
    %v299 = vlaneseq
    %v300 = vshrl.u32 %v299, 7
    %v301 = vsub.s32 0, %v300
    %v302 = vrot.slane %v297, %v301
    %v305 = vsel %vm199, %v293, 0
    %v308 = vsel %vm199, %v294, 0
    %v311 = vsel %vm199, %v295, 0
    %v314 = vsel %vm199, %v296, 0
    %316 = vmatprep.subr.mxu0 0.0
    %317 = vmatpush1.xpose.msra.mxu0 0.0
    %318 = vmatprep.subr.mxu0 0.0
    %319 = vmatpush1.xpose.msra.mxu0 0.0
    %320 = vmatprep.subr.mxu0 0.0
    %321 = vmatpush1.xpose.msra.mxu0 0.0
    %322 = vmatprep.subr.mxu0 0.0
    %323 = vmatpush1.xpose.msra.mxu0 0.0
    %324 = vmatprep.subr.mxu0 0.0
    %325 = vmatpush1.xpose.msra.mxu0 0.0
    %326 = vmatprep.subr.mxu0 0.0
    %327 = vmatpush1.xpose.msra.mxu0 0.0
    %328 = vmatprep.subr.mxu0 0.0
    %329 = vmatpush1.xpose.msra.mxu0 0.0
    %330 = vmatprep.subr.mxu0 0.0
    %331 = vmatpush1.xpose.msra.mxu0 0.0
    %332 = vmatprep.subr.mxu0 0.0
    %333 = vmatpush1.xpose.msra.mxu0 0.0
    %334 = vmatprep.subr.mxu0 0.0
    %335 = vmatpush1.xpose.msra.mxu0 0.0
    %336 = vmatprep.subr.mxu0 0.0
    %337 = vmatpush1.xpose.msra.mxu0 0.0
    %338 = vmatprep.subr.mxu0 0.0
    %339 = vmatpush1.xpose.msra.mxu0 0.0
    %340 = vmatprep.subr.mxu0 0.0
    %341 = vmatpush1.xpose.msra.mxu0 %v314
    %342 = vmatprep.subr.mxu0 0.0
    %343 = vmatpush1.xpose.msra.mxu0 %v311
    %344 = vmatprep.subr.mxu0 0.0
    %345 = vmatpush1.xpose.msra.mxu0 %v308
    %346 = vmatprep.subr.mxu0 0.0
    %347 = vmatpush1.xpose.msra.mxu0 %v305
    %348 = vmatprep.subr.mxu0 0.0
    %349 = vmatpush2.xpose.msra.mxu0 0.0
    %350 = vmatprep.subr.mxu0 0.0
    %351 = vmatpush2.xpose.msra.mxu0 0.0
    %352 = vmatprep.subr.mxu0 0.0
    %353 = vmatpush2.xpose.msra.mxu0 0.0
    %354 = vmatprep.subr.mxu0 0.0
    %355 = vmatpush2.xpose.msra.mxu0 0.0
    %356 = vmatprep.subr.mxu0 0.0
    %357 = vmatpush2.xpose.msra.mxu0 0.0
    %358 = vmatprep.subr.mxu0 0.0
    %359 = vmatpush2.xpose.msra.mxu0 0.0
    %360 = vmatprep.subr.mxu0 0.0
    %361 = vmatpush2.xpose.msra.mxu0 0.0
    %362 = vmatprep.subr.mxu0 0.0
    %363 = vmatpush2.xpose.msra.mxu0 0.0
    %364 = vmatprep.subr.mxu0 0.0
    %365 = vmatpush2.xpose.msra.mxu0 0.0
    %366 = vmatprep.subr.mxu0 0.0
    %367 = vmatpush2.xpose.msra.mxu0 0.0
    %368 = vmatprep.subr.mxu0 0.0
    %369 = vmatpush2.xpose.msra.mxu0 0.0
    %370 = vmatprep.subr.mxu0 0.0
    %371 = vmatpush2.xpose.msra.mxu0 0.0
    %372 = vmatprep.subr.mxu0 0.0
    %373 = vmatpush2.xpose.msra.mxu0 0.0
    %374 = vmatprep.subr.mxu0 0.0
    %375 = vmatpush2.xpose.msra.mxu0 0.0
    %376 = vmatprep.subr.mxu0 0.0
    %377 = vmatpush2.xpose.msra.mxu0 0.0
    %378 = vmatprep.subr.mxu0 0.0
    %379 = vmatpush2.xpose.msra.mxu0 0.0
    %380 = vmatprep.mubr.f32.mxu0 0.0
    %381 = vmatmul.mubr.f32.gmra.mxu0 %v201
    %v382 = vpop.f32.mrf.mxu0
    %v383 = vadd.f32 %v302, %v382
    %v384 = vpop.f32.mrf.mxu0
    %385 = vmatprep.mubr.f32.mxu0 0.0
    %386 = vmatmul.mubr.f32.gmra.mxu0 %v204
    %v387 = vpop.f32.mrf.mxu0
    %v388 = vadd.f32 %v302, %v387
    %v389 = vpop.f32.mrf.mxu0
    %390 = vdwg.mxu0
    %v391 = vld [vmem:[%s5] sm:$0xff]
    %v392 = vld [vmem:[%s5 + $0x8] sm:$0xff]
    %v393 = vld [vmem:[%s5 + $0x10] sm:$0xff]
    %v394 = vld [vmem:[%s5 + $0x18] sm:$0xff]
    %v395 = vld [vmem:[#allocation7] sm:$0x1]
    %v397 = vlaneseq
    %v398 = vshrl.u32 %v397, 7
    %v399 = vsub.s32 0, %v398
    %v400 = vrot.slane %v395, %v399
    %v403 = vsel %vm199, %v391, 0
    %v406 = vsel %vm199, %v392, 0
    %v409 = vsel %vm199, %v393, 0
    %v412 = vsel %vm199, %v394, 0
    %414 = vmatprep.subr.mxu0 0.0
    %415 = vmatpush1.xpose.msra.mxu0 0.0
    %416 = vmatprep.subr.mxu0 0.0
    %417 = vmatpush1.xpose.msra.mxu0 0.0
    %418 = vmatprep.subr.mxu0 0.0
    %419 = vmatpush1.xpose.msra.mxu0 0.0
    %420 = vmatprep.subr.mxu0 0.0
    %421 = vmatpush1.xpose.msra.mxu0 0.0
    %422 = vmatprep.subr.mxu0 0.0
    %423 = vmatpush1.xpose.msra.mxu0 0.0
    %424 = vmatprep.subr.mxu0 0.0
    %425 = vmatpush1.xpose.msra.mxu0 0.0
    %426 = vmatprep.subr.mxu0 0.0
    %427 = vmatpush1.xpose.msra.mxu0 0.0
    %428 = vmatprep.subr.mxu0 0.0
    %429 = vmatpush1.xpose.msra.mxu0 0.0
    %430 = vmatprep.subr.mxu0 0.0
    %431 = vmatpush1.xpose.msra.mxu0 0.0
    %432 = vmatprep.subr.mxu0 0.0
    %433 = vmatpush1.xpose.msra.mxu0 0.0
    %434 = vmatprep.subr.mxu0 0.0
    %435 = vmatpush1.xpose.msra.mxu0 0.0
    %436 = vmatprep.subr.mxu0 0.0
    %437 = vmatpush1.xpose.msra.mxu0 0.0
    %438 = vmatprep.subr.mxu0 0.0
    %439 = vmatpush1.xpose.msra.mxu0 %v412
    %440 = vmatprep.subr.mxu0 0.0
    %441 = vmatpush1.xpose.msra.mxu0 %v409
    %442 = vmatprep.subr.mxu0 0.0
    %443 = vmatpush1.xpose.msra.mxu0 %v406
    %444 = vmatprep.subr.mxu0 0.0
    %445 = vmatpush1.xpose.msra.mxu0 %v403
    %446 = vmatprep.subr.mxu0 0.0
    %447 = vmatpush2.xpose.msra.mxu0 0.0
    %448 = vmatprep.subr.mxu0 0.0
    %449 = vmatpush2.xpose.msra.mxu0 0.0
    %450 = vmatprep.subr.mxu0 0.0
    %451 = vmatpush2.xpose.msra.mxu0 0.0
    %452 = vmatprep.subr.mxu0 0.0
    %453 = vmatpush2.xpose.msra.mxu0 0.0
    %454 = vmatprep.subr.mxu0 0.0
    %455 = vmatpush2.xpose.msra.mxu0 0.0
    %456 = vmatprep.subr.mxu0 0.0
    %457 = vmatpush2.xpose.msra.mxu0 0.0
    %458 = vmatprep.subr.mxu0 0.0
    %459 = vmatpush2.xpose.msra.mxu0 0.0
    %460 = vmatprep.subr.mxu0 0.0
    %461 = vmatpush2.xpose.msra.mxu0 0.0
    %462 = vmatprep.subr.mxu0 0.0
    %463 = vmatpush2.xpose.msra.mxu0 0.0
    %464 = vmatprep.subr.mxu0 0.0
    %465 = vmatpush2.xpose.msra.mxu0 0.0
    %466 = vmatprep.subr.mxu0 0.0
    %467 = vmatpush2.xpose.msra.mxu0 0.0
    %468 = vmatprep.subr.mxu0 0.0
    %469 = vmatpush2.xpose.msra.mxu0 0.0
    %470 = vmatprep.subr.mxu0 0.0
    %471 = vmatpush2.xpose.msra.mxu0 0.0
    %472 = vmatprep.subr.mxu0 0.0
    %473 = vmatpush2.xpose.msra.mxu0 0.0
    %474 = vmatprep.subr.mxu0 0.0
    %475 = vmatpush2.xpose.msra.mxu0 0.0
    %476 = vmatprep.subr.mxu0 0.0
    %477 = vmatpush2.xpose.msra.mxu0 0.0
    %478 = vmatprep.mubr.f32.mxu0 0.0
    %479 = vmatmul.mubr.f32.gmra.mxu0 %v201
    %v480 = vpop.f32.mrf.mxu0
    %v481 = vadd.f32 %v400, %v480
    %v482 = vpop.f32.mrf.mxu0
    %483 = vmatprep.mubr.f32.mxu0 0.0
    %484 = vmatmul.mubr.f32.gmra.mxu0 %v204
    %v485 = vpop.f32.mrf.mxu0
    %v486 = vadd.f32 %v400, %v485
    %v487 = vpop.f32.mrf.mxu0
    %488 = vdwg.mxu0
    %v489 = vmul.f32 %v383, %v172
    %v490 = vmul.f32 %v388, %v172
    %v492 = vsel %vm199, %v285, 0
    %v495 = vsel %vm199, %v489, 0
    %497 = vmatprep.subr.mxu0 0.0
    %498 = vmatpush1.xpose.msra.mxu0 0.0
    %499 = vmatprep.subr.mxu0 0.0
    %500 = vmatpush1.xpose.msra.mxu0 0.0
    %501 = vmatprep.subr.mxu0 0.0
    %502 = vmatpush1.xpose.msra.mxu0 0.0
    %503 = vmatprep.subr.mxu0 0.0
    %504 = vmatpush1.xpose.msra.mxu0 0.0
    %505 = vmatprep.subr.mxu0 0.0
    %506 = vmatpush1.xpose.msra.mxu0 0.0
    %507 = vmatprep.subr.mxu0 0.0
    %508 = vmatpush1.xpose.msra.mxu0 0.0
    %509 = vmatprep.subr.mxu0 0.0
    %510 = vmatpush1.xpose.msra.mxu0 0.0
    %511 = vmatprep.subr.mxu0 0.0
    %512 = vmatpush1.xpose.msra.mxu0 0.0
    %513 = vmatprep.subr.mxu0 0.0
    %514 = vmatpush1.xpose.msra.mxu0 0.0
    %515 = vmatprep.subr.mxu0 0.0
    %516 = vmatpush1.xpose.msra.mxu0 0.0
    %517 = vmatprep.subr.mxu0 0.0
    %518 = vmatpush1.xpose.msra.mxu0 0.0
    %519 = vmatprep.subr.mxu0 0.0
    %520 = vmatpush1.xpose.msra.mxu0 0.0
    %521 = vmatprep.subr.mxu0 0.0
    %522 = vmatpush1.xpose.msra.mxu0 0.0
    %523 = vmatprep.subr.mxu0 0.0
    %524 = vmatpush1.xpose.msra.mxu0 0.0
    %525 = vmatprep.subr.mxu0 0.0
    %526 = vmatpush1.xpose.msra.mxu0 0.0
    %527 = vmatprep.subr.mxu0 0.0
    %528 = vmatpush1.xpose.msra.mxu0 %v495
    %529 = vmatprep.subr.mxu0 0.0
    %530 = vmatpush2.xpose.msra.mxu0 0.0
    %531 = vmatprep.subr.mxu0 0.0
    %532 = vmatpush2.xpose.msra.mxu0 0.0
    %533 = vmatprep.subr.mxu0 0.0
    %534 = vmatpush2.xpose.msra.mxu0 0.0
    %535 = vmatprep.subr.mxu0 0.0
    %536 = vmatpush2.xpose.msra.mxu0 0.0
    %537 = vmatprep.subr.mxu0 0.0
    %538 = vmatpush2.xpose.msra.mxu0 0.0
    %539 = vmatprep.subr.mxu0 0.0
    %540 = vmatpush2.xpose.msra.mxu0 0.0
    %541 = vmatprep.subr.mxu0 0.0
    %542 = vmatpush2.xpose.msra.mxu0 0.0
    %543 = vmatprep.subr.mxu0 0.0
    %544 = vmatpush2.xpose.msra.mxu0 0.0
    %545 = vmatprep.subr.mxu0 0.0
    %546 = vmatpush2.xpose.msra.mxu0 0.0
    %547 = vmatprep.subr.mxu0 0.0
    %548 = vmatpush2.xpose.msra.mxu0 0.0
    %549 = vmatprep.subr.mxu0 0.0
    %550 = vmatpush2.xpose.msra.mxu0 0.0
    %551 = vmatprep.subr.mxu0 0.0
    %552 = vmatpush2.xpose.msra.mxu0 0.0
    %553 = vmatprep.subr.mxu0 0.0
    %554 = vmatpush2.xpose.msra.mxu0 0.0
    %555 = vmatprep.subr.mxu0 0.0
    %556 = vmatpush2.xpose.msra.mxu0 0.0
    %557 = vmatprep.subr.mxu0 0.0
    %558 = vmatpush2.xpose.msra.mxu0 0.0
    %559 = vmatprep.subr.mxu0 0.0
    %560 = vmatpush2.xpose.msra.mxu0 0.0
    %561 = vmatprep.mubr.f32.mxu0 0.0
    %562 = vmatmul.mubr.f32.gmra.mxu0 %v492
    %v563 = vpop.f32.mrf.mxu0
    %v564 = vadd.f32 0.0, %v563
    %v565 = vpop.f32.mrf.mxu0
    %566 = vdwg.mxu0
    %v568 = vsel %vm199, %v290, 0
    %v571 = vsel %vm199, %v490, 0
    %573 = vmatprep.subr.mxu0 0.0
    %574 = vmatpush1.xpose.msra.mxu0 0.0
    %575 = vmatprep.subr.mxu0 0.0
    %576 = vmatpush1.xpose.msra.mxu0 0.0
    %577 = vmatprep.subr.mxu0 0.0
    %578 = vmatpush1.xpose.msra.mxu0 0.0
    %579 = vmatprep.subr.mxu0 0.0
    %580 = vmatpush1.xpose.msra.mxu0 0.0
    %581 = vmatprep.subr.mxu0 0.0
    %582 = vmatpush1.xpose.msra.mxu0 0.0
    %583 = vmatprep.subr.mxu0 0.0
    %584 = vmatpush1.xpose.msra.mxu0 0.0
    %585 = vmatprep.subr.mxu0 0.0
    %586 = vmatpush1.xpose.msra.mxu0 0.0
    %587 = vmatprep.subr.mxu0 0.0
    %588 = vmatpush1.xpose.msra.mxu0 0.0
    %589 = vmatprep.subr.mxu0 0.0
    %590 = vmatpush1.xpose.msra.mxu0 0.0
    %591 = vmatprep.subr.mxu0 0.0
    %592 = vmatpush1.xpose.msra.mxu0 0.0
    %593 = vmatprep.subr.mxu0 0.0
    %594 = vmatpush1.xpose.msra.mxu0 0.0
    %595 = vmatprep.subr.mxu0 0.0
    %596 = vmatpush1.xpose.msra.mxu0 0.0
    %597 = vmatprep.subr.mxu0 0.0
    %598 = vmatpush1.xpose.msra.mxu0 0.0
    %599 = vmatprep.subr.mxu0 0.0
    %600 = vmatpush1.xpose.msra.mxu0 0.0
    %601 = vmatprep.subr.mxu0 0.0
    %602 = vmatpush1.xpose.msra.mxu0 0.0
    %603 = vmatprep.subr.mxu0 0.0
    %604 = vmatpush1.xpose.msra.mxu0 %v571
    %605 = vmatprep.subr.mxu0 0.0
    %606 = vmatpush2.xpose.msra.mxu0 0.0
    %607 = vmatprep.subr.mxu0 0.0
    %608 = vmatpush2.xpose.msra.mxu0 0.0
    %609 = vmatprep.subr.mxu0 0.0
    %610 = vmatpush2.xpose.msra.mxu0 0.0
    %611 = vmatprep.subr.mxu0 0.0
    %612 = vmatpush2.xpose.msra.mxu0 0.0
    %613 = vmatprep.subr.mxu0 0.0
    %614 = vmatpush2.xpose.msra.mxu0 0.0
    %615 = vmatprep.subr.mxu0 0.0
    %616 = vmatpush2.xpose.msra.mxu0 0.0
    %617 = vmatprep.subr.mxu0 0.0
    %618 = vmatpush2.xpose.msra.mxu0 0.0
    %619 = vmatprep.subr.mxu0 0.0
    %620 = vmatpush2.xpose.msra.mxu0 0.0
    %621 = vmatprep.subr.mxu0 0.0
    %622 = vmatpush2.xpose.msra.mxu0 0.0
    %623 = vmatprep.subr.mxu0 0.0
    %624 = vmatpush2.xpose.msra.mxu0 0.0
    %625 = vmatprep.subr.mxu0 0.0
    %626 = vmatpush2.xpose.msra.mxu0 0.0
    %627 = vmatprep.subr.mxu0 0.0
    %628 = vmatpush2.xpose.msra.mxu0 0.0
    %629 = vmatprep.subr.mxu0 0.0
    %630 = vmatpush2.xpose.msra.mxu0 0.0
    %631 = vmatprep.subr.mxu0 0.0
    %632 = vmatpush2.xpose.msra.mxu0 0.0
    %633 = vmatprep.subr.mxu0 0.0
    %634 = vmatpush2.xpose.msra.mxu0 0.0
    %635 = vmatprep.subr.mxu0 0.0
    %636 = vmatpush2.xpose.msra.mxu0 0.0
    %637 = vmatprep.mubr.f32.mxu0 0.0
    %638 = vmatmul.mubr.f32.gmra.mxu0 %v568
    %v639 = vpop.f32.mrf.mxu0
    %v640 = vadd.f32 0.0, %v639
    %v641 = vpop.f32.mrf.mxu0
    %642 = vdwg.mxu0
    %vm643 = vcmask 64512
    %v644 = vsel %vm643, %v564, -inf
    %645 = vmax.xlane.f32.xlu0 %v644
    %v646 = vpop.xlane.xlu0 %645
    %v647 = vsel %vm643, %v640, -inf
    %648 = vmax.xlane.f32.xlu0 %v647
    %v649 = vpop.xlane.xlu0 %648
    %v650 = vsub.f32 %v564, %v646
    %v651 = vsub.f32 %v640, %v649
    %v652 = vmul.f32 %v650, 1.442695
    %v653 = vpow.pop %v652
    %v654 = vmul.f32 %v651, 1.442695
    %v655 = vpow.pop %v654
    %v656 = vsel %vm643, %v653, 0.0
    %657 = vadd.xlane.f32.xlu0 %v656
    %v658 = vpop.xlane.xlu0 %657
    %v659 = vsel %vm643, %v655, 0.0
    %660 = vadd.xlane.f32.xlu0 %v659
    %v661 = vpop.xlane.xlu0 %660
    %v662 = vrcp.pop %v658
    %v663 = vrcp.pop %v661
    %v664 = vmul.f32 %v653, %v662
    %v665 = vmul.f32 %v655, %v663
    %v667 = vsel %vm643, %v664, 0
    %669 = vmatprep.subr.mxu0 0.0
    %670 = vmatpush1.msra.mxu0 0.0
    %671 = vmatprep.subr.mxu0 0.0
    %672 = vmatpush1.msra.mxu0 0.0
    %673 = vmatprep.subr.mxu0 0.0
    %674 = vmatpush1.msra.mxu0 0.0
    %675 = vmatprep.subr.mxu0 0.0
    %676 = vmatpush1.msra.mxu0 0.0
    %677 = vmatprep.subr.mxu0 0.0
    %678 = vmatpush1.msra.mxu0 0.0
    %679 = vmatprep.subr.mxu0 0.0
    %680 = vmatpush1.msra.mxu0 0.0
    %681 = vmatprep.subr.mxu0 0.0
    %682 = vmatpush1.msra.mxu0 0.0
    %683 = vmatprep.subr.mxu0 0.0
    %684 = vmatpush1.msra.mxu0 0.0
    %685 = vmatprep.subr.mxu0 0.0
    %686 = vmatpush1.msra.mxu0 0.0
    %687 = vmatprep.subr.mxu0 0.0
    %688 = vmatpush1.msra.mxu0 0.0
    %689 = vmatprep.subr.mxu0 0.0
    %690 = vmatpush1.msra.mxu0 0.0
    %691 = vmatprep.subr.mxu0 0.0
    %692 = vmatpush1.msra.mxu0 0.0
    %693 = vmatprep.subr.mxu0 0.0
    %694 = vmatpush1.msra.mxu0 0.0
    %695 = vmatprep.subr.mxu0 0.0
    %696 = vmatpush1.msra.mxu0 0.0
    %697 = vmatprep.subr.mxu0 0.0
    %698 = vmatpush1.msra.mxu0 0.0
    %699 = vmatprep.subr.mxu0 0.0
    %700 = vmatpush1.msra.mxu0 %v481
    %701 = vmatprep.subr.mxu0 0.0
    %702 = vmatpush2.msra.mxu0 0.0
    %703 = vmatprep.subr.mxu0 0.0
    %704 = vmatpush2.msra.mxu0 0.0
    %705 = vmatprep.subr.mxu0 0.0
    %706 = vmatpush2.msra.mxu0 0.0
    %707 = vmatprep.subr.mxu0 0.0
    %708 = vmatpush2.msra.mxu0 0.0
    %709 = vmatprep.subr.mxu0 0.0
    %710 = vmatpush2.msra.mxu0 0.0
    %711 = vmatprep.subr.mxu0 0.0
    %712 = vmatpush2.msra.mxu0 0.0
    %713 = vmatprep.subr.mxu0 0.0
    %714 = vmatpush2.msra.mxu0 0.0
    %715 = vmatprep.subr.mxu0 0.0
    %716 = vmatpush2.msra.mxu0 0.0
    %717 = vmatprep.subr.mxu0 0.0
    %718 = vmatpush2.msra.mxu0 0.0
    %719 = vmatprep.subr.mxu0 0.0
    %720 = vmatpush2.msra.mxu0 0.0
    %721 = vmatprep.subr.mxu0 0.0
    %722 = vmatpush2.msra.mxu0 0.0
    %723 = vmatprep.subr.mxu0 0.0
    %724 = vmatpush2.msra.mxu0 0.0
    %725 = vmatprep.subr.mxu0 0.0
    %726 = vmatpush2.msra.mxu0 0.0
    %727 = vmatprep.subr.mxu0 0.0
    %728 = vmatpush2.msra.mxu0 0.0
    %729 = vmatprep.subr.mxu0 0.0
    %730 = vmatpush2.msra.mxu0 0.0
    %731 = vmatprep.subr.mxu0 0.0
    %732 = vmatpush2.msra.mxu0 0.0
    %733 = vmatprep.mubr.f32.mxu0 0.0
    %734 = vmatmul.mubr.f32.gmra.mxu0 %v667
    %v735 = vpop.f32.mrf.mxu0
    %v736 = vadd.f32 0.0, %v735
    %v737 = vpop.f32.mrf.mxu0
    %738 = vdwg.mxu0
    %v740 = vsel %vm643, %v665, 0
    %742 = vmatprep.subr.mxu0 0.0
    %743 = vmatpush1.msra.mxu0 0.0
    %744 = vmatprep.subr.mxu0 0.0
    %745 = vmatpush1.msra.mxu0 0.0
    %746 = vmatprep.subr.mxu0 0.0
    %747 = vmatpush1.msra.mxu0 0.0
    %748 = vmatprep.subr.mxu0 0.0
    %749 = vmatpush1.msra.mxu0 0.0
    %750 = vmatprep.subr.mxu0 0.0
    %751 = vmatpush1.msra.mxu0 0.0
    %752 = vmatprep.subr.mxu0 0.0
    %753 = vmatpush1.msra.mxu0 0.0
    %754 = vmatprep.subr.mxu0 0.0
    %755 = vmatpush1.msra.mxu0 0.0
    %756 = vmatprep.subr.mxu0 0.0
    %757 = vmatpush1.msra.mxu0 0.0
    %758 = vmatprep.subr.mxu0 0.0
    %759 = vmatpush1.msra.mxu0 0.0
    %760 = vmatprep.subr.mxu0 0.0
    %761 = vmatpush1.msra.mxu0 0.0
    %762 = vmatprep.subr.mxu0 0.0
    %763 = vmatpush1.msra.mxu0 0.0
    %764 = vmatprep.subr.mxu0 0.0
    %765 = vmatpush1.msra.mxu0 0.0
    %766 = vmatprep.subr.mxu0 0.0
    %767 = vmatpush1.msra.mxu0 0.0
    %768 = vmatprep.subr.mxu0 0.0
    %769 = vmatpush1.msra.mxu0 0.0
    %770 = vmatprep.subr.mxu0 0.0
    %771 = vmatpush1.msra.mxu0 0.0
    %772 = vmatprep.subr.mxu0 0.0
    %773 = vmatpush1.msra.mxu0 %v486
    %774 = vmatprep.subr.mxu0 0.0
    %775 = vmatpush2.msra.mxu0 0.0
    %776 = vmatprep.subr.mxu0 0.0
    %777 = vmatpush2.msra.mxu0 0.0
    %778 = vmatprep.subr.mxu0 0.0
    %779 = vmatpush2.msra.mxu0 0.0
    %780 = vmatprep.subr.mxu0 0.0
    %781 = vmatpush2.msra.mxu0 0.0
    %782 = vmatprep.subr.mxu0 0.0
    %783 = vmatpush2.msra.mxu0 0.0
    %784 = vmatprep.subr.mxu0 0.0
    %785 = vmatpush2.msra.mxu0 0.0
    %786 = vmatprep.subr.mxu0 0.0
    %787 = vmatpush2.msra.mxu0 0.0
    %788 = vmatprep.subr.mxu0 0.0
    %789 = vmatpush2.msra.mxu0 0.0
    %790 = vmatprep.subr.mxu0 0.0
    %791 = vmatpush2.msra.mxu0 0.0
    %792 = vmatprep.subr.mxu0 0.0
    %793 = vmatpush2.msra.mxu0 0.0
    %794 = vmatprep.subr.mxu0 0.0
    %795 = vmatpush2.msra.mxu0 0.0
    %796 = vmatprep.subr.mxu0 0.0
    %797 = vmatpush2.msra.mxu0 0.0
    %798 = vmatprep.subr.mxu0 0.0
    %799 = vmatpush2.msra.mxu0 0.0
    %800 = vmatprep.subr.mxu0 0.0
    %801 = vmatpush2.msra.mxu0 0.0
    %802 = vmatprep.subr.mxu0 0.0
    %803 = vmatpush2.msra.mxu0 0.0
    %804 = vmatprep.subr.mxu0 0.0
    %805 = vmatpush2.msra.mxu0 0.0
    %806 = vmatprep.mubr.f32.mxu0 0.0
    %807 = vmatmul.mubr.f32.gmra.mxu0 %v740
    %v808 = vpop.f32.mrf.mxu0
    %v809 = vadd.f32 0.0, %v808
    %v810 = vpop.f32.mrf.mxu0
    %811 = vdwg.mxu0
    %v812 = vmul.f32 %v736, %v172
    %v813 = vmul.f32 %v809, %v172
    %v814 = vadd.f32 %v812, 0.0
    %v815 = vadd.f32 %v813, 0.0
    %v816 = vmul.f32 %v383, %v177
    %v817 = vmul.f32 %v388, %v177
    %v819 = vsel %vm199, %v816, 0
    %821 = vmatprep.subr.mxu0 0.0
    %822 = vmatpush1.xpose.msra.mxu0 0.0
    %823 = vmatprep.subr.mxu0 0.0
    %824 = vmatpush1.xpose.msra.mxu0 0.0
    %825 = vmatprep.subr.mxu0 0.0
    %826 = vmatpush1.xpose.msra.mxu0 0.0
    %827 = vmatprep.subr.mxu0 0.0
    %828 = vmatpush1.xpose.msra.mxu0 0.0
    %829 = vmatprep.subr.mxu0 0.0
    %830 = vmatpush1.xpose.msra.mxu0 0.0
    %831 = vmatprep.subr.mxu0 0.0
    %832 = vmatpush1.xpose.msra.mxu0 0.0
    %833 = vmatprep.subr.mxu0 0.0
    %834 = vmatpush1.xpose.msra.mxu0 0.0
    %835 = vmatprep.subr.mxu0 0.0
    %836 = vmatpush1.xpose.msra.mxu0 0.0
    %837 = vmatprep.subr.mxu0 0.0
    %838 = vmatpush1.xpose.msra.mxu0 0.0
    %839 = vmatprep.subr.mxu0 0.0
    %840 = vmatpush1.xpose.msra.mxu0 0.0
    %841 = vmatprep.subr.mxu0 0.0
    %842 = vmatpush1.xpose.msra.mxu0 0.0
    %843 = vmatprep.subr.mxu0 0.0
    %844 = vmatpush1.xpose.msra.mxu0 0.0
    %845 = vmatprep.subr.mxu0 0.0
    %846 = vmatpush1.xpose.msra.mxu0 0.0
    %847 = vmatprep.subr.mxu0 0.0
    %848 = vmatpush1.xpose.msra.mxu0 0.0
    %849 = vmatprep.subr.mxu0 0.0
    %850 = vmatpush1.xpose.msra.mxu0 0.0
    %851 = vmatprep.subr.mxu0 0.0
    %852 = vmatpush1.xpose.msra.mxu0 %v819
    %853 = vmatprep.subr.mxu0 0.0
    %854 = vmatpush2.xpose.msra.mxu0 0.0
    %855 = vmatprep.subr.mxu0 0.0
    %856 = vmatpush2.xpose.msra.mxu0 0.0
    %857 = vmatprep.subr.mxu0 0.0
    %858 = vmatpush2.xpose.msra.mxu0 0.0
    %859 = vmatprep.subr.mxu0 0.0
    %860 = vmatpush2.xpose.msra.mxu0 0.0
    %861 = vmatprep.subr.mxu0 0.0
    %862 = vmatpush2.xpose.msra.mxu0 0.0
    %863 = vmatprep.subr.mxu0 0.0
    %864 = vmatpush2.xpose.msra.mxu0 0.0
    %865 = vmatprep.subr.mxu0 0.0
    %866 = vmatpush2.xpose.msra.mxu0 0.0
    %867 = vmatprep.subr.mxu0 0.0
    %868 = vmatpush2.xpose.msra.mxu0 0.0
    %869 = vmatprep.subr.mxu0 0.0
    %870 = vmatpush2.xpose.msra.mxu0 0.0
    %871 = vmatprep.subr.mxu0 0.0
    %872 = vmatpush2.xpose.msra.mxu0 0.0
    %873 = vmatprep.subr.mxu0 0.0
    %874 = vmatpush2.xpose.msra.mxu0 0.0
    %875 = vmatprep.subr.mxu0 0.0
    %876 = vmatpush2.xpose.msra.mxu0 0.0
    %877 = vmatprep.subr.mxu0 0.0
    %878 = vmatpush2.xpose.msra.mxu0 0.0
    %879 = vmatprep.subr.mxu0 0.0
    %880 = vmatpush2.xpose.msra.mxu0 0.0
    %881 = vmatprep.subr.mxu0 0.0
    %882 = vmatpush2.xpose.msra.mxu0 0.0
    %883 = vmatprep.subr.mxu0 0.0
    %884 = vmatpush2.xpose.msra.mxu0 0.0
    %885 = vmatprep.mubr.f32.mxu0 0.0
    %886 = vmatmul.mubr.f32.gmra.mxu0 %v492
    %v887 = vpop.f32.mrf.mxu0
    %v888 = vadd.f32 0.0, %v887
    %v889 = vpop.f32.mrf.mxu0
    %890 = vdwg.mxu0
    %v892 = vsel %vm199, %v817, 0
    %894 = vmatprep.subr.mxu0 0.0
    %895 = vmatpush1.xpose.msra.mxu0 0.0
    %896 = vmatprep.subr.mxu0 0.0
    %897 = vmatpush1.xpose.msra.mxu0 0.0
    %898 = vmatprep.subr.mxu0 0.0
    %899 = vmatpush1.xpose.msra.mxu0 0.0
    %900 = vmatprep.subr.mxu0 0.0
    %901 = vmatpush1.xpose.msra.mxu0 0.0
    %902 = vmatprep.subr.mxu0 0.0
    %903 = vmatpush1.xpose.msra.mxu0 0.0
    %904 = vmatprep.subr.mxu0 0.0
    %905 = vmatpush1.xpose.msra.mxu0 0.0
    %906 = vmatprep.subr.mxu0 0.0
    %907 = vmatpush1.xpose.msra.mxu0 0.0
    %908 = vmatprep.subr.mxu0 0.0
    %909 = vmatpush1.xpose.msra.mxu0 0.0
    %910 = vmatprep.subr.mxu0 0.0
    %911 = vmatpush1.xpose.msra.mxu0 0.0
    %912 = vmatprep.subr.mxu0 0.0
    %913 = vmatpush1.xpose.msra.mxu0 0.0
    %914 = vmatprep.subr.mxu0 0.0
    %915 = vmatpush1.xpose.msra.mxu0 0.0
    %916 = vmatprep.subr.mxu0 0.0
    %917 = vmatpush1.xpose.msra.mxu0 0.0
    %918 = vmatprep.subr.mxu0 0.0
    %919 = vmatpush1.xpose.msra.mxu0 0.0
    %920 = vmatprep.subr.mxu0 0.0
    %921 = vmatpush1.xpose.msra.mxu0 0.0
    %922 = vmatprep.subr.mxu0 0.0
    %923 = vmatpush1.xpose.msra.mxu0 0.0
    %924 = vmatprep.subr.mxu0 0.0
    %925 = vmatpush1.xpose.msra.mxu0 %v892
    %926 = vmatprep.subr.mxu0 0.0
    %927 = vmatpush2.xpose.msra.mxu0 0.0
    %928 = vmatprep.subr.mxu0 0.0
    %929 = vmatpush2.xpose.msra.mxu0 0.0
    %930 = vmatprep.subr.mxu0 0.0
    %931 = vmatpush2.xpose.msra.mxu0 0.0
    %932 = vmatprep.subr.mxu0 0.0
    %933 = vmatpush2.xpose.msra.mxu0 0.0
    %934 = vmatprep.subr.mxu0 0.0
    %935 = vmatpush2.xpose.msra.mxu0 0.0
    %936 = vmatprep.subr.mxu0 0.0
    %937 = vmatpush2.xpose.msra.mxu0 0.0
    %938 = vmatprep.subr.mxu0 0.0
    %939 = vmatpush2.xpose.msra.mxu0 0.0
    %940 = vmatprep.subr.mxu0 0.0
    %941 = vmatpush2.xpose.msra.mxu0 0.0
    %942 = vmatprep.subr.mxu0 0.0
    %943 = vmatpush2.xpose.msra.mxu0 0.0
    %944 = vmatprep.subr.mxu0 0.0
    %945 = vmatpush2.xpose.msra.mxu0 0.0
    %946 = vmatprep.subr.mxu0 0.0
    %947 = vmatpush2.xpose.msra.mxu0 0.0
    %948 = vmatprep.subr.mxu0 0.0
    %949 = vmatpush2.xpose.msra.mxu0 0.0
    %950 = vmatprep.subr.mxu0 0.0
    %951 = vmatpush2.xpose.msra.mxu0 0.0
    %952 = vmatprep.subr.mxu0 0.0
    %953 = vmatpush2.xpose.msra.mxu0 0.0
    %954 = vmatprep.subr.mxu0 0.0
    %955 = vmatpush2.xpose.msra.mxu0 0.0
    %956 = vmatprep.subr.mxu0 0.0
    %957 = vmatpush2.xpose.msra.mxu0 0.0
    %958 = vmatprep.mubr.f32.mxu0 0.0
    %959 = vmatmul.mubr.f32.gmra.mxu0 %v568
    %v960 = vpop.f32.mrf.mxu0
    %v961 = vadd.f32 0.0, %v960
    %v962 = vpop.f32.mrf.mxu0
    %963 = vdwg.mxu0
    %v964 = vsel %vm643, %v888, -inf
    %965 = vmax.xlane.f32.xlu0 %v964
    %v966 = vpop.xlane.xlu0 %965
    %v967 = vsel %vm643, %v961, -inf
    %968 = vmax.xlane.f32.xlu0 %v967
    %v969 = vpop.xlane.xlu0 %968
    %v970 = vsub.f32 %v888, %v966
    %v971 = vsub.f32 %v961, %v969
    %v972 = vmul.f32 %v970, 1.442695
    %v973 = vpow.pop %v972
    %v974 = vmul.f32 %v971, 1.442695
    %v975 = vpow.pop %v974
    %v976 = vsel %vm643, %v973, 0.0
    %977 = vadd.xlane.f32.xlu0 %v976
    %v978 = vpop.xlane.xlu0 %977
    %v979 = vsel %vm643, %v975, 0.0
    %980 = vadd.xlane.f32.xlu0 %v979
    %v981 = vpop.xlane.xlu0 %980
    %v982 = vrcp.pop %v978
    %v983 = vrcp.pop %v981
    %v984 = vmul.f32 %v973, %v982
    %v985 = vmul.f32 %v975, %v983
    %v987 = vsel %vm643, %v984, 0
    %989 = vmatprep.subr.mxu0 0.0
    %990 = vmatpush1.msra.mxu0 0.0
    %991 = vmatprep.subr.mxu0 0.0
    %992 = vmatpush1.msra.mxu0 0.0
    %993 = vmatprep.subr.mxu0 0.0
    %994 = vmatpush1.msra.mxu0 0.0
    %995 = vmatprep.subr.mxu0 0.0
    %996 = vmatpush1.msra.mxu0 0.0
    %997 = vmatprep.subr.mxu0 0.0
    %998 = vmatpush1.msra.mxu0 0.0
    %999 = vmatprep.subr.mxu0 0.0
    %1000 = vmatpush1.msra.mxu0 0.0
    %1001 = vmatprep.subr.mxu0 0.0
    %1002 = vmatpush1.msra.mxu0 0.0
    %1003 = vmatprep.subr.mxu0 0.0
    %1004 = vmatpush1.msra.mxu0 0.0
    %1005 = vmatprep.subr.mxu0 0.0
    %1006 = vmatpush1.msra.mxu0 0.0
    %1007 = vmatprep.subr.mxu0 0.0
    %1008 = vmatpush1.msra.mxu0 0.0
    %1009 = vmatprep.subr.mxu0 0.0
    %1010 = vmatpush1.msra.mxu0 0.0
    %1011 = vmatprep.subr.mxu0 0.0
    %1012 = vmatpush1.msra.mxu0 0.0
    %1013 = vmatprep.subr.mxu0 0.0
    %1014 = vmatpush1.msra.mxu0 0.0
    %1015 = vmatprep.subr.mxu0 0.0
    %1016 = vmatpush1.msra.mxu0 0.0
    %1017 = vmatprep.subr.mxu0 0.0
    %1018 = vmatpush1.msra.mxu0 0.0
    %1019 = vmatprep.subr.mxu0 0.0
    %1020 = vmatpush1.msra.mxu0 %v481
    %1021 = vmatprep.subr.mxu0 0.0
    %1022 = vmatpush2.msra.mxu0 0.0
    %1023 = vmatprep.subr.mxu0 0.0
    %1024 = vmatpush2.msra.mxu0 0.0
    %1025 = vmatprep.subr.mxu0 0.0
    %1026 = vmatpush2.msra.mxu0 0.0
    %1027 = vmatprep.subr.mxu0 0.0
    %1028 = vmatpush2.msra.mxu0 0.0
    %1029 = vmatprep.subr.mxu0 0.0
    %1030 = vmatpush2.msra.mxu0 0.0
    %1031 = vmatprep.subr.mxu0 0.0
    %1032 = vmatpush2.msra.mxu0 0.0
    %1033 = vmatprep.subr.mxu0 0.0
    %1034 = vmatpush2.msra.mxu0 0.0
    %1035 = vmatprep.subr.mxu0 0.0
    %1036 = vmatpush2.msra.mxu0 0.0
    %1037 = vmatprep.subr.mxu0 0.0
    %1038 = vmatpush2.msra.mxu0 0.0
    %1039 = vmatprep.subr.mxu0 0.0
    %1040 = vmatpush2.msra.mxu0 0.0
    %1041 = vmatprep.subr.mxu0 0.0
    %1042 = vmatpush2.msra.mxu0 0.0
    %1043 = vmatprep.subr.mxu0 0.0
    %1044 = vmatpush2.msra.mxu0 0.0
    %1045 = vmatprep.subr.mxu0 0.0
    %1046 = vmatpush2.msra.mxu0 0.0
    %1047 = vmatprep.subr.mxu0 0.0
    %1048 = vmatpush2.msra.mxu0 0.0
    %1049 = vmatprep.subr.mxu0 0.0
    %1050 = vmatpush2.msra.mxu0 0.0
    %1051 = vmatprep.subr.mxu0 0.0
    %1052 = vmatpush2.msra.mxu0 0.0
    %1053 = vmatprep.mubr.f32.mxu0 0.0
    %1054 = vmatmul.mubr.f32.gmra.mxu0 %v987
    %v1055 = vpop.f32.mrf.mxu0
    %v1056 = vadd.f32 0.0, %v1055
    %v1057 = vpop.f32.mrf.mxu0
    %1058 = vdwg.mxu0
    %v1060 = vsel %vm643, %v985, 0
    %1062 = vmatprep.subr.mxu0 0.0
    %1063 = vmatpush1.msra.mxu0 0.0
    %1064 = vmatprep.subr.mxu0 0.0
    %1065 = vmatpush1.msra.mxu0 0.0
    %1066 = vmatprep.subr.mxu0 0.0
    %1067 = vmatpush1.msra.mxu0 0.0
    %1068 = vmatprep.subr.mxu0 0.0
    %1069 = vmatpush1.msra.mxu0 0.0
    %1070 = vmatprep.subr.mxu0 0.0
    %1071 = vmatpush1.msra.mxu0 0.0
    %1072 = vmatprep.subr.mxu0 0.0
    %1073 = vmatpush1.msra.mxu0 0.0
    %1074 = vmatprep.subr.mxu0 0.0
    %1075 = vmatpush1.msra.mxu0 0.0
    %1076 = vmatprep.subr.mxu0 0.0
    %1077 = vmatpush1.msra.mxu0 0.0
    %1078 = vmatprep.subr.mxu0 0.0
    %1079 = vmatpush1.msra.mxu0 0.0
    %1080 = vmatprep.subr.mxu0 0.0
    %1081 = vmatpush1.msra.mxu0 0.0
    %1082 = vmatprep.subr.mxu0 0.0
    %1083 = vmatpush1.msra.mxu0 0.0
    %1084 = vmatprep.subr.mxu0 0.0
    %1085 = vmatpush1.msra.mxu0 0.0
    %1086 = vmatprep.subr.mxu0 0.0
    %1087 = vmatpush1.msra.mxu0 0.0
    %1088 = vmatprep.subr.mxu0 0.0
    %1089 = vmatpush1.msra.mxu0 0.0
    %1090 = vmatprep.subr.mxu0 0.0
    %1091 = vmatpush1.msra.mxu0 0.0
    %1092 = vmatprep.subr.mxu0 0.0
    %1093 = vmatpush1.msra.mxu0 %v486
    %1094 = vmatprep.subr.mxu0 0.0
    %1095 = vmatpush2.msra.mxu0 0.0
    %1096 = vmatprep.subr.mxu0 0.0
    %1097 = vmatpush2.msra.mxu0 0.0
    %1098 = vmatprep.subr.mxu0 0.0
    %1099 = vmatpush2.msra.mxu0 0.0
    %1100 = vmatprep.subr.mxu0 0.0
    %1101 = vmatpush2.msra.mxu0 0.0
    %1102 = vmatprep.subr.mxu0 0.0
    %1103 = vmatpush2.msra.mxu0 0.0
    %1104 = vmatprep.subr.mxu0 0.0
    %1105 = vmatpush2.msra.mxu0 0.0
    %1106 = vmatprep.subr.mxu0 0.0
    %1107 = vmatpush2.msra.mxu0 0.0
    %1108 = vmatprep.subr.mxu0 0.0
    %1109 = vmatpush2.msra.mxu0 0.0
    %1110 = vmatprep.subr.mxu0 0.0
    %1111 = vmatpush2.msra.mxu0 0.0
    %1112 = vmatprep.subr.mxu0 0.0
    %1113 = vmatpush2.msra.mxu0 0.0
    %1114 = vmatprep.subr.mxu0 0.0
    %1115 = vmatpush2.msra.mxu0 0.0
    %1116 = vmatprep.subr.mxu0 0.0
    %1117 = vmatpush2.msra.mxu0 0.0
    %1118 = vmatprep.subr.mxu0 0.0
    %1119 = vmatpush2.msra.mxu0 0.0
    %1120 = vmatprep.subr.mxu0 0.0
    %1121 = vmatpush2.msra.mxu0 0.0
    %1122 = vmatprep.subr.mxu0 0.0
    %1123 = vmatpush2.msra.mxu0 0.0
    %1124 = vmatprep.subr.mxu0 0.0
    %1125 = vmatpush2.msra.mxu0 0.0
    %1126 = vmatprep.mubr.f32.mxu0 0.0
    %1127 = vmatmul.mubr.f32.gmra.mxu0 %v1060
    %v1128 = vpop.f32.mrf.mxu0
    %v1129 = vadd.f32 0.0, %v1128
    %v1130 = vpop.f32.mrf.mxu0
    %1131 = vdwg.mxu0
    %v1132 = vmul.f32 %v1056, %v177
    %v1133 = vmul.f32 %v1129, %v177
    %v1134 = vadd.f32 %v814, %v1132
    %v1135 = vadd.f32 %v815, %v1133
    %v1136 = vmul.f32 %v383, %v182
    %v1137 = vmul.f32 %v388, %v182
    %v1139 = vsel %vm199, %v1136, 0
    %1141 = vmatprep.subr.mxu0 0.0
    %1142 = vmatpush1.xpose.msra.mxu0 0.0
    %1143 = vmatprep.subr.mxu0 0.0
    %1144 = vmatpush1.xpose.msra.mxu0 0.0
    %1145 = vmatprep.subr.mxu0 0.0
    %1146 = vmatpush1.xpose.msra.mxu0 0.0
    %1147 = vmatprep.subr.mxu0 0.0
    %1148 = vmatpush1.xpose.msra.mxu0 0.0
    %1149 = vmatprep.subr.mxu0 0.0
    %1150 = vmatpush1.xpose.msra.mxu0 0.0
    %1151 = vmatprep.subr.mxu0 0.0
    %1152 = vmatpush1.xpose.msra.mxu0 0.0
    %1153 = vmatprep.subr.mxu0 0.0
    %1154 = vmatpush1.xpose.msra.mxu0 0.0
    %1155 = vmatprep.subr.mxu0 0.0
    %1156 = vmatpush1.xpose.msra.mxu0 0.0
    %1157 = vmatprep.subr.mxu0 0.0
    %1158 = vmatpush1.xpose.msra.mxu0 0.0
    %1159 = vmatprep.subr.mxu0 0.0
    %1160 = vmatpush1.xpose.msra.mxu0 0.0
    %1161 = vmatprep.subr.mxu0 0.0
    %1162 = vmatpush1.xpose.msra.mxu0 0.0
    %1163 = vmatprep.subr.mxu0 0.0
    %1164 = vmatpush1.xpose.msra.mxu0 0.0
    %1165 = vmatprep.subr.mxu0 0.0
    %1166 = vmatpush1.xpose.msra.mxu0 0.0
    %1167 = vmatprep.subr.mxu0 0.0
    %1168 = vmatpush1.xpose.msra.mxu0 0.0
    %1169 = vmatprep.subr.mxu0 0.0
    %1170 = vmatpush1.xpose.msra.mxu0 0.0
    %1171 = vmatprep.subr.mxu0 0.0
    %1172 = vmatpush1.xpose.msra.mxu0 %v1139
    %1173 = vmatprep.subr.mxu0 0.0
    %1174 = vmatpush2.xpose.msra.mxu0 0.0
    %1175 = vmatprep.subr.mxu0 0.0
    %1176 = vmatpush2.xpose.msra.mxu0 0.0
    %1177 = vmatprep.subr.mxu0 0.0
    %1178 = vmatpush2.xpose.msra.mxu0 0.0
    %1179 = vmatprep.subr.mxu0 0.0
    %1180 = vmatpush2.xpose.msra.mxu0 0.0
    %1181 = vmatprep.subr.mxu0 0.0
    %1182 = vmatpush2.xpose.msra.mxu0 0.0
    %1183 = vmatprep.subr.mxu0 0.0
    %1184 = vmatpush2.xpose.msra.mxu0 0.0
    %1185 = vmatprep.subr.mxu0 0.0
    %1186 = vmatpush2.xpose.msra.mxu0 0.0
    %1187 = vmatprep.subr.mxu0 0.0
    %1188 = vmatpush2.xpose.msra.mxu0 0.0
    %1189 = vmatprep.subr.mxu0 0.0
    %1190 = vmatpush2.xpose.msra.mxu0 0.0
    %1191 = vmatprep.subr.mxu0 0.0
    %1192 = vmatpush2.xpose.msra.mxu0 0.0
    %1193 = vmatprep.subr.mxu0 0.0
    %1194 = vmatpush2.xpose.msra.mxu0 0.0
    %1195 = vmatprep.subr.mxu0 0.0
    %1196 = vmatpush2.xpose.msra.mxu0 0.0
    %1197 = vmatprep.subr.mxu0 0.0
    %1198 = vmatpush2.xpose.msra.mxu0 0.0
    %1199 = vmatprep.subr.mxu0 0.0
    %1200 = vmatpush2.xpose.msra.mxu0 0.0
    %1201 = vmatprep.subr.mxu0 0.0
    %1202 = vmatpush2.xpose.msra.mxu0 0.0
    %1203 = vmatprep.subr.mxu0 0.0
    %1204 = vmatpush2.xpose.msra.mxu0 0.0
    %1205 = vmatprep.mubr.f32.mxu0 0.0
    %1206 = vmatmul.mubr.f32.gmra.mxu0 %v492
    %v1207 = vpop.f32.mrf.mxu0
    %v1208 = vadd.f32 0.0, %v1207
    %v1209 = vpop.f32.mrf.mxu0
    %1210 = vdwg.mxu0
    %v1212 = vsel %vm199, %v1137, 0
    %1214 = vmatprep.subr.mxu0 0.0
    %1215 = vmatpush1.xpose.msra.mxu0 0.0
    %1216 = vmatprep.subr.mxu0 0.0
    %1217 = vmatpush1.xpose.msra.mxu0 0.0
    %1218 = vmatprep.subr.mxu0 0.0
    %1219 = vmatpush1.xpose.msra.mxu0 0.0
    %1220 = vmatprep.subr.mxu0 0.0
    %1221 = vmatpush1.xpose.msra.mxu0 0.0
    %1222 = vmatprep.subr.mxu0 0.0
    %1223 = vmatpush1.xpose.msra.mxu0 0.0
    %1224 = vmatprep.subr.mxu0 0.0
    %1225 = vmatpush1.xpose.msra.mxu0 0.0
    %1226 = vmatprep.subr.mxu0 0.0
    %1227 = vmatpush1.xpose.msra.mxu0 0.0
    %1228 = vmatprep.subr.mxu0 0.0
    %1229 = vmatpush1.xpose.msra.mxu0 0.0
    %1230 = vmatprep.subr.mxu0 0.0
    %1231 = vmatpush1.xpose.msra.mxu0 0.0
    %1232 = vmatprep.subr.mxu0 0.0
    %1233 = vmatpush1.xpose.msra.mxu0 0.0
    %1234 = vmatprep.subr.mxu0 0.0
    %1235 = vmatpush1.xpose.msra.mxu0 0.0
    %1236 = vmatprep.subr.mxu0 0.0
    %1237 = vmatpush1.xpose.msra.mxu0 0.0
    %1238 = vmatprep.subr.mxu0 0.0
    %1239 = vmatpush1.xpose.msra.mxu0 0.0
    %1240 = vmatprep.subr.mxu0 0.0
    %1241 = vmatpush1.xpose.msra.mxu0 0.0
    %1242 = vmatprep.subr.mxu0 0.0
    %1243 = vmatpush1.xpose.msra.mxu0 0.0
    %1244 = vmatprep.subr.mxu0 0.0
    %1245 = vmatpush1.xpose.msra.mxu0 %v1212
    %1246 = vmatprep.subr.mxu0 0.0
    %1247 = vmatpush2.xpose.msra.mxu0 0.0
    %1248 = vmatprep.subr.mxu0 0.0
    %1249 = vmatpush2.xpose.msra.mxu0 0.0
    %1250 = vmatprep.subr.mxu0 0.0
    %1251 = vmatpush2.xpose.msra.mxu0 0.0
    %1252 = vmatprep.subr.mxu0 0.0
    %1253 = vmatpush2.xpose.msra.mxu0 0.0
    %1254 = vmatprep.subr.mxu0 0.0
    %1255 = vmatpush2.xpose.msra.mxu0 0.0
    %1256 = vmatprep.subr.mxu0 0.0
    %1257 = vmatpush2.xpose.msra.mxu0 0.0
    %1258 = vmatprep.subr.mxu0 0.0
    %1259 = vmatpush2.xpose.msra.mxu0 0.0
    %1260 = vmatprep.subr.mxu0 0.0
    %1261 = vmatpush2.xpose.msra.mxu0 0.0
    %1262 = vmatprep.subr.mxu0 0.0
    %1263 = vmatpush2.xpose.msra.mxu0 0.0
    %1264 = vmatprep.subr.mxu0 0.0
    %1265 = vmatpush2.xpose.msra.mxu0 0.0
    %1266 = vmatprep.subr.mxu0 0.0
    %1267 = vmatpush2.xpose.msra.mxu0 0.0
    %1268 = vmatprep.subr.mxu0 0.0
    %1269 = vmatpush2.xpose.msra.mxu0 0.0
    %1270 = vmatprep.subr.mxu0 0.0
    %1271 = vmatpush2.xpose.msra.mxu0 0.0
    %1272 = vmatprep.subr.mxu0 0.0
    %1273 = vmatpush2.xpose.msra.mxu0 0.0
    %1274 = vmatprep.subr.mxu0 0.0
    %1275 = vmatpush2.xpose.msra.mxu0 0.0
    %1276 = vmatprep.subr.mxu0 0.0
    %1277 = vmatpush2.xpose.msra.mxu0 0.0
    %1278 = vmatprep.mubr.f32.mxu0 0.0
    %1279 = vmatmul.mubr.f32.gmra.mxu0 %v568
    %v1280 = vpop.f32.mrf.mxu0
    %v1281 = vadd.f32 0.0, %v1280
    %v1282 = vpop.f32.mrf.mxu0
    %1283 = vdwg.mxu0
    %v1284 = vsel %vm643, %v1208, -inf
    %1285 = vmax.xlane.f32.xlu0 %v1284
    %v1286 = vpop.xlane.xlu0 %1285
    %v1287 = vsel %vm643, %v1281, -inf
    %1288 = vmax.xlane.f32.xlu0 %v1287
    %v1289 = vpop.xlane.xlu0 %1288
    %v1290 = vsub.f32 %v1208, %v1286
    %v1291 = vsub.f32 %v1281, %v1289
    %v1292 = vmul.f32 %v1290, 1.442695
    %v1293 = vpow.pop %v1292
    %v1294 = vmul.f32 %v1291, 1.442695
    %v1295 = vpow.pop %v1294
    %v1296 = vsel %vm643, %v1293, 0.0
    %1297 = vadd.xlane.f32.xlu0 %v1296
    %v1298 = vpop.xlane.xlu0 %1297
    %v1299 = vsel %vm643, %v1295, 0.0
    %1300 = vadd.xlane.f32.xlu0 %v1299
    %v1301 = vpop.xlane.xlu0 %1300
    %v1302 = vrcp.pop %v1298
    %v1303 = vrcp.pop %v1301
    %v1304 = vmul.f32 %v1293, %v1302
    %v1305 = vmul.f32 %v1295, %v1303
    %v1307 = vsel %vm643, %v1304, 0
    %1309 = vmatprep.subr.mxu0 0.0
    %1310 = vmatpush1.msra.mxu0 0.0
    %1311 = vmatprep.subr.mxu0 0.0
    %1312 = vmatpush1.msra.mxu0 0.0
    %1313 = vmatprep.subr.mxu0 0.0
    %1314 = vmatpush1.msra.mxu0 0.0
    %1315 = vmatprep.subr.mxu0 0.0
    %1316 = vmatpush1.msra.mxu0 0.0
    %1317 = vmatprep.subr.mxu0 0.0
    %1318 = vmatpush1.msra.mxu0 0.0
    %1319 = vmatprep.subr.mxu0 0.0
    %1320 = vmatpush1.msra.mxu0 0.0
    %1321 = vmatprep.subr.mxu0 0.0
    %1322 = vmatpush1.msra.mxu0 0.0
    %1323 = vmatprep.subr.mxu0 0.0
    %1324 = vmatpush1.msra.mxu0 0.0
    %1325 = vmatprep.subr.mxu0 0.0
    %1326 = vmatpush1.msra.mxu0 0.0
    %1327 = vmatprep.subr.mxu0 0.0
    %1328 = vmatpush1.msra.mxu0 0.0
    %1329 = vmatprep.subr.mxu0 0.0
    %1330 = vmatpush1.msra.mxu0 0.0
    %1331 = vmatprep.subr.mxu0 0.0
    %1332 = vmatpush1.msra.mxu0 0.0
    %1333 = vmatprep.subr.mxu0 0.0
    %1334 = vmatpush1.msra.mxu0 0.0
    %1335 = vmatprep.subr.mxu0 0.0
    %1336 = vmatpush1.msra.mxu0 0.0
    %1337 = vmatprep.subr.mxu0 0.0
    %1338 = vmatpush1.msra.mxu0 0.0
    %1339 = vmatprep.subr.mxu0 0.0
    %1340 = vmatpush1.msra.mxu0 %v481
    %1341 = vmatprep.subr.mxu0 0.0
    %1342 = vmatpush2.msra.mxu0 0.0
    %1343 = vmatprep.subr.mxu0 0.0
    %1344 = vmatpush2.msra.mxu0 0.0
    %1345 = vmatprep.subr.mxu0 0.0
    %1346 = vmatpush2.msra.mxu0 0.0
    %1347 = vmatprep.subr.mxu0 0.0
    %1348 = vmatpush2.msra.mxu0 0.0
    %1349 = vmatprep.subr.mxu0 0.0
    %1350 = vmatpush2.msra.mxu0 0.0
    %1351 = vmatprep.subr.mxu0 0.0
    %1352 = vmatpush2.msra.mxu0 0.0
    %1353 = vmatprep.subr.mxu0 0.0
    %1354 = vmatpush2.msra.mxu0 0.0
    %1355 = vmatprep.subr.mxu0 0.0
    %1356 = vmatpush2.msra.mxu0 0.0
    %1357 = vmatprep.subr.mxu0 0.0
    %1358 = vmatpush2.msra.mxu0 0.0
    %1359 = vmatprep.subr.mxu0 0.0
    %1360 = vmatpush2.msra.mxu0 0.0
    %1361 = vmatprep.subr.mxu0 0.0
    %1362 = vmatpush2.msra.mxu0 0.0
    %1363 = vmatprep.subr.mxu0 0.0
    %1364 = vmatpush2.msra.mxu0 0.0
    %1365 = vmatprep.subr.mxu0 0.0
    %1366 = vmatpush2.msra.mxu0 0.0
    %1367 = vmatprep.subr.mxu0 0.0
    %1368 = vmatpush2.msra.mxu0 0.0
    %1369 = vmatprep.subr.mxu0 0.0
    %1370 = vmatpush2.msra.mxu0 0.0
    %1371 = vmatprep.subr.mxu0 0.0
    %1372 = vmatpush2.msra.mxu0 0.0
    %1373 = vmatprep.mubr.f32.mxu0 0.0
    %1374 = vmatmul.mubr.f32.gmra.mxu0 %v1307
    %v1375 = vpop.f32.mrf.mxu0
    %v1376 = vadd.f32 0.0, %v1375
    %v1377 = vpop.f32.mrf.mxu0
    %1378 = vdwg.mxu0
    %v1380 = vsel %vm643, %v1305, 0
    %1382 = vmatprep.subr.mxu0 0.0
    %1383 = vmatpush1.msra.mxu0 0.0
    %1384 = vmatprep.subr.mxu0 0.0
    %1385 = vmatpush1.msra.mxu0 0.0
    %1386 = vmatprep.subr.mxu0 0.0
    %1387 = vmatpush1.msra.mxu0 0.0
    %1388 = vmatprep.subr.mxu0 0.0
    %1389 = vmatpush1.msra.mxu0 0.0
    %1390 = vmatprep.subr.mxu0 0.0
    %1391 = vmatpush1.msra.mxu0 0.0
    %1392 = vmatprep.subr.mxu0 0.0
    %1393 = vmatpush1.msra.mxu0 0.0
    %1394 = vmatprep.subr.mxu0 0.0
    %1395 = vmatpush1.msra.mxu0 0.0
    %1396 = vmatprep.subr.mxu0 0.0
    %1397 = vmatpush1.msra.mxu0 0.0
    %1398 = vmatprep.subr.mxu0 0.0
    %1399 = vmatpush1.msra.mxu0 0.0
    %1400 = vmatprep.subr.mxu0 0.0
    %1401 = vmatpush1.msra.mxu0 0.0
    %1402 = vmatprep.subr.mxu0 0.0
    %1403 = vmatpush1.msra.mxu0 0.0
    %1404 = vmatprep.subr.mxu0 0.0
    %1405 = vmatpush1.msra.mxu0 0.0
    %1406 = vmatprep.subr.mxu0 0.0
    %1407 = vmatpush1.msra.mxu0 0.0
    %1408 = vmatprep.subr.mxu0 0.0
    %1409 = vmatpush1.msra.mxu0 0.0
    %1410 = vmatprep.subr.mxu0 0.0
    %1411 = vmatpush1.msra.mxu0 0.0
    %1412 = vmatprep.subr.mxu0 0.0
    %1413 = vmatpush1.msra.mxu0 %v486
    %1414 = vmatprep.subr.mxu0 0.0
    %1415 = vmatpush2.msra.mxu0 0.0
    %1416 = vmatprep.subr.mxu0 0.0
    %1417 = vmatpush2.msra.mxu0 0.0
    %1418 = vmatprep.subr.mxu0 0.0
    %1419 = vmatpush2.msra.mxu0 0.0
    %1420 = vmatprep.subr.mxu0 0.0
    %1421 = vmatpush2.msra.mxu0 0.0
    %1422 = vmatprep.subr.mxu0 0.0
    %1423 = vmatpush2.msra.mxu0 0.0
    %1424 = vmatprep.subr.mxu0 0.0
    %1425 = vmatpush2.msra.mxu0 0.0
    %1426 = vmatprep.subr.mxu0 0.0
    %1427 = vmatpush2.msra.mxu0 0.0
    %1428 = vmatprep.subr.mxu0 0.0
    %1429 = vmatpush2.msra.mxu0 0.0
    %1430 = vmatprep.subr.mxu0 0.0
    %1431 = vmatpush2.msra.mxu0 0.0
    %1432 = vmatprep.subr.mxu0 0.0
    %1433 = vmatpush2.msra.mxu0 0.0
    %1434 = vmatprep.subr.mxu0 0.0
    %1435 = vmatpush2.msra.mxu0 0.0
    %1436 = vmatprep.subr.mxu0 0.0
    %1437 = vmatpush2.msra.mxu0 0.0
    %1438 = vmatprep.subr.mxu0 0.0
    %1439 = vmatpush2.msra.mxu0 0.0
    %1440 = vmatprep.subr.mxu0 0.0
    %1441 = vmatpush2.msra.mxu0 0.0
    %1442 = vmatprep.subr.mxu0 0.0
    %1443 = vmatpush2.msra.mxu0 0.0
    %1444 = vmatprep.subr.mxu0 0.0
    %1445 = vmatpush2.msra.mxu0 0.0
    %1446 = vmatprep.mubr.f32.mxu0 0.0
    %1447 = vmatmul.mubr.f32.gmra.mxu0 %v1380
    %v1448 = vpop.f32.mrf.mxu0
    %v1449 = vadd.f32 0.0, %v1448
    %v1450 = vpop.f32.mrf.mxu0
    %1451 = vdwg.mxu0
    %v1452 = vmul.f32 %v1376, %v182
    %v1453 = vmul.f32 %v1449, %v182
    %v1454 = vadd.f32 %v1134, %v1452
    %v1455 = vadd.f32 %v1135, %v1453
    %v1456 = vmul.f32 %v383, %v187
    %v1457 = vmul.f32 %v388, %v187
    %v1459 = vsel %vm199, %v1456, 0
    %1461 = vmatprep.subr.mxu0 0.0
    %1462 = vmatpush1.xpose.msra.mxu0 0.0
    %1463 = vmatprep.subr.mxu0 0.0
    %1464 = vmatpush1.xpose.msra.mxu0 0.0
    %1465 = vmatprep.subr.mxu0 0.0
    %1466 = vmatpush1.xpose.msra.mxu0 0.0
    %1467 = vmatprep.subr.mxu0 0.0
    %1468 = vmatpush1.xpose.msra.mxu0 0.0
    %1469 = vmatprep.subr.mxu0 0.0
    %1470 = vmatpush1.xpose.msra.mxu0 0.0
    %1471 = vmatprep.subr.mxu0 0.0
    %1472 = vmatpush1.xpose.msra.mxu0 0.0
    %1473 = vmatprep.subr.mxu0 0.0
    %1474 = vmatpush1.xpose.msra.mxu0 0.0
    %1475 = vmatprep.subr.mxu0 0.0
    %1476 = vmatpush1.xpose.msra.mxu0 0.0
    %1477 = vmatprep.subr.mxu0 0.0
    %1478 = vmatpush1.xpose.msra.mxu0 0.0
    %1479 = vmatprep.subr.mxu0 0.0
    %1480 = vmatpush1.xpose.msra.mxu0 0.0
    %1481 = vmatprep.subr.mxu0 0.0
    %1482 = vmatpush1.xpose.msra.mxu0 0.0
    %1483 = vmatprep.subr.mxu0 0.0
    %1484 = vmatpush1.xpose.msra.mxu0 0.0
    %1485 = vmatprep.subr.mxu0 0.0
    %1486 = vmatpush1.xpose.msra.mxu0 0.0
    %1487 = vmatprep.subr.mxu0 0.0
    %1488 = vmatpush1.xpose.msra.mxu0 0.0
    %1489 = vmatprep.subr.mxu0 0.0
    %1490 = vmatpush1.xpose.msra.mxu0 0.0
    %1491 = vmatprep.subr.mxu0 0.0
    %1492 = vmatpush1.xpose.msra.mxu0 %v1459
    %1493 = vmatprep.subr.mxu0 0.0
    %1494 = vmatpush2.xpose.msra.mxu0 0.0
    %1495 = vmatprep.subr.mxu0 0.0
    %1496 = vmatpush2.xpose.msra.mxu0 0.0
    %1497 = vmatprep.subr.mxu0 0.0
    %1498 = vmatpush2.xpose.msra.mxu0 0.0
    %1499 = vmatprep.subr.mxu0 0.0
    %1500 = vmatpush2.xpose.msra.mxu0 0.0
    %1501 = vmatprep.subr.mxu0 0.0
    %1502 = vmatpush2.xpose.msra.mxu0 0.0
    %1503 = vmatprep.subr.mxu0 0.0
    %1504 = vmatpush2.xpose.msra.mxu0 0.0
    %1505 = vmatprep.subr.mxu0 0.0
    %1506 = vmatpush2.xpose.msra.mxu0 0.0
    %1507 = vmatprep.subr.mxu0 0.0
    %1508 = vmatpush2.xpose.msra.mxu0 0.0
    %1509 = vmatprep.subr.mxu0 0.0
    %1510 = vmatpush2.xpose.msra.mxu0 0.0
    %1511 = vmatprep.subr.mxu0 0.0
    %1512 = vmatpush2.xpose.msra.mxu0 0.0
    %1513 = vmatprep.subr.mxu0 0.0
    %1514 = vmatpush2.xpose.msra.mxu0 0.0
    %1515 = vmatprep.subr.mxu0 0.0
    %1516 = vmatpush2.xpose.msra.mxu0 0.0
    %1517 = vmatprep.subr.mxu0 0.0
    %1518 = vmatpush2.xpose.msra.mxu0 0.0
    %1519 = vmatprep.subr.mxu0 0.0
    %1520 = vmatpush2.xpose.msra.mxu0 0.0
    %1521 = vmatprep.subr.mxu0 0.0
    %1522 = vmatpush2.xpose.msra.mxu0 0.0
    %1523 = vmatprep.subr.mxu0 0.0
    %1524 = vmatpush2.xpose.msra.mxu0 0.0
    %1525 = vmatprep.mubr.f32.mxu0 0.0
    %1526 = vmatmul.mubr.f32.gmra.mxu0 %v492
    %v1527 = vpop.f32.mrf.mxu0
    %v1528 = vadd.f32 0.0, %v1527
    %v1529 = vpop.f32.mrf.mxu0
    %1530 = vdwg.mxu0
    %v1532 = vsel %vm199, %v1457, 0
    %1534 = vmatprep.subr.mxu0 0.0
    %1535 = vmatpush1.xpose.msra.mxu0 0.0
    %1536 = vmatprep.subr.mxu0 0.0
    %1537 = vmatpush1.xpose.msra.mxu0 0.0
    %1538 = vmatprep.subr.mxu0 0.0
    %1539 = vmatpush1.xpose.msra.mxu0 0.0
    %1540 = vmatprep.subr.mxu0 0.0
    %1541 = vmatpush1.xpose.msra.mxu0 0.0
    %1542 = vmatprep.subr.mxu0 0.0
    %1543 = vmatpush1.xpose.msra.mxu0 0.0
    %1544 = vmatprep.subr.mxu0 0.0
    %1545 = vmatpush1.xpose.msra.mxu0 0.0
    %1546 = vmatprep.subr.mxu0 0.0
    %1547 = vmatpush1.xpose.msra.mxu0 0.0
    %1548 = vmatprep.subr.mxu0 0.0
    %1549 = vmatpush1.xpose.msra.mxu0 0.0
    %1550 = vmatprep.subr.mxu0 0.0
    %1551 = vmatpush1.xpose.msra.mxu0 0.0
    %1552 = vmatprep.subr.mxu0 0.0
    %1553 = vmatpush1.xpose.msra.mxu0 0.0
    %1554 = vmatprep.subr.mxu0 0.0
    %1555 = vmatpush1.xpose.msra.mxu0 0.0
    %1556 = vmatprep.subr.mxu0 0.0
    %1557 = vmatpush1.xpose.msra.mxu0 0.0
    %1558 = vmatprep.subr.mxu0 0.0
    %1559 = vmatpush1.xpose.msra.mxu0 0.0
    %1560 = vmatprep.subr.mxu0 0.0
    %1561 = vmatpush1.xpose.msra.mxu0 0.0
    %1562 = vmatprep.subr.mxu0 0.0
    %1563 = vmatpush1.xpose.msra.mxu0 0.0
    %1564 = vmatprep.subr.mxu0 0.0
    %1565 = vmatpush1.xpose.msra.mxu0 %v1532
    %1566 = vmatprep.subr.mxu0 0.0
    %1567 = vmatpush2.xpose.msra.mxu0 0.0
    %1568 = vmatprep.subr.mxu0 0.0
    %1569 = vmatpush2.xpose.msra.mxu0 0.0
    %1570 = vmatprep.subr.mxu0 0.0
    %1571 = vmatpush2.xpose.msra.mxu0 0.0
    %1572 = vmatprep.subr.mxu0 0.0
    %1573 = vmatpush2.xpose.msra.mxu0 0.0
    %1574 = vmatprep.subr.mxu0 0.0
    %1575 = vmatpush2.xpose.msra.mxu0 0.0
    %1576 = vmatprep.subr.mxu0 0.0
    %1577 = vmatpush2.xpose.msra.mxu0 0.0
    %1578 = vmatprep.subr.mxu0 0.0
    %1579 = vmatpush2.xpose.msra.mxu0 0.0
    %1580 = vmatprep.subr.mxu0 0.0
    %1581 = vmatpush2.xpose.msra.mxu0 0.0
    %1582 = vmatprep.subr.mxu0 0.0
    %1583 = vmatpush2.xpose.msra.mxu0 0.0
    %1584 = vmatprep.subr.mxu0 0.0
    %1585 = vmatpush2.xpose.msra.mxu0 0.0
    %1586 = vmatprep.subr.mxu0 0.0
    %1587 = vmatpush2.xpose.msra.mxu0 0.0
    %1588 = vmatprep.subr.mxu0 0.0
    %1589 = vmatpush2.xpose.msra.mxu0 0.0
    %1590 = vmatprep.subr.mxu0 0.0
    %1591 = vmatpush2.xpose.msra.mxu0 0.0
    %1592 = vmatprep.subr.mxu0 0.0
    %1593 = vmatpush2.xpose.msra.mxu0 0.0
    %1594 = vmatprep.subr.mxu0 0.0
    %1595 = vmatpush2.xpose.msra.mxu0 0.0
    %1596 = vmatprep.subr.mxu0 0.0
    %1597 = vmatpush2.xpose.msra.mxu0 0.0
    %1598 = vmatprep.mubr.f32.mxu0 0.0
    %1599 = vmatmul.mubr.f32.gmra.mxu0 %v568
    %v1600 = vpop.f32.mrf.mxu0
    %v1601 = vadd.f32 0.0, %v1600
    %v1602 = vpop.f32.mrf.mxu0
    %1603 = vdwg.mxu0
    %v1604 = vsel %vm643, %v1528, -inf
    %1605 = vmax.xlane.f32.xlu0 %v1604
    %v1606 = vpop.xlane.xlu0 %1605
    %v1607 = vsel %vm643, %v1601, -inf
    %1608 = vmax.xlane.f32.xlu0 %v1607
    %v1609 = vpop.xlane.xlu0 %1608
    %v1610 = vsub.f32 %v1528, %v1606
    %v1611 = vsub.f32 %v1601, %v1609
    %v1612 = vmul.f32 %v1610, 1.442695
    %v1613 = vpow.pop %v1612
    %v1614 = vmul.f32 %v1611, 1.442695
    %v1615 = vpow.pop %v1614
    %v1616 = vsel %vm643, %v1613, 0.0
    %1617 = vadd.xlane.f32.xlu0 %v1616
    %v1618 = vpop.xlane.xlu0 %1617
    %v1619 = vsel %vm643, %v1615, 0.0
    %1620 = vadd.xlane.f32.xlu0 %v1619
    %v1621 = vpop.xlane.xlu0 %1620
    %v1622 = vrcp.pop %v1618
    %v1623 = vrcp.pop %v1621
    %v1624 = vmul.f32 %v1613, %v1622
    %v1625 = vmul.f32 %v1615, %v1623
    %v1627 = vsel %vm643, %v1624, 0
    %1629 = vmatprep.subr.mxu0 0.0
    %1630 = vmatpush1.msra.mxu0 0.0
    %1631 = vmatprep.subr.mxu0 0.0
    %1632 = vmatpush1.msra.mxu0 0.0
    %1633 = vmatprep.subr.mxu0 0.0
    %1634 = vmatpush1.msra.mxu0 0.0
    %1635 = vmatprep.subr.mxu0 0.0
    %1636 = vmatpush1.msra.mxu0 0.0
    %1637 = vmatprep.subr.mxu0 0.0
    %1638 = vmatpush1.msra.mxu0 0.0
    %1639 = vmatprep.subr.mxu0 0.0
    %1640 = vmatpush1.msra.mxu0 0.0
    %1641 = vmatprep.subr.mxu0 0.0
    %1642 = vmatpush1.msra.mxu0 0.0
    %1643 = vmatprep.subr.mxu0 0.0
    %1644 = vmatpush1.msra.mxu0 0.0
    %1645 = vmatprep.subr.mxu0 0.0
    %1646 = vmatpush1.msra.mxu0 0.0
    %1647 = vmatprep.subr.mxu0 0.0
    %1648 = vmatpush1.msra.mxu0 0.0
    %1649 = vmatprep.subr.mxu0 0.0
    %1650 = vmatpush1.msra.mxu0 0.0
    %1651 = vmatprep.subr.mxu0 0.0
    %1652 = vmatpush1.msra.mxu0 0.0
    %1653 = vmatprep.subr.mxu0 0.0
    %1654 = vmatpush1.msra.mxu0 0.0
    %1655 = vmatprep.subr.mxu0 0.0
    %1656 = vmatpush1.msra.mxu0 0.0
    %1657 = vmatprep.subr.mxu0 0.0
    %1658 = vmatpush1.msra.mxu0 0.0
    %1659 = vmatprep.subr.mxu0 0.0
    %1660 = vmatpush1.msra.mxu0 %v481
    %1661 = vmatprep.subr.mxu0 0.0
    %1662 = vmatpush2.msra.mxu0 0.0
    %1663 = vmatprep.subr.mxu0 0.0
    %1664 = vmatpush2.msra.mxu0 0.0
    %1665 = vmatprep.subr.mxu0 0.0
    %1666 = vmatpush2.msra.mxu0 0.0
    %1667 = vmatprep.subr.mxu0 0.0
    %1668 = vmatpush2.msra.mxu0 0.0
    %1669 = vmatprep.subr.mxu0 0.0
    %1670 = vmatpush2.msra.mxu0 0.0
    %1671 = vmatprep.subr.mxu0 0.0
    %1672 = vmatpush2.msra.mxu0 0.0
    %1673 = vmatprep.subr.mxu0 0.0
    %1674 = vmatpush2.msra.mxu0 0.0
    %1675 = vmatprep.subr.mxu0 0.0
    %1676 = vmatpush2.msra.mxu0 0.0
    %1677 = vmatprep.subr.mxu0 0.0
    %1678 = vmatpush2.msra.mxu0 0.0
    %1679 = vmatprep.subr.mxu0 0.0
    %1680 = vmatpush2.msra.mxu0 0.0
    %1681 = vmatprep.subr.mxu0 0.0
    %1682 = vmatpush2.msra.mxu0 0.0
    %1683 = vmatprep.subr.mxu0 0.0
    %1684 = vmatpush2.msra.mxu0 0.0
    %1685 = vmatprep.subr.mxu0 0.0
    %1686 = vmatpush2.msra.mxu0 0.0
    %1687 = vmatprep.subr.mxu0 0.0
    %1688 = vmatpush2.msra.mxu0 0.0
    %1689 = vmatprep.subr.mxu0 0.0
    %1690 = vmatpush2.msra.mxu0 0.0
    %1691 = vmatprep.subr.mxu0 0.0
    %1692 = vmatpush2.msra.mxu0 0.0
    %1693 = vmatprep.mubr.f32.mxu0 0.0
    %1694 = vmatmul.mubr.f32.gmra.mxu0 %v1627
    %v1695 = vpop.f32.mrf.mxu0
    %v1696 = vadd.f32 0.0, %v1695
    %v1697 = vpop.f32.mrf.mxu0
    %1698 = vdwg.mxu0
    %v1700 = vsel %vm643, %v1625, 0
    %1702 = vmatprep.subr.mxu0 0.0
    %1703 = vmatpush1.msra.mxu0 0.0
    %1704 = vmatprep.subr.mxu0 0.0
    %1705 = vmatpush1.msra.mxu0 0.0
    %1706 = vmatprep.subr.mxu0 0.0
    %1707 = vmatpush1.msra.mxu0 0.0
    %1708 = vmatprep.subr.mxu0 0.0
    %1709 = vmatpush1.msra.mxu0 0.0
    %1710 = vmatprep.subr.mxu0 0.0
    %1711 = vmatpush1.msra.mxu0 0.0
    %1712 = vmatprep.subr.mxu0 0.0
    %1713 = vmatpush1.msra.mxu0 0.0
    %1714 = vmatprep.subr.mxu0 0.0
    %1715 = vmatpush1.msra.mxu0 0.0
    %1716 = vmatprep.subr.mxu0 0.0
    %1717 = vmatpush1.msra.mxu0 0.0
    %1718 = vmatprep.subr.mxu0 0.0
    %1719 = vmatpush1.msra.mxu0 0.0
    %1720 = vmatprep.subr.mxu0 0.0
    %1721 = vmatpush1.msra.mxu0 0.0
    %1722 = vmatprep.subr.mxu0 0.0
    %1723 = vmatpush1.msra.mxu0 0.0
    %1724 = vmatprep.subr.mxu0 0.0
    %1725 = vmatpush1.msra.mxu0 0.0
    %1726 = vmatprep.subr.mxu0 0.0
    %1727 = vmatpush1.msra.mxu0 0.0
    %1728 = vmatprep.subr.mxu0 0.0
    %1729 = vmatpush1.msra.mxu0 0.0
    %1730 = vmatprep.subr.mxu0 0.0
    %1731 = vmatpush1.msra.mxu0 0.0
    %1732 = vmatprep.subr.mxu0 0.0
    %1733 = vmatpush1.msra.mxu0 %v486
    %1734 = vmatprep.subr.mxu0 0.0
    %1735 = vmatpush2.msra.mxu0 0.0
    %1736 = vmatprep.subr.mxu0 0.0
    %1737 = vmatpush2.msra.mxu0 0.0
    %1738 = vmatprep.subr.mxu0 0.0
    %1739 = vmatpush2.msra.mxu0 0.0
    %1740 = vmatprep.subr.mxu0 0.0
    %1741 = vmatpush2.msra.mxu0 0.0
    %1742 = vmatprep.subr.mxu0 0.0
    %1743 = vmatpush2.msra.mxu0 0.0
    %1744 = vmatprep.subr.mxu0 0.0
    %1745 = vmatpush2.msra.mxu0 0.0
    %1746 = vmatprep.subr.mxu0 0.0
    %1747 = vmatpush2.msra.mxu0 0.0
    %1748 = vmatprep.subr.mxu0 0.0
    %1749 = vmatpush2.msra.mxu0 0.0
    %1750 = vmatprep.subr.mxu0 0.0
    %1751 = vmatpush2.msra.mxu0 0.0
    %1752 = vmatprep.subr.mxu0 0.0
    %1753 = vmatpush2.msra.mxu0 0.0
    %1754 = vmatprep.subr.mxu0 0.0
    %1755 = vmatpush2.msra.mxu0 0.0
    %1756 = vmatprep.subr.mxu0 0.0
    %1757 = vmatpush2.msra.mxu0 0.0
    %1758 = vmatprep.subr.mxu0 0.0
    %1759 = vmatpush2.msra.mxu0 0.0
    %1760 = vmatprep.subr.mxu0 0.0
    %1761 = vmatpush2.msra.mxu0 0.0
    %1762 = vmatprep.subr.mxu0 0.0
    %1763 = vmatpush2.msra.mxu0 0.0
    %1764 = vmatprep.subr.mxu0 0.0
    %1765 = vmatpush2.msra.mxu0 0.0
    %1766 = vmatprep.mubr.f32.mxu0 0.0
    %1767 = vmatmul.mubr.f32.gmra.mxu0 %v1700
    %v1768 = vpop.f32.mrf.mxu0
    %v1769 = vadd.f32 0.0, %v1768
    %v1770 = vpop.f32.mrf.mxu0
    %1771 = vdwg.mxu0
    %v1772 = vmul.f32 %v1696, %v187
    %v1773 = vmul.f32 %v1769, %v187
    %v1774 = vadd.f32 %v1454, %v1772
    %v1775 = vadd.f32 %v1455, %v1773
    %v1776 = vld [vmem:[#allocation8] sm:$0xff]
    %v1777 = vld [vmem:[#allocation8 + $0x8] sm:$0xff]
    %v1778 = vld [vmem:[#allocation8 + $0x10] sm:$0xff]
    %v1779 = vld [vmem:[#allocation8 + $0x18] sm:$0xff]
    %v1780 = vld [vmem:[#allocation10] sm:$0x1]
    %v1782 = vlaneseq
    %v1783 = vshrl.u32 %v1782, 7
    %v1784 = vsub.s32 0, %v1783
    %v1785 = vrot.slane %v1780, %v1784
    %v1788 = vsel %vm199, %v1774, 0
    %v1791 = vsel %vm199, %v1775, 0
    %v1794 = vsel %vm199, %v1776, 0
    %v1797 = vsel %vm199, %v1777, 0
    %v1800 = vsel %vm199, %v1778, 0
    %v1803 = vsel %vm199, %v1779, 0
    %1805 = vmatprep.subr.mxu0 0.0
    %1806 = vmatpush1.xpose.msra.mxu0 0.0
    %1807 = vmatprep.subr.mxu0 0.0
    %1808 = vmatpush1.xpose.msra.mxu0 0.0
    %1809 = vmatprep.subr.mxu0 0.0
    %1810 = vmatpush1.xpose.msra.mxu0 0.0
    %1811 = vmatprep.subr.mxu0 0.0
    %1812 = vmatpush1.xpose.msra.mxu0 0.0
    %1813 = vmatprep.subr.mxu0 0.0
    %1814 = vmatpush1.xpose.msra.mxu0 0.0
    %1815 = vmatprep.subr.mxu0 0.0
    %1816 = vmatpush1.xpose.msra.mxu0 0.0
    %1817 = vmatprep.subr.mxu0 0.0
    %1818 = vmatpush1.xpose.msra.mxu0 0.0
    %1819 = vmatprep.subr.mxu0 0.0
    %1820 = vmatpush1.xpose.msra.mxu0 0.0
    %1821 = vmatprep.subr.mxu0 0.0
    %1822 = vmatpush1.xpose.msra.mxu0 0.0
    %1823 = vmatprep.subr.mxu0 0.0
    %1824 = vmatpush1.xpose.msra.mxu0 0.0
    %1825 = vmatprep.subr.mxu0 0.0
    %1826 = vmatpush1.xpose.msra.mxu0 0.0
    %1827 = vmatprep.subr.mxu0 0.0
    %1828 = vmatpush1.xpose.msra.mxu0 0.0
    %1829 = vmatprep.subr.mxu0 0.0
    %1830 = vmatpush1.xpose.msra.mxu0 %v1803
    %1831 = vmatprep.subr.mxu0 0.0
    %1832 = vmatpush1.xpose.msra.mxu0 %v1800
    %1833 = vmatprep.subr.mxu0 0.0
    %1834 = vmatpush1.xpose.msra.mxu0 %v1797
    %1835 = vmatprep.subr.mxu0 0.0
    %1836 = vmatpush1.xpose.msra.mxu0 %v1794
    %1837 = vmatprep.subr.mxu0 0.0
    %1838 = vmatpush2.xpose.msra.mxu0 0.0
    %1839 = vmatprep.subr.mxu0 0.0
    %1840 = vmatpush2.xpose.msra.mxu0 0.0
    %1841 = vmatprep.subr.mxu0 0.0
    %1842 = vmatpush2.xpose.msra.mxu0 0.0
    %1843 = vmatprep.subr.mxu0 0.0
    %1844 = vmatpush2.xpose.msra.mxu0 0.0
    %1845 = vmatprep.subr.mxu0 0.0
    %1846 = vmatpush2.xpose.msra.mxu0 0.0
    %1847 = vmatprep.subr.mxu0 0.0
    %1848 = vmatpush2.xpose.msra.mxu0 0.0
    %1849 = vmatprep.subr.mxu0 0.0
    %1850 = vmatpush2.xpose.msra.mxu0 0.0
    %1851 = vmatprep.subr.mxu0 0.0
    %1852 = vmatpush2.xpose.msra.mxu0 0.0
    %1853 = vmatprep.subr.mxu0 0.0
    %1854 = vmatpush2.xpose.msra.mxu0 0.0
    %1855 = vmatprep.subr.mxu0 0.0
    %1856 = vmatpush2.xpose.msra.mxu0 0.0
    %1857 = vmatprep.subr.mxu0 0.0
    %1858 = vmatpush2.xpose.msra.mxu0 0.0
    %1859 = vmatprep.subr.mxu0 0.0
    %1860 = vmatpush2.xpose.msra.mxu0 0.0
    %1861 = vmatprep.subr.mxu0 0.0
    %1862 = vmatpush2.xpose.msra.mxu0 0.0
    %1863 = vmatprep.subr.mxu0 0.0
    %1864 = vmatpush2.xpose.msra.mxu0 0.0
    %1865 = vmatprep.subr.mxu0 0.0
    %1866 = vmatpush2.xpose.msra.mxu0 0.0
    %1867 = vmatprep.subr.mxu0 0.0
    %1868 = vmatpush2.xpose.msra.mxu0 0.0
    %1869 = vmatprep.mubr.f32.mxu0 0.0
    %1870 = vmatmul.mubr.f32.gmra.mxu0 %v1788
    %v1871 = vpop.f32.mrf.mxu0
    %v1872 = vadd.f32 %v1785, %v1871
    %v1873 = vpop.f32.mrf.mxu0
    %1874 = vmatprep.mubr.f32.mxu0 0.0
    %1875 = vmatmul.mubr.f32.gmra.mxu0 %v1791
    %v1876 = vpop.f32.mrf.mxu0
    %v1877 = vadd.f32 %v1785, %v1876
    %v1878 = vpop.f32.mrf.mxu0
    %1879 = vdwg.mxu0
    %v1880 = vadd.f32 %v164, %v1872
    %v1881 = vadd.f32 %v165, %v1877
    %v1882 = vld [vmem:[#allocation11] sm:$0x1]
    %v1883 = vld [vmem:[%s10] sm:$0x1]
    %v1884 = vsel %vm199, %v1880, 0.0
    %1885 = vadd.xlane.f32.xlu0 %v1884
    %v1886 = vpop.xlane.xlu0 %1885
    %v1887 = vsel %vm199, %v1881, 0.0
    %1888 = vadd.xlane.f32.xlu0 %v1887
    %v1889 = vpop.xlane.xlu0 %1888
    %v1890 = vrcp.pop 32.0
    %v1891 = vmul.f32 %v1886, %v1890
    %v1892 = vmul.f32 %v1889, %v1890
    %v1893 = vsub.f32 %v1880, %v1891
    %v1894 = vsub.f32 %v1881, %v1892
    %v1895 = vmul.f32 %v1893, %v1893
    %v1896 = vmul.f32 %v1894, %v1894
    %v1897 = vsel %vm199, %v1895, 0.0
    %1898 = vadd.xlane.f32.xlu0 %v1897
    %v1899 = vpop.xlane.xlu0 %1898
    %v1900 = vsel %vm199, %v1896, 0.0
    %1901 = vadd.xlane.f32.xlu0 %v1900
    %v1902 = vpop.xlane.xlu0 %1901
    %v1903 = vmul.f32 %v1899, %v1890
    %v1904 = vmul.f32 %v1902, %v1890
    %v1905 = vadd.f32 %v1903, 1e-05
    %v1906 = vadd.f32 %v1904, 1e-05
    %v1907 = vrsqrt.pop %v1905
    %v1908 = vrsqrt.pop %v1906
    %v1909 = vmul.f32 %v1893, %v1907
    %v1910 = vmul.f32 %v1894, %v1908
    %v1912 = vlaneseq
    %v1913 = vshrl.u32 %v1912, 7
    %v1914 = vsub.s32 0, %v1913
    %v1915 = vrot.slane %v1882, %v1914
    %v1917 = vmul.f32 %v1909, %v1915
    %v1918 = vmul.f32 %v1910, %v1915
    %v1920 = vlaneseq
    %v1921 = vshrl.u32 %v1920, 7
    %v1922 = vsub.s32 0, %v1921
    %v1923 = vrot.slane %v1883, %v1922
    %v1925 = vadd.f32 %v1917, %v1923
    %v1926 = vadd.f32 %v1918, %v1923
    %v1927 = vld [vmem:[%s13] sm:$0xff]
    %v1928 = vld [vmem:[%s13 + $0x8] sm:$0xff]
    %v1929 = vld [vmem:[%s13 + $0x10] sm:$0xff]
    %v1930 = vld [vmem:[%s13 + $0x18] sm:$0xff]
    %v1931 = vld [vmem:[%s13 + $0x20] sm:$0xff]
    %v1932 = vld [vmem:[%s13 + $0x28] sm:$0xff]
    %v1933 = vld [vmem:[%s13 + $0x30] sm:$0xff]
    %v1934 = vld [vmem:[%s13 + $0x38] sm:$0xff]
    %v1935 = vld [vmem:[%s14] sm:$0x1]
    %v1937 = vlaneseq
    %v1938 = vshrl.u32 %v1937, 7
    %v1939 = vsub.s32 0, %v1938
    %v1940 = vrot.slane %v1935, %v1939
    %v1943 = vsel %vm199, %v1925, 0
    %v1946 = vsel %vm199, %v1926, 0
    %v1949 = vsel %vm199, %v1927, 0
    %v1952 = vsel %vm199, %v1928, 0
    %v1955 = vsel %vm199, %v1929, 0
    %v1958 = vsel %vm199, %v1930, 0
    %v1961 = vsel %vm199, %v1931, 0
    %v1964 = vsel %vm199, %v1932, 0
    %v1967 = vsel %vm199, %v1933, 0
    %v1970 = vsel %vm199, %v1934, 0
    %1972 = vmatprep.subr.mxu0 0.0
    %1973 = vmatpush1.xpose.msra.mxu0 0.0
    %1974 = vmatprep.subr.mxu0 0.0
    %1975 = vmatpush1.xpose.msra.mxu0 0.0
    %1976 = vmatprep.subr.mxu0 0.0
    %1977 = vmatpush1.xpose.msra.mxu0 0.0
    %1978 = vmatprep.subr.mxu0 0.0
    %1979 = vmatpush1.xpose.msra.mxu0 0.0
    %1980 = vmatprep.subr.mxu0 0.0
    %1981 = vmatpush1.xpose.msra.mxu0 0.0
    %1982 = vmatprep.subr.mxu0 0.0
    %1983 = vmatpush1.xpose.msra.mxu0 0.0
    %1984 = vmatprep.subr.mxu0 0.0
    %1985 = vmatpush1.xpose.msra.mxu0 0.0
    %1986 = vmatprep.subr.mxu0 0.0
    %1987 = vmatpush1.xpose.msra.mxu0 0.0
    %1988 = vmatprep.subr.mxu0 0.0
    %1989 = vmatpush1.xpose.msra.mxu0 %v1970
    %1990 = vmatprep.subr.mxu0 0.0
    %1991 = vmatpush1.xpose.msra.mxu0 %v1967
    %1992 = vmatprep.subr.mxu0 0.0
    %1993 = vmatpush1.xpose.msra.mxu0 %v1964
    %1994 = vmatprep.subr.mxu0 0.0
    %1995 = vmatpush1.xpose.msra.mxu0 %v1961
    %1996 = vmatprep.subr.mxu0 0.0
    %1997 = vmatpush1.xpose.msra.mxu0 %v1958
    %1998 = vmatprep.subr.mxu0 0.0
    %1999 = vmatpush1.xpose.msra.mxu0 %v1955
    %2000 = vmatprep.subr.mxu0 0.0
    %2001 = vmatpush1.xpose.msra.mxu0 %v1952
    %2002 = vmatprep.subr.mxu0 0.0
    %2003 = vmatpush1.xpose.msra.mxu0 %v1949
    %2004 = vmatprep.subr.mxu0 0.0
    %2005 = vmatpush2.xpose.msra.mxu0 0.0
    %2006 = vmatprep.subr.mxu0 0.0
    %2007 = vmatpush2.xpose.msra.mxu0 0.0
    %2008 = vmatprep.subr.mxu0 0.0
    %2009 = vmatpush2.xpose.msra.mxu0 0.0
    %2010 = vmatprep.subr.mxu0 0.0
    %2011 = vmatpush2.xpose.msra.mxu0 0.0
    %2012 = vmatprep.subr.mxu0 0.0
    %2013 = vmatpush2.xpose.msra.mxu0 0.0
    %2014 = vmatprep.subr.mxu0 0.0
    %2015 = vmatpush2.xpose.msra.mxu0 0.0
    %2016 = vmatprep.subr.mxu0 0.0
    %2017 = vmatpush2.xpose.msra.mxu0 0.0
    %2018 = vmatprep.subr.mxu0 0.0
    %2019 = vmatpush2.xpose.msra.mxu0 0.0
    %2020 = vmatprep.subr.mxu0 0.0
    %2021 = vmatpush2.xpose.msra.mxu0 0.0
    %2022 = vmatprep.subr.mxu0 0.0
    %2023 = vmatpush2.xpose.msra.mxu0 0.0
    %2024 = vmatprep.subr.mxu0 0.0
    %2025 = vmatpush2.xpose.msra.mxu0 0.0
    %2026 = vmatprep.subr.mxu0 0.0
    %2027 = vmatpush2.xpose.msra.mxu0 0.0
    %2028 = vmatprep.subr.mxu0 0.0
    %2029 = vmatpush2.xpose.msra.mxu0 0.0
    %2030 = vmatprep.subr.mxu0 0.0
    %2031 = vmatpush2.xpose.msra.mxu0 0.0
    %2032 = vmatprep.subr.mxu0 0.0
    %2033 = vmatpush2.xpose.msra.mxu0 0.0
    %2034 = vmatprep.subr.mxu0 0.0
    %2035 = vmatpush2.xpose.msra.mxu0 0.0
    %2036 = vmatprep.mubr.f32.mxu0 0.0
    %2037 = vmatmul.mubr.f32.gmra.mxu0 %v1943
    %v2038 = vpop.f32.mrf.mxu0
    %v2039 = vadd.f32 %v1940, %v2038
    %v2040 = vpop.f32.mrf.mxu0
    %2041 = vmatprep.mubr.f32.mxu0 0.0
    %2042 = vmatmul.mubr.f32.gmra.mxu0 %v1946
    %v2043 = vpop.f32.mrf.mxu0
    %v2044 = vadd.f32 %v1940, %v2043
    %v2045 = vpop.f32.mrf.mxu0
    %2046 = vdwg.mxu0
    %v2047 = vmax.f32 %v2039, 0.0
    %v2048 = vmax.f32 %v2044, 0.0
    %v2049 = vld [vmem:[#allocation13] sm:$0xff]
    %v2050 = vld [vmem:[#allocation13 + $0x8] sm:$0xff]
    %v2051 = vld [vmem:[#allocation13 + $0x10] sm:$0xff]
    %v2052 = vld [vmem:[#allocation13 + $0x18] sm:$0xff]
    %v2053 = vld [vmem:[%s16] sm:$0x1]
    %v2055 = vlaneseq
    %v2056 = vshrl.u32 %v2055, 7
    %v2057 = vsub.s32 0, %v2056
    %v2058 = vrot.slane %v2053, %v2057
    %vm2060 = vcmask 523264
    %v2062 = vsel %vm2060, %v2047, 0
    %v2065 = vsel %vm2060, %v2048, 0
    %v2068 = vsel %vm2060, %v2049, 0
    %v2071 = vsel %vm2060, %v2050, 0
    %v2074 = vsel %vm2060, %v2051, 0
    %v2077 = vsel %vm2060, %v2052, 0
    %2079 = vmatprep.subr.mxu0 0.0
    %2080 = vmatpush1.xpose.msra.mxu0 0.0
    %2081 = vmatprep.subr.mxu0 0.0
    %2082 = vmatpush1.xpose.msra.mxu0 0.0
    %2083 = vmatprep.subr.mxu0 0.0
    %2084 = vmatpush1.xpose.msra.mxu0 0.0
    %2085 = vmatprep.subr.mxu0 0.0
    %2086 = vmatpush1.xpose.msra.mxu0 0.0
    %2087 = vmatprep.subr.mxu0 0.0
    %2088 = vmatpush1.xpose.msra.mxu0 0.0
    %2089 = vmatprep.subr.mxu0 0.0
    %2090 = vmatpush1.xpose.msra.mxu0 0.0
    %2091 = vmatprep.subr.mxu0 0.0
    %2092 = vmatpush1.xpose.msra.mxu0 0.0
    %2093 = vmatprep.subr.mxu0 0.0
    %2094 = vmatpush1.xpose.msra.mxu0 0.0
    %2095 = vmatprep.subr.mxu0 0.0
    %2096 = vmatpush1.xpose.msra.mxu0 0.0
    %2097 = vmatprep.subr.mxu0 0.0
    %2098 = vmatpush1.xpose.msra.mxu0 0.0
    %2099 = vmatprep.subr.mxu0 0.0
    %2100 = vmatpush1.xpose.msra.mxu0 0.0
    %2101 = vmatprep.subr.mxu0 0.0
    %2102 = vmatpush1.xpose.msra.mxu0 0.0
    %2103 = vmatprep.subr.mxu0 0.0
    %2104 = vmatpush1.xpose.msra.mxu0 %v2077
    %2105 = vmatprep.subr.mxu0 0.0
    %2106 = vmatpush1.xpose.msra.mxu0 %v2074
    %2107 = vmatprep.subr.mxu0 0.0
    %2108 = vmatpush1.xpose.msra.mxu0 %v2071
    %2109 = vmatprep.subr.mxu0 0.0
    %2110 = vmatpush1.xpose.msra.mxu0 %v2068
    %2111 = vmatprep.subr.mxu0 0.0
    %2112 = vmatpush2.xpose.msra.mxu0 0.0
    %2113 = vmatprep.subr.mxu0 0.0
    %2114 = vmatpush2.xpose.msra.mxu0 0.0
    %2115 = vmatprep.subr.mxu0 0.0
    %2116 = vmatpush2.xpose.msra.mxu0 0.0
    %2117 = vmatprep.subr.mxu0 0.0
    %2118 = vmatpush2.xpose.msra.mxu0 0.0
    %2119 = vmatprep.subr.mxu0 0.0
    %2120 = vmatpush2.xpose.msra.mxu0 0.0
    %2121 = vmatprep.subr.mxu0 0.0
    %2122 = vmatpush2.xpose.msra.mxu0 0.0
    %2123 = vmatprep.subr.mxu0 0.0
    %2124 = vmatpush2.xpose.msra.mxu0 0.0
    %2125 = vmatprep.subr.mxu0 0.0
    %2126 = vmatpush2.xpose.msra.mxu0 0.0
    %2127 = vmatprep.subr.mxu0 0.0
    %2128 = vmatpush2.xpose.msra.mxu0 0.0
    %2129 = vmatprep.subr.mxu0 0.0
    %2130 = vmatpush2.xpose.msra.mxu0 0.0
    %2131 = vmatprep.subr.mxu0 0.0
    %2132 = vmatpush2.xpose.msra.mxu0 0.0
    %2133 = vmatprep.subr.mxu0 0.0
    %2134 = vmatpush2.xpose.msra.mxu0 0.0
    %2135 = vmatprep.subr.mxu0 0.0
    %2136 = vmatpush2.xpose.msra.mxu0 0.0
    %2137 = vmatprep.subr.mxu0 0.0
    %2138 = vmatpush2.xpose.msra.mxu0 0.0
    %2139 = vmatprep.subr.mxu0 0.0
    %2140 = vmatpush2.xpose.msra.mxu0 0.0
    %2141 = vmatprep.subr.mxu0 0.0
    %2142 = vmatpush2.xpose.msra.mxu0 0.0
    %2143 = vmatprep.mubr.f32.mxu0 0.0
    %2144 = vmatmul.mubr.f32.gmra.mxu0 %v2062
    %v2145 = vpop.f32.mrf.mxu0
    %v2146 = vadd.f32 %v2058, %v2145
    %v2147 = vpop.f32.mrf.mxu0
    %2148 = vmatprep.mubr.f32.mxu0 0.0
    %2149 = vmatmul.mubr.f32.gmra.mxu0 %v2065
    %v2150 = vpop.f32.mrf.mxu0
    %v2151 = vadd.f32 %v2058, %v2150
    %v2152 = vpop.f32.mrf.mxu0
    %2153 = vdwg.mxu0
    %v2154 = vadd.f32 %v1925, %v2146
    %v2155 = vadd.f32 %v1926, %v2151
    %v2156 = vld [vmem:[%s11] sm:$0x1]
    %v2157 = vld [vmem:[%s12] sm:$0x1]
    %v2158 = vsel %vm199, %v2154, 0.0
    %2159 = vadd.xlane.f32.xlu0 %v2158
    %v2160 = vpop.xlane.xlu0 %2159
    %v2161 = vsel %vm199, %v2155, 0.0
    %2162 = vadd.xlane.f32.xlu0 %v2161
    %v2163 = vpop.xlane.xlu0 %2162
    %v2164 = vmul.f32 %v2160, %v1890
    %v2165 = vmul.f32 %v2163, %v1890
    %v2166 = vsub.f32 %v2154, %v2164
    %v2167 = vsub.f32 %v2155, %v2165
    %v2168 = vmul.f32 %v2166, %v2166
    %v2169 = vmul.f32 %v2167, %v2167
    %v2170 = vsel %vm199, %v2168, 0.0
    %2171 = vadd.xlane.f32.xlu0 %v2170
    %v2172 = vpop.xlane.xlu0 %2171
    %v2173 = vsel %vm199, %v2169, 0.0
    %2174 = vadd.xlane.f32.xlu0 %v2173
    %v2175 = vpop.xlane.xlu0 %2174
    %v2176 = vmul.f32 %v2172, %v1890
    %v2177 = vmul.f32 %v2175, %v1890
    %v2178 = vadd.f32 %v2176, 1e-05
    %v2179 = vadd.f32 %v2177, 1e-05
    %v2180 = vrsqrt.pop %v2178
    %v2181 = vrsqrt.pop %v2179
    %v2182 = vmul.f32 %v2166, %v2180
    %v2183 = vmul.f32 %v2167, %v2181
    %v2185 = vlaneseq
    %v2186 = vshrl.u32 %v2185, 7
    %v2187 = vsub.s32 0, %v2186
    %v2188 = vrot.slane %v2156, %v2187
    %v2190 = vmul.f32 %v2182, %v2188
    %v2191 = vmul.f32 %v2183, %v2188
    %v2193 = vlaneseq
    %v2194 = vshrl.u32 %v2193, 7
    %v2195 = vsub.s32 0, %v2194
    %v2196 = vrot.slane %v2157, %v2195
    %v2198 = vadd.f32 %v2190, %v2196
    %v2199 = vadd.f32 %v2191, %v2196
    %s2200 = scalar_lea.vmem %s1, 32
    %v2201 = vld [vmem:[%s2200] sm:$0xff]
    %v2202 = vld [vmem:[%s2200 + $0x8] sm:$0xff]
    %v2203 = vld [vmem:[%s2200 + $0x10] sm:$0xff]
    %v2204 = vld [vmem:[%s2200 + $0x18] sm:$0xff]
    %s2205 = scalar_lea.vmem %s2, 1
    %v2206 = vld [vmem:[%s2205] sm:$0x1]
    %v2208 = vlaneseq
    %v2209 = vshrl.u32 %v2208, 7
    %v2210 = vsub.s32 0, %v2209
    %v2211 = vrot.slane %v2206, %v2210
    %v2214 = vsel %vm199, %v2198, 0
    %v2217 = vsel %vm199, %v2199, 0
    %v2220 = vsel %vm199, %v2201, 0
    %v2223 = vsel %vm199, %v2202, 0
    %v2226 = vsel %vm199, %v2203, 0
    %v2229 = vsel %vm199, %v2204, 0
    %2231 = vmatprep.subr.mxu0 0.0
    %2232 = vmatpush1.xpose.msra.mxu0 0.0
    %2233 = vmatprep.subr.mxu0 0.0
    %2234 = vmatpush1.xpose.msra.mxu0 0.0
    %2235 = vmatprep.subr.mxu0 0.0
    %2236 = vmatpush1.xpose.msra.mxu0 0.0
    %2237 = vmatprep.subr.mxu0 0.0
    %2238 = vmatpush1.xpose.msra.mxu0 0.0
    %2239 = vmatprep.subr.mxu0 0.0
    %2240 = vmatpush1.xpose.msra.mxu0 0.0
    %2241 = vmatprep.subr.mxu0 0.0
    %2242 = vmatpush1.xpose.msra.mxu0 0.0
    %2243 = vmatprep.subr.mxu0 0.0
    %2244 = vmatpush1.xpose.msra.mxu0 0.0
    %2245 = vmatprep.subr.mxu0 0.0
    %2246 = vmatpush1.xpose.msra.mxu0 0.0
    %2247 = vmatprep.subr.mxu0 0.0
    %2248 = vmatpush1.xpose.msra.mxu0 0.0
    %2249 = vmatprep.subr.mxu0 0.0
    %2250 = vmatpush1.xpose.msra.mxu0 0.0
    %2251 = vmatprep.subr.mxu0 0.0
    %2252 = vmatpush1.xpose.msra.mxu0 0.0
    %2253 = vmatprep.subr.mxu0 0.0
    %2254 = vmatpush1.xpose.msra.mxu0 0.0
    %2255 = vmatprep.subr.mxu0 0.0
    %2256 = vmatpush1.xpose.msra.mxu0 %v2229
    %2257 = vmatprep.subr.mxu0 0.0
    %2258 = vmatpush1.xpose.msra.mxu0 %v2226
    %2259 = vmatprep.subr.mxu0 0.0
    %2260 = vmatpush1.xpose.msra.mxu0 %v2223
    %2261 = vmatprep.subr.mxu0 0.0
    %2262 = vmatpush1.xpose.msra.mxu0 %v2220
    %2263 = vmatprep.subr.mxu0 0.0
    %2264 = vmatpush2.xpose.msra.mxu0 0.0
    %2265 = vmatprep.subr.mxu0 0.0
    %2266 = vmatpush2.xpose.msra.mxu0 0.0
    %2267 = vmatprep.subr.mxu0 0.0
    %2268 = vmatpush2.xpose.msra.mxu0 0.0
    %2269 = vmatprep.subr.mxu0 0.0
    %2270 = vmatpush2.xpose.msra.mxu0 0.0
    %2271 = vmatprep.subr.mxu0 0.0
    %2272 = vmatpush2.xpose.msra.mxu0 0.0
    %2273 = vmatprep.subr.mxu0 0.0
    %2274 = vmatpush2.xpose.msra.mxu0 0.0
    %2275 = vmatprep.subr.mxu0 0.0
    %2276 = vmatpush2.xpose.msra.mxu0 0.0
    %2277 = vmatprep.subr.mxu0 0.0
    %2278 = vmatpush2.xpose.msra.mxu0 0.0
    %2279 = vmatprep.subr.mxu0 0.0
    %2280 = vmatpush2.xpose.msra.mxu0 0.0
    %2281 = vmatprep.subr.mxu0 0.0
    %2282 = vmatpush2.xpose.msra.mxu0 0.0
    %2283 = vmatprep.subr.mxu0 0.0
    %2284 = vmatpush2.xpose.msra.mxu0 0.0
    %2285 = vmatprep.subr.mxu0 0.0
    %2286 = vmatpush2.xpose.msra.mxu0 0.0
    %2287 = vmatprep.subr.mxu0 0.0
    %2288 = vmatpush2.xpose.msra.mxu0 0.0
    %2289 = vmatprep.subr.mxu0 0.0
    %2290 = vmatpush2.xpose.msra.mxu0 0.0
    %2291 = vmatprep.subr.mxu0 0.0
    %2292 = vmatpush2.xpose.msra.mxu0 0.0
    %2293 = vmatprep.subr.mxu0 0.0
    %2294 = vmatpush2.xpose.msra.mxu0 0.0
    %2295 = vmatprep.mubr.f32.mxu0 0.0
    %2296 = vmatmul.mubr.f32.gmra.mxu0 %v2214
    %v2297 = vpop.f32.mrf.mxu0
    %v2298 = vadd.f32 %v2211, %v2297
    %v2299 = vpop.f32.mrf.mxu0
    %2300 = vmatprep.mubr.f32.mxu0 0.0
    %2301 = vmatmul.mubr.f32.gmra.mxu0 %v2217
    %v2302 = vpop.f32.mrf.mxu0
    %v2303 = vadd.f32 %v2211, %v2302
    %v2304 = vpop.f32.mrf.mxu0
    %2305 = vdwg.mxu0
    %s2306 = scalar_lea.vmem %s3, 32
    %v2307 = vld [vmem:[%s2306] sm:$0xff]
    %v2308 = vld [vmem:[%s2306 + $0x8] sm:$0xff]
    %v2309 = vld [vmem:[%s2306 + $0x10] sm:$0xff]
    %v2310 = vld [vmem:[%s2306 + $0x18] sm:$0xff]
    %s2311 = scalar_lea.vmem [#allocation5], 1
    %v2312 = vld [vmem:[%s2311] sm:$0x1]
    %v2314 = vlaneseq
    %v2315 = vshrl.u32 %v2314, 7
    %v2316 = vsub.s32 0, %v2315
    %v2317 = vrot.slane %v2312, %v2316
    %v2320 = vsel %vm199, %v2307, 0
    %v2323 = vsel %vm199, %v2308, 0
    %v2326 = vsel %vm199, %v2309, 0
    %v2329 = vsel %vm199, %v2310, 0
    %2331 = vmatprep.subr.mxu0 0.0
    %2332 = vmatpush1.xpose.msra.mxu0 0.0
    %2333 = vmatprep.subr.mxu0 0.0
    %2334 = vmatpush1.xpose.msra.mxu0 0.0
    %2335 = vmatprep.subr.mxu0 0.0
    %2336 = vmatpush1.xpose.msra.mxu0 0.0
    %2337 = vmatprep.subr.mxu0 0.0
    %2338 = vmatpush1.xpose.msra.mxu0 0.0
    %2339 = vmatprep.subr.mxu0 0.0
    %2340 = vmatpush1.xpose.msra.mxu0 0.0
    %2341 = vmatprep.subr.mxu0 0.0
    %2342 = vmatpush1.xpose.msra.mxu0 0.0
    %2343 = vmatprep.subr.mxu0 0.0
    %2344 = vmatpush1.xpose.msra.mxu0 0.0
    %2345 = vmatprep.subr.mxu0 0.0
    %2346 = vmatpush1.xpose.msra.mxu0 0.0
    %2347 = vmatprep.subr.mxu0 0.0
    %2348 = vmatpush1.xpose.msra.mxu0 0.0
    %2349 = vmatprep.subr.mxu0 0.0
    %2350 = vmatpush1.xpose.msra.mxu0 0.0
    %2351 = vmatprep.subr.mxu0 0.0
    %2352 = vmatpush1.xpose.msra.mxu0 0.0
    %2353 = vmatprep.subr.mxu0 0.0
    %2354 = vmatpush1.xpose.msra.mxu0 0.0
    %2355 = vmatprep.subr.mxu0 0.0
    %2356 = vmatpush1.xpose.msra.mxu0 %v2329
    %2357 = vmatprep.subr.mxu0 0.0
    %2358 = vmatpush1.xpose.msra.mxu0 %v2326
    %2359 = vmatprep.subr.mxu0 0.0
    %2360 = vmatpush1.xpose.msra.mxu0 %v2323
    %2361 = vmatprep.subr.mxu0 0.0
    %2362 = vmatpush1.xpose.msra.mxu0 %v2320
    %2363 = vmatprep.subr.mxu0 0.0
    %2364 = vmatpush2.xpose.msra.mxu0 0.0
    %2365 = vmatprep.subr.mxu0 0.0
    %2366 = vmatpush2.xpose.msra.mxu0 0.0
    %2367 = vmatprep.subr.mxu0 0.0
    %2368 = vmatpush2.xpose.msra.mxu0 0.0
    %2369 = vmatprep.subr.mxu0 0.0
    %2370 = vmatpush2.xpose.msra.mxu0 0.0
    %2371 = vmatprep.subr.mxu0 0.0
    %2372 = vmatpush2.xpose.msra.mxu0 0.0
    %2373 = vmatprep.subr.mxu0 0.0
    %2374 = vmatpush2.xpose.msra.mxu0 0.0
    %2375 = vmatprep.subr.mxu0 0.0
    %2376 = vmatpush2.xpose.msra.mxu0 0.0
    %2377 = vmatprep.subr.mxu0 0.0
    %2378 = vmatpush2.xpose.msra.mxu0 0.0
    %2379 = vmatprep.subr.mxu0 0.0
    %2380 = vmatpush2.xpose.msra.mxu0 0.0
    %2381 = vmatprep.subr.mxu0 0.0
    %2382 = vmatpush2.xpose.msra.mxu0 0.0
    %2383 = vmatprep.subr.mxu0 0.0
    %2384 = vmatpush2.xpose.msra.mxu0 0.0
    %2385 = vmatprep.subr.mxu0 0.0
    %2386 = vmatpush2.xpose.msra.mxu0 0.0
    %2387 = vmatprep.subr.mxu0 0.0
    %2388 = vmatpush2.xpose.msra.mxu0 0.0
    %2389 = vmatprep.subr.mxu0 0.0
    %2390 = vmatpush2.xpose.msra.mxu0 0.0
    %2391 = vmatprep.subr.mxu0 0.0
    %2392 = vmatpush2.xpose.msra.mxu0 0.0
    %2393 = vmatprep.subr.mxu0 0.0
    %2394 = vmatpush2.xpose.msra.mxu0 0.0
    %2395 = vmatprep.mubr.f32.mxu0 0.0
    %2396 = vmatmul.mubr.f32.gmra.mxu0 %v2214
    %v2397 = vpop.f32.mrf.mxu0
    %v2398 = vadd.f32 %v2317, %v2397
    %v2399 = vpop.f32.mrf.mxu0
    %2400 = vmatprep.mubr.f32.mxu0 0.0
    %2401 = vmatmul.mubr.f32.gmra.mxu0 %v2217
    %v2402 = vpop.f32.mrf.mxu0
    %v2403 = vadd.f32 %v2317, %v2402
    %v2404 = vpop.f32.mrf.mxu0
    %2405 = vdwg.mxu0
    %s2406 = scalar_lea.vmem %s5, 32
    %v2407 = vld [vmem:[%s2406] sm:$0xff]
    %v2408 = vld [vmem:[%s2406 + $0x8] sm:$0xff]
    %v2409 = vld [vmem:[%s2406 + $0x10] sm:$0xff]
    %v2410 = vld [vmem:[%s2406 + $0x18] sm:$0xff]
    %s2411 = scalar_lea.vmem [#allocation7], 1
    %v2412 = vld [vmem:[%s2411] sm:$0x1]
    %v2414 = vlaneseq
    %v2415 = vshrl.u32 %v2414, 7
    %v2416 = vsub.s32 0, %v2415
    %v2417 = vrot.slane %v2412, %v2416
    %v2420 = vsel %vm199, %v2407, 0
    %v2423 = vsel %vm199, %v2408, 0
    %v2426 = vsel %vm199, %v2409, 0
    %v2429 = vsel %vm199, %v2410, 0
    %2431 = vmatprep.subr.mxu0 0.0
    %2432 = vmatpush1.xpose.msra.mxu0 0.0
    %2433 = vmatprep.subr.mxu0 0.0
    %2434 = vmatpush1.xpose.msra.mxu0 0.0
    %2435 = vmatprep.subr.mxu0 0.0
    %2436 = vmatpush1.xpose.msra.mxu0 0.0
    %2437 = vmatprep.subr.mxu0 0.0
    %2438 = vmatpush1.xpose.msra.mxu0 0.0
    %2439 = vmatprep.subr.mxu0 0.0
    %2440 = vmatpush1.xpose.msra.mxu0 0.0
    %2441 = vmatprep.subr.mxu0 0.0
    %2442 = vmatpush1.xpose.msra.mxu0 0.0
    %2443 = vmatprep.subr.mxu0 0.0
    %2444 = vmatpush1.xpose.msra.mxu0 0.0
    %2445 = vmatprep.subr.mxu0 0.0
    %2446 = vmatpush1.xpose.msra.mxu0 0.0
    %2447 = vmatprep.subr.mxu0 0.0
    %2448 = vmatpush1.xpose.msra.mxu0 0.0
    %2449 = vmatprep.subr.mxu0 0.0
    %2450 = vmatpush1.xpose.msra.mxu0 0.0
    %2451 = vmatprep.subr.mxu0 0.0
    %2452 = vmatpush1.xpose.msra.mxu0 0.0
    %2453 = vmatprep.subr.mxu0 0.0
    %2454 = vmatpush1.xpose.msra.mxu0 0.0
    %2455 = vmatprep.subr.mxu0 0.0
    %2456 = vmatpush1.xpose.msra.mxu0 %v2429
    %2457 = vmatprep.subr.mxu0 0.0
    %2458 = vmatpush1.xpose.msra.mxu0 %v2426
    %2459 = vmatprep.subr.mxu0 0.0
    %2460 = vmatpush1.xpose.msra.mxu0 %v2423
    %2461 = vmatprep.subr.mxu0 0.0
    %2462 = vmatpush1.xpose.msra.mxu0 %v2420
    %2463 = vmatprep.subr.mxu0 0.0
    %2464 = vmatpush2.xpose.msra.mxu0 0.0
    %2465 = vmatprep.subr.mxu0 0.0
    %2466 = vmatpush2.xpose.msra.mxu0 0.0
    %2467 = vmatprep.subr.mxu0 0.0
    %2468 = vmatpush2.xpose.msra.mxu0 0.0
    %2469 = vmatprep.subr.mxu0 0.0
    %2470 = vmatpush2.xpose.msra.mxu0 0.0
    %2471 = vmatprep.subr.mxu0 0.0
    %2472 = vmatpush2.xpose.msra.mxu0 0.0
    %2473 = vmatprep.subr.mxu0 0.0
    %2474 = vmatpush2.xpose.msra.mxu0 0.0
    %2475 = vmatprep.subr.mxu0 0.0
    %2476 = vmatpush2.xpose.msra.mxu0 0.0
    %2477 = vmatprep.subr.mxu0 0.0
    %2478 = vmatpush2.xpose.msra.mxu0 0.0
    %2479 = vmatprep.subr.mxu0 0.0
    %2480 = vmatpush2.xpose.msra.mxu0 0.0
    %2481 = vmatprep.subr.mxu0 0.0
    %2482 = vmatpush2.xpose.msra.mxu0 0.0
    %2483 = vmatprep.subr.mxu0 0.0
    %2484 = vmatpush2.xpose.msra.mxu0 0.0
    %2485 = vmatprep.subr.mxu0 0.0
    %2486 = vmatpush2.xpose.msra.mxu0 0.0
    %2487 = vmatprep.subr.mxu0 0.0
    %2488 = vmatpush2.xpose.msra.mxu0 0.0
    %2489 = vmatprep.subr.mxu0 0.0
    %2490 = vmatpush2.xpose.msra.mxu0 0.0
    %2491 = vmatprep.subr.mxu0 0.0
    %2492 = vmatpush2.xpose.msra.mxu0 0.0
    %2493 = vmatprep.subr.mxu0 0.0
    %2494 = vmatpush2.xpose.msra.mxu0 0.0
    %2495 = vmatprep.mubr.f32.mxu0 0.0
    %2496 = vmatmul.mubr.f32.gmra.mxu0 %v2214
    %v2497 = vpop.f32.mrf.mxu0
    %v2498 = vadd.f32 %v2417, %v2497
    %v2499 = vpop.f32.mrf.mxu0
    %2500 = vmatprep.mubr.f32.mxu0 0.0
    %2501 = vmatmul.mubr.f32.gmra.mxu0 %v2217
    %v2502 = vpop.f32.mrf.mxu0
    %v2503 = vadd.f32 %v2417, %v2502
    %v2504 = vpop.f32.mrf.mxu0
    %2505 = vdwg.mxu0
    %v2506 = vmul.f32 %v2398, %v172
    %v2507 = vmul.f32 %v2403, %v172
    %v2509 = vsel %vm199, %v2298, 0
    %v2512 = vsel %vm199, %v2506, 0
    %2514 = vmatprep.subr.mxu0 0.0
    %2515 = vmatpush1.xpose.msra.mxu0 0.0
    %2516 = vmatprep.subr.mxu0 0.0
    %2517 = vmatpush1.xpose.msra.mxu0 0.0
    %2518 = vmatprep.subr.mxu0 0.0
    %2519 = vmatpush1.xpose.msra.mxu0 0.0
    %2520 = vmatprep.subr.mxu0 0.0
    %2521 = vmatpush1.xpose.msra.mxu0 0.0
    %2522 = vmatprep.subr.mxu0 0.0
    %2523 = vmatpush1.xpose.msra.mxu0 0.0
    %2524 = vmatprep.subr.mxu0 0.0
    %2525 = vmatpush1.xpose.msra.mxu0 0.0
    %2526 = vmatprep.subr.mxu0 0.0
    %2527 = vmatpush1.xpose.msra.mxu0 0.0
    %2528 = vmatprep.subr.mxu0 0.0
    %2529 = vmatpush1.xpose.msra.mxu0 0.0
    %2530 = vmatprep.subr.mxu0 0.0
    %2531 = vmatpush1.xpose.msra.mxu0 0.0
    %2532 = vmatprep.subr.mxu0 0.0
    %2533 = vmatpush1.xpose.msra.mxu0 0.0
    %2534 = vmatprep.subr.mxu0 0.0
    %2535 = vmatpush1.xpose.msra.mxu0 0.0
    %2536 = vmatprep.subr.mxu0 0.0
    %2537 = vmatpush1.xpose.msra.mxu0 0.0
    %2538 = vmatprep.subr.mxu0 0.0
    %2539 = vmatpush1.xpose.msra.mxu0 0.0
    %2540 = vmatprep.subr.mxu0 0.0
    %2541 = vmatpush1.xpose.msra.mxu0 0.0
    %2542 = vmatprep.subr.mxu0 0.0
    %2543 = vmatpush1.xpose.msra.mxu0 0.0
    %2544 = vmatprep.subr.mxu0 0.0
    %2545 = vmatpush1.xpose.msra.mxu0 %v2512
    %2546 = vmatprep.subr.mxu0 0.0
    %2547 = vmatpush2.xpose.msra.mxu0 0.0
    %2548 = vmatprep.subr.mxu0 0.0
    %2549 = vmatpush2.xpose.msra.mxu0 0.0
    %2550 = vmatprep.subr.mxu0 0.0
    %2551 = vmatpush2.xpose.msra.mxu0 0.0
    %2552 = vmatprep.subr.mxu0 0.0
    %2553 = vmatpush2.xpose.msra.mxu0 0.0
    %2554 = vmatprep.subr.mxu0 0.0
    %2555 = vmatpush2.xpose.msra.mxu0 0.0
    %2556 = vmatprep.subr.mxu0 0.0
    %2557 = vmatpush2.xpose.msra.mxu0 0.0
    %2558 = vmatprep.subr.mxu0 0.0
    %2559 = vmatpush2.xpose.msra.mxu0 0.0
    %2560 = vmatprep.subr.mxu0 0.0
    %2561 = vmatpush2.xpose.msra.mxu0 0.0
    %2562 = vmatprep.subr.mxu0 0.0
    %2563 = vmatpush2.xpose.msra.mxu0 0.0
    %2564 = vmatprep.subr.mxu0 0.0
    %2565 = vmatpush2.xpose.msra.mxu0 0.0
    %2566 = vmatprep.subr.mxu0 0.0
    %2567 = vmatpush2.xpose.msra.mxu0 0.0
    %2568 = vmatprep.subr.mxu0 0.0
    %2569 = vmatpush2.xpose.msra.mxu0 0.0
    %2570 = vmatprep.subr.mxu0 0.0
    %2571 = vmatpush2.xpose.msra.mxu0 0.0
    %2572 = vmatprep.subr.mxu0 0.0
    %2573 = vmatpush2.xpose.msra.mxu0 0.0
    %2574 = vmatprep.subr.mxu0 0.0
    %2575 = vmatpush2.xpose.msra.mxu0 0.0
    %2576 = vmatprep.subr.mxu0 0.0
    %2577 = vmatpush2.xpose.msra.mxu0 0.0
    %2578 = vmatprep.mubr.f32.mxu0 0.0
    %2579 = vmatmul.mubr.f32.gmra.mxu0 %v2509
    %v2580 = vpop.f32.mrf.mxu0
    %v2581 = vadd.f32 0.0, %v2580
    %v2582 = vpop.f32.mrf.mxu0
    %2583 = vdwg.mxu0
    %v2585 = vsel %vm199, %v2303, 0
    %v2588 = vsel %vm199, %v2507, 0
    %2590 = vmatprep.subr.mxu0 0.0
    %2591 = vmatpush1.xpose.msra.mxu0 0.0
    %2592 = vmatprep.subr.mxu0 0.0
    %2593 = vmatpush1.xpose.msra.mxu0 0.0
    %2594 = vmatprep.subr.mxu0 0.0
    %2595 = vmatpush1.xpose.msra.mxu0 0.0
    %2596 = vmatprep.subr.mxu0 0.0
    %2597 = vmatpush1.xpose.msra.mxu0 0.0
    %2598 = vmatprep.subr.mxu0 0.0
    %2599 = vmatpush1.xpose.msra.mxu0 0.0
    %2600 = vmatprep.subr.mxu0 0.0
    %2601 = vmatpush1.xpose.msra.mxu0 0.0
    %2602 = vmatprep.subr.mxu0 0.0
    %2603 = vmatpush1.xpose.msra.mxu0 0.0
    %2604 = vmatprep.subr.mxu0 0.0
    %2605 = vmatpush1.xpose.msra.mxu0 0.0
    %2606 = vmatprep.subr.mxu0 0.0
    %2607 = vmatpush1.xpose.msra.mxu0 0.0
    %2608 = vmatprep.subr.mxu0 0.0
    %2609 = vmatpush1.xpose.msra.mxu0 0.0
    %2610 = vmatprep.subr.mxu0 0.0
    %2611 = vmatpush1.xpose.msra.mxu0 0.0
    %2612 = vmatprep.subr.mxu0 0.0
    %2613 = vmatpush1.xpose.msra.mxu0 0.0
    %2614 = vmatprep.subr.mxu0 0.0
    %2615 = vmatpush1.xpose.msra.mxu0 0.0
    %2616 = vmatprep.subr.mxu0 0.0
    %2617 = vmatpush1.xpose.msra.mxu0 0.0
    %2618 = vmatprep.subr.mxu0 0.0
    %2619 = vmatpush1.xpose.msra.mxu0 0.0
    %2620 = vmatprep.subr.mxu0 0.0
    %2621 = vmatpush1.xpose.msra.mxu0 %v2588
    %2622 = vmatprep.subr.mxu0 0.0
    %2623 = vmatpush2.xpose.msra.mxu0 0.0
    %2624 = vmatprep.subr.mxu0 0.0
    %2625 = vmatpush2.xpose.msra.mxu0 0.0
    %2626 = vmatprep.subr.mxu0 0.0
    %2627 = vmatpush2.xpose.msra.mxu0 0.0
    %2628 = vmatprep.subr.mxu0 0.0
    %2629 = vmatpush2.xpose.msra.mxu0 0.0
    %2630 = vmatprep.subr.mxu0 0.0
    %2631 = vmatpush2.xpose.msra.mxu0 0.0
    %2632 = vmatprep.subr.mxu0 0.0
    %2633 = vmatpush2.xpose.msra.mxu0 0.0
    %2634 = vmatprep.subr.mxu0 0.0
    %2635 = vmatpush2.xpose.msra.mxu0 0.0
    %2636 = vmatprep.subr.mxu0 0.0
    %2637 = vmatpush2.xpose.msra.mxu0 0.0
    %2638 = vmatprep.subr.mxu0 0.0
    %2639 = vmatpush2.xpose.msra.mxu0 0.0
    %2640 = vmatprep.subr.mxu0 0.0
    %2641 = vmatpush2.xpose.msra.mxu0 0.0
    %2642 = vmatprep.subr.mxu0 0.0
    %2643 = vmatpush2.xpose.msra.mxu0 0.0
    %2644 = vmatprep.subr.mxu0 0.0
    %2645 = vmatpush2.xpose.msra.mxu0 0.0
    %2646 = vmatprep.subr.mxu0 0.0
    %2647 = vmatpush2.xpose.msra.mxu0 0.0
    %2648 = vmatprep.subr.mxu0 0.0
    %2649 = vmatpush2.xpose.msra.mxu0 0.0
    %2650 = vmatprep.subr.mxu0 0.0
    %2651 = vmatpush2.xpose.msra.mxu0 0.0
    %2652 = vmatprep.subr.mxu0 0.0
    %2653 = vmatpush2.xpose.msra.mxu0 0.0
    %2654 = vmatprep.mubr.f32.mxu0 0.0
    %2655 = vmatmul.mubr.f32.gmra.mxu0 %v2585
    %v2656 = vpop.f32.mrf.mxu0
    %v2657 = vadd.f32 0.0, %v2656
    %v2658 = vpop.f32.mrf.mxu0
    %2659 = vdwg.mxu0
    %v2660 = vsel %vm643, %v2581, -inf
    %2661 = vmax.xlane.f32.xlu0 %v2660
    %v2662 = vpop.xlane.xlu0 %2661
    %v2663 = vsel %vm643, %v2657, -inf
    %2664 = vmax.xlane.f32.xlu0 %v2663
    %v2665 = vpop.xlane.xlu0 %2664
    %v2666 = vsub.f32 %v2581, %v2662
    %v2667 = vsub.f32 %v2657, %v2665
    %v2668 = vmul.f32 %v2666, 1.442695
    %v2669 = vpow.pop %v2668
    %v2670 = vmul.f32 %v2667, 1.442695
    %v2671 = vpow.pop %v2670
    %v2672 = vsel %vm643, %v2669, 0.0
    %2673 = vadd.xlane.f32.xlu0 %v2672
    %v2674 = vpop.xlane.xlu0 %2673
    %v2675 = vsel %vm643, %v2671, 0.0
    %2676 = vadd.xlane.f32.xlu0 %v2675
    %v2677 = vpop.xlane.xlu0 %2676
    %v2678 = vrcp.pop %v2674
    %v2679 = vrcp.pop %v2677
    %v2680 = vmul.f32 %v2669, %v2678
    %v2681 = vmul.f32 %v2671, %v2679
    %v2683 = vsel %vm643, %v2680, 0
    %2685 = vmatprep.subr.mxu0 0.0
    %2686 = vmatpush1.msra.mxu0 0.0
    %2687 = vmatprep.subr.mxu0 0.0
    %2688 = vmatpush1.msra.mxu0 0.0
    %2689 = vmatprep.subr.mxu0 0.0
    %2690 = vmatpush1.msra.mxu0 0.0
    %2691 = vmatprep.subr.mxu0 0.0
    %2692 = vmatpush1.msra.mxu0 0.0
    %2693 = vmatprep.subr.mxu0 0.0
    %2694 = vmatpush1.msra.mxu0 0.0
    %2695 = vmatprep.subr.mxu0 0.0
    %2696 = vmatpush1.msra.mxu0 0.0
    %2697 = vmatprep.subr.mxu0 0.0
    %2698 = vmatpush1.msra.mxu0 0.0
    %2699 = vmatprep.subr.mxu0 0.0
    %2700 = vmatpush1.msra.mxu0 0.0
    %2701 = vmatprep.subr.mxu0 0.0
    %2702 = vmatpush1.msra.mxu0 0.0
    %2703 = vmatprep.subr.mxu0 0.0
    %2704 = vmatpush1.msra.mxu0 0.0
    %2705 = vmatprep.subr.mxu0 0.0
    %2706 = vmatpush1.msra.mxu0 0.0
    %2707 = vmatprep.subr.mxu0 0.0
    %2708 = vmatpush1.msra.mxu0 0.0
    %2709 = vmatprep.subr.mxu0 0.0
    %2710 = vmatpush1.msra.mxu0 0.0
    %2711 = vmatprep.subr.mxu0 0.0
    %2712 = vmatpush1.msra.mxu0 0.0
    %2713 = vmatprep.subr.mxu0 0.0
    %2714 = vmatpush1.msra.mxu0 0.0
    %2715 = vmatprep.subr.mxu0 0.0
    %2716 = vmatpush1.msra.mxu0 %v2498
    %2717 = vmatprep.subr.mxu0 0.0
    %2718 = vmatpush2.msra.mxu0 0.0
    %2719 = vmatprep.subr.mxu0 0.0
    %2720 = vmatpush2.msra.mxu0 0.0
    %2721 = vmatprep.subr.mxu0 0.0
    %2722 = vmatpush2.msra.mxu0 0.0
    %2723 = vmatprep.subr.mxu0 0.0
    %2724 = vmatpush2.msra.mxu0 0.0
    %2725 = vmatprep.subr.mxu0 0.0
    %2726 = vmatpush2.msra.mxu0 0.0
    %2727 = vmatprep.subr.mxu0 0.0
    %2728 = vmatpush2.msra.mxu0 0.0
    %2729 = vmatprep.subr.mxu0 0.0
    %2730 = vmatpush2.msra.mxu0 0.0
    %2731 = vmatprep.subr.mxu0 0.0
    %2732 = vmatpush2.msra.mxu0 0.0
    %2733 = vmatprep.subr.mxu0 0.0
    %2734 = vmatpush2.msra.mxu0 0.0
    %2735 = vmatprep.subr.mxu0 0.0
    %2736 = vmatpush2.msra.mxu0 0.0
    %2737 = vmatprep.subr.mxu0 0.0
    %2738 = vmatpush2.msra.mxu0 0.0
    %2739 = vmatprep.subr.mxu0 0.0
    %2740 = vmatpush2.msra.mxu0 0.0
    %2741 = vmatprep.subr.mxu0 0.0
    %2742 = vmatpush2.msra.mxu0 0.0
    %2743 = vmatprep.subr.mxu0 0.0
    %2744 = vmatpush2.msra.mxu0 0.0
    %2745 = vmatprep.subr.mxu0 0.0
    %2746 = vmatpush2.msra.mxu0 0.0
    %2747 = vmatprep.subr.mxu0 0.0
    %2748 = vmatpush2.msra.mxu0 0.0
    %2749 = vmatprep.mubr.f32.mxu0 0.0
    %2750 = vmatmul.mubr.f32.gmra.mxu0 %v2683
    %v2751 = vpop.f32.mrf.mxu0
    %v2752 = vadd.f32 0.0, %v2751
    %v2753 = vpop.f32.mrf.mxu0
    %2754 = vdwg.mxu0
    %v2756 = vsel %vm643, %v2681, 0
    %2758 = vmatprep.subr.mxu0 0.0
    %2759 = vmatpush1.msra.mxu0 0.0
    %2760 = vmatprep.subr.mxu0 0.0
    %2761 = vmatpush1.msra.mxu0 0.0
    %2762 = vmatprep.subr.mxu0 0.0
    %2763 = vmatpush1.msra.mxu0 0.0
    %2764 = vmatprep.subr.mxu0 0.0
    %2765 = vmatpush1.msra.mxu0 0.0
    %2766 = vmatprep.subr.mxu0 0.0
    %2767 = vmatpush1.msra.mxu0 0.0
    %2768 = vmatprep.subr.mxu0 0.0
    %2769 = vmatpush1.msra.mxu0 0.0
    %2770 = vmatprep.subr.mxu0 0.0
    %2771 = vmatpush1.msra.mxu0 0.0
    %2772 = vmatprep.subr.mxu0 0.0
    %2773 = vmatpush1.msra.mxu0 0.0
    %2774 = vmatprep.subr.mxu0 0.0
    %2775 = vmatpush1.msra.mxu0 0.0
    %2776 = vmatprep.subr.mxu0 0.0
    %2777 = vmatpush1.msra.mxu0 0.0
    %2778 = vmatprep.subr.mxu0 0.0
    %2779 = vmatpush1.msra.mxu0 0.0
    %2780 = vmatprep.subr.mxu0 0.0
    %2781 = vmatpush1.msra.mxu0 0.0
    %2782 = vmatprep.subr.mxu0 0.0
    %2783 = vmatpush1.msra.mxu0 0.0
    %2784 = vmatprep.subr.mxu0 0.0
    %2785 = vmatpush1.msra.mxu0 0.0
    %2786 = vmatprep.subr.mxu0 0.0
    %2787 = vmatpush1.msra.mxu0 0.0
    %2788 = vmatprep.subr.mxu0 0.0
    %2789 = vmatpush1.msra.mxu0 %v2503
    %2790 = vmatprep.subr.mxu0 0.0
    %2791 = vmatpush2.msra.mxu0 0.0
    %2792 = vmatprep.subr.mxu0 0.0
    %2793 = vmatpush2.msra.mxu0 0.0
    %2794 = vmatprep.subr.mxu0 0.0
    %2795 = vmatpush2.msra.mxu0 0.0
    %2796 = vmatprep.subr.mxu0 0.0
    %2797 = vmatpush2.msra.mxu0 0.0
    %2798 = vmatprep.subr.mxu0 0.0
    %2799 = vmatpush2.msra.mxu0 0.0
    %2800 = vmatprep.subr.mxu0 0.0
    %2801 = vmatpush2.msra.mxu0 0.0
    %2802 = vmatprep.subr.mxu0 0.0
    %2803 = vmatpush2.msra.mxu0 0.0
    %2804 = vmatprep.subr.mxu0 0.0
    %2805 = vmatpush2.msra.mxu0 0.0
    %2806 = vmatprep.subr.mxu0 0.0
    %2807 = vmatpush2.msra.mxu0 0.0
    %2808 = vmatprep.subr.mxu0 0.0
    %2809 = vmatpush2.msra.mxu0 0.0
    %2810 = vmatprep.subr.mxu0 0.0
    %2811 = vmatpush2.msra.mxu0 0.0
    %2812 = vmatprep.subr.mxu0 0.0
    %2813 = vmatpush2.msra.mxu0 0.0
    %2814 = vmatprep.subr.mxu0 0.0
    %2815 = vmatpush2.msra.mxu0 0.0
    %2816 = vmatprep.subr.mxu0 0.0
    %2817 = vmatpush2.msra.mxu0 0.0
    %2818 = vmatprep.subr.mxu0 0.0
    %2819 = vmatpush2.msra.mxu0 0.0
    %2820 = vmatprep.subr.mxu0 0.0
    %2821 = vmatpush2.msra.mxu0 0.0
    %2822 = vmatprep.mubr.f32.mxu0 0.0
    %2823 = vmatmul.mubr.f32.gmra.mxu0 %v2756
    %v2824 = vpop.f32.mrf.mxu0
    %v2825 = vadd.f32 0.0, %v2824
    %v2826 = vpop.f32.mrf.mxu0
    %2827 = vdwg.mxu0
    %v2828 = vmul.f32 %v2752, %v172
    %v2829 = vmul.f32 %v2825, %v172
    %v2830 = vadd.f32 %v2828, 0.0
    %v2831 = vadd.f32 %v2829, 0.0
    %v2832 = vmul.f32 %v2398, %v177
    %v2833 = vmul.f32 %v2403, %v177
    %v2835 = vsel %vm199, %v2832, 0
    %2837 = vmatprep.subr.mxu0 0.0
    %2838 = vmatpush1.xpose.msra.mxu0 0.0
    %2839 = vmatprep.subr.mxu0 0.0
    %2840 = vmatpush1.xpose.msra.mxu0 0.0
    %2841 = vmatprep.subr.mxu0 0.0
    %2842 = vmatpush1.xpose.msra.mxu0 0.0
    %2843 = vmatprep.subr.mxu0 0.0
    %2844 = vmatpush1.xpose.msra.mxu0 0.0
    %2845 = vmatprep.subr.mxu0 0.0
    %2846 = vmatpush1.xpose.msra.mxu0 0.0
    %2847 = vmatprep.subr.mxu0 0.0
    %2848 = vmatpush1.xpose.msra.mxu0 0.0
    %2849 = vmatprep.subr.mxu0 0.0
    %2850 = vmatpush1.xpose.msra.mxu0 0.0
    %2851 = vmatprep.subr.mxu0 0.0
    %2852 = vmatpush1.xpose.msra.mxu0 0.0
    %2853 = vmatprep.subr.mxu0 0.0
    %2854 = vmatpush1.xpose.msra.mxu0 0.0
    %2855 = vmatprep.subr.mxu0 0.0
    %2856 = vmatpush1.xpose.msra.mxu0 0.0
    %2857 = vmatprep.subr.mxu0 0.0
    %2858 = vmatpush1.xpose.msra.mxu0 0.0
    %2859 = vmatprep.subr.mxu0 0.0
    %2860 = vmatpush1.xpose.msra.mxu0 0.0
    %2861 = vmatprep.subr.mxu0 0.0
    %2862 = vmatpush1.xpose.msra.mxu0 0.0
    %2863 = vmatprep.subr.mxu0 0.0
    %2864 = vmatpush1.xpose.msra.mxu0 0.0
    %2865 = vmatprep.subr.mxu0 0.0
    %2866 = vmatpush1.xpose.msra.mxu0 0.0
    %2867 = vmatprep.subr.mxu0 0.0
    %2868 = vmatpush1.xpose.msra.mxu0 %v2835
    %2869 = vmatprep.subr.mxu0 0.0
    %2870 = vmatpush2.xpose.msra.mxu0 0.0
    %2871 = vmatprep.subr.mxu0 0.0
    %2872 = vmatpush2.xpose.msra.mxu0 0.0
    %2873 = vmatprep.subr.mxu0 0.0
    %2874 = vmatpush2.xpose.msra.mxu0 0.0
    %2875 = vmatprep.subr.mxu0 0.0
    %2876 = vmatpush2.xpose.msra.mxu0 0.0
    %2877 = vmatprep.subr.mxu0 0.0
    %2878 = vmatpush2.xpose.msra.mxu0 0.0
    %2879 = vmatprep.subr.mxu0 0.0
    %2880 = vmatpush2.xpose.msra.mxu0 0.0
    %2881 = vmatprep.subr.mxu0 0.0
    %2882 = vmatpush2.xpose.msra.mxu0 0.0
    %2883 = vmatprep.subr.mxu0 0.0
    %2884 = vmatpush2.xpose.msra.mxu0 0.0
    %2885 = vmatprep.subr.mxu0 0.0
    %2886 = vmatpush2.xpose.msra.mxu0 0.0
    %2887 = vmatprep.subr.mxu0 0.0
    %2888 = vmatpush2.xpose.msra.mxu0 0.0
    %2889 = vmatprep.subr.mxu0 0.0
    %2890 = vmatpush2.xpose.msra.mxu0 0.0
    %2891 = vmatprep.subr.mxu0 0.0
    %2892 = vmatpush2.xpose.msra.mxu0 0.0
    %2893 = vmatprep.subr.mxu0 0.0
    %2894 = vmatpush2.xpose.msra.mxu0 0.0
    %2895 = vmatprep.subr.mxu0 0.0
    %2896 = vmatpush2.xpose.msra.mxu0 0.0
    %2897 = vmatprep.subr.mxu0 0.0
    %2898 = vmatpush2.xpose.msra.mxu0 0.0
    %2899 = vmatprep.subr.mxu0 0.0
    %2900 = vmatpush2.xpose.msra.mxu0 0.0
    %2901 = vmatprep.mubr.f32.mxu0 0.0
    %2902 = vmatmul.mubr.f32.gmra.mxu0 %v2509
    %v2903 = vpop.f32.mrf.mxu0
    %v2904 = vadd.f32 0.0, %v2903
    %v2905 = vpop.f32.mrf.mxu0
    %2906 = vdwg.mxu0
    %v2908 = vsel %vm199, %v2833, 0
    %2910 = vmatprep.subr.mxu0 0.0
    %2911 = vmatpush1.xpose.msra.mxu0 0.0
    %2912 = vmatprep.subr.mxu0 0.0
    %2913 = vmatpush1.xpose.msra.mxu0 0.0
    %2914 = vmatprep.subr.mxu0 0.0
    %2915 = vmatpush1.xpose.msra.mxu0 0.0
    %2916 = vmatprep.subr.mxu0 0.0
    %2917 = vmatpush1.xpose.msra.mxu0 0.0
    %2918 = vmatprep.subr.mxu0 0.0
    %2919 = vmatpush1.xpose.msra.mxu0 0.0
    %2920 = vmatprep.subr.mxu0 0.0
    %2921 = vmatpush1.xpose.msra.mxu0 0.0
    %2922 = vmatprep.subr.mxu0 0.0
    %2923 = vmatpush1.xpose.msra.mxu0 0.0
    %2924 = vmatprep.subr.mxu0 0.0
    %2925 = vmatpush1.xpose.msra.mxu0 0.0
    %2926 = vmatprep.subr.mxu0 0.0
    %2927 = vmatpush1.xpose.msra.mxu0 0.0
    %2928 = vmatprep.subr.mxu0 0.0
    %2929 = vmatpush1.xpose.msra.mxu0 0.0
    %2930 = vmatprep.subr.mxu0 0.0
    %2931 = vmatpush1.xpose.msra.mxu0 0.0
    %2932 = vmatprep.subr.mxu0 0.0
    %2933 = vmatpush1.xpose.msra.mxu0 0.0
    %2934 = vmatprep.subr.mxu0 0.0
    %2935 = vmatpush1.xpose.msra.mxu0 0.0
    %2936 = vmatprep.subr.mxu0 0.0
    %2937 = vmatpush1.xpose.msra.mxu0 0.0
    %2938 = vmatprep.subr.mxu0 0.0
    %2939 = vmatpush1.xpose.msra.mxu0 0.0
    %2940 = vmatprep.subr.mxu0 0.0
    %2941 = vmatpush1.xpose.msra.mxu0 %v2908
    %2942 = vmatprep.subr.mxu0 0.0
    %2943 = vmatpush2.xpose.msra.mxu0 0.0
    %2944 = vmatprep.subr.mxu0 0.0
    %2945 = vmatpush2.xpose.msra.mxu0 0.0
    %2946 = vmatprep.subr.mxu0 0.0
    %2947 = vmatpush2.xpose.msra.mxu0 0.0
    %2948 = vmatprep.subr.mxu0 0.0
    %2949 = vmatpush2.xpose.msra.mxu0 0.0
    %2950 = vmatprep.subr.mxu0 0.0
    %2951 = vmatpush2.xpose.msra.mxu0 0.0
    %2952 = vmatprep.subr.mxu0 0.0
    %2953 = vmatpush2.xpose.msra.mxu0 0.0
    %2954 = vmatprep.subr.mxu0 0.0
    %2955 = vmatpush2.xpose.msra.mxu0 0.0
    %2956 = vmatprep.subr.mxu0 0.0
    %2957 = vmatpush2.xpose.msra.mxu0 0.0
    %2958 = vmatprep.subr.mxu0 0.0
    %2959 = vmatpush2.xpose.msra.mxu0 0.0
    %2960 = vmatprep.subr.mxu0 0.0
    %2961 = vmatpush2.xpose.msra.mxu0 0.0
    %2962 = vmatprep.subr.mxu0 0.0
    %2963 = vmatpush2.xpose.msra.mxu0 0.0
    %2964 = vmatprep.subr.mxu0 0.0
    %2965 = vmatpush2.xpose.msra.mxu0 0.0
    %2966 = vmatprep.subr.mxu0 0.0
    %2967 = vmatpush2.xpose.msra.mxu0 0.0
    %2968 = vmatprep.subr.mxu0 0.0
    %2969 = vmatpush2.xpose.msra.mxu0 0.0
    %2970 = vmatprep.subr.mxu0 0.0
    %2971 = vmatpush2.xpose.msra.mxu0 0.0
    %2972 = vmatprep.subr.mxu0 0.0
    %2973 = vmatpush2.xpose.msra.mxu0 0.0
    %2974 = vmatprep.mubr.f32.mxu0 0.0
    %2975 = vmatmul.mubr.f32.gmra.mxu0 %v2585
    %v2976 = vpop.f32.mrf.mxu0
    %v2977 = vadd.f32 0.0, %v2976
    %v2978 = vpop.f32.mrf.mxu0
    %2979 = vdwg.mxu0
    %v2980 = vsel %vm643, %v2904, -inf
    %2981 = vmax.xlane.f32.xlu0 %v2980
    %v2982 = vpop.xlane.xlu0 %2981
    %v2983 = vsel %vm643, %v2977, -inf
    %2984 = vmax.xlane.f32.xlu0 %v2983
    %v2985 = vpop.xlane.xlu0 %2984
    %v2986 = vsub.f32 %v2904, %v2982
    %v2987 = vsub.f32 %v2977, %v2985
    %v2988 = vmul.f32 %v2986, 1.442695
    %v2989 = vpow.pop %v2988
    %v2990 = vmul.f32 %v2987, 1.442695
    %v2991 = vpow.pop %v2990
    %v2992 = vsel %vm643, %v2989, 0.0
    %2993 = vadd.xlane.f32.xlu0 %v2992
    %v2994 = vpop.xlane.xlu0 %2993
    %v2995 = vsel %vm643, %v2991, 0.0
    %2996 = vadd.xlane.f32.xlu0 %v2995
    %v2997 = vpop.xlane.xlu0 %2996
    %v2998 = vrcp.pop %v2994
    %v2999 = vrcp.pop %v2997
    %v3000 = vmul.f32 %v2989, %v2998
    %v3001 = vmul.f32 %v2991, %v2999
    %v3003 = vsel %vm643, %v3000, 0
    %3005 = vmatprep.subr.mxu0 0.0
    %3006 = vmatpush1.msra.mxu0 0.0
    %3007 = vmatprep.subr.mxu0 0.0
    %3008 = vmatpush1.msra.mxu0 0.0
    %3009 = vmatprep.subr.mxu0 0.0
    %3010 = vmatpush1.msra.mxu0 0.0
    %3011 = vmatprep.subr.mxu0 0.0
    %3012 = vmatpush1.msra.mxu0 0.0
    %3013 = vmatprep.subr.mxu0 0.0
    %3014 = vmatpush1.msra.mxu0 0.0
    %3015 = vmatprep.subr.mxu0 0.0
    %3016 = vmatpush1.msra.mxu0 0.0
    %3017 = vmatprep.subr.mxu0 0.0
    %3018 = vmatpush1.msra.mxu0 0.0
    %3019 = vmatprep.subr.mxu0 0.0
    %3020 = vmatpush1.msra.mxu0 0.0
    %3021 = vmatprep.subr.mxu0 0.0
    %3022 = vmatpush1.msra.mxu0 0.0
    %3023 = vmatprep.subr.mxu0 0.0
    %3024 = vmatpush1.msra.mxu0 0.0
    %3025 = vmatprep.subr.mxu0 0.0
    %3026 = vmatpush1.msra.mxu0 0.0
    %3027 = vmatprep.subr.mxu0 0.0
    %3028 = vmatpush1.msra.mxu0 0.0
    %3029 = vmatprep.subr.mxu0 0.0
    %3030 = vmatpush1.msra.mxu0 0.0
    %3031 = vmatprep.subr.mxu0 0.0
    %3032 = vmatpush1.msra.mxu0 0.0
    %3033 = vmatprep.subr.mxu0 0.0
    %3034 = vmatpush1.msra.mxu0 0.0
    %3035 = vmatprep.subr.mxu0 0.0
    %3036 = vmatpush1.msra.mxu0 %v2498
    %3037 = vmatprep.subr.mxu0 0.0
    %3038 = vmatpush2.msra.mxu0 0.0
    %3039 = vmatprep.subr.mxu0 0.0
    %3040 = vmatpush2.msra.mxu0 0.0
    %3041 = vmatprep.subr.mxu0 0.0
    %3042 = vmatpush2.msra.mxu0 0.0
    %3043 = vmatprep.subr.mxu0 0.0
    %3044 = vmatpush2.msra.mxu0 0.0
    %3045 = vmatprep.subr.mxu0 0.0
    %3046 = vmatpush2.msra.mxu0 0.0
    %3047 = vmatprep.subr.mxu0 0.0
    %3048 = vmatpush2.msra.mxu0 0.0
    %3049 = vmatprep.subr.mxu0 0.0
    %3050 = vmatpush2.msra.mxu0 0.0
    %3051 = vmatprep.subr.mxu0 0.0
    %3052 = vmatpush2.msra.mxu0 0.0
    %3053 = vmatprep.subr.mxu0 0.0
    %3054 = vmatpush2.msra.mxu0 0.0
    %3055 = vmatprep.subr.mxu0 0.0
    %3056 = vmatpush2.msra.mxu0 0.0
    %3057 = vmatprep.subr.mxu0 0.0
    %3058 = vmatpush2.msra.mxu0 0.0
    %3059 = vmatprep.subr.mxu0 0.0
    %3060 = vmatpush2.msra.mxu0 0.0
    %3061 = vmatprep.subr.mxu0 0.0
    %3062 = vmatpush2.msra.mxu0 0.0
    %3063 = vmatprep.subr.mxu0 0.0
    %3064 = vmatpush2.msra.mxu0 0.0
    %3065 = vmatprep.subr.mxu0 0.0
    %3066 = vmatpush2.msra.mxu0 0.0
    %3067 = vmatprep.subr.mxu0 0.0
    %3068 = vmatpush2.msra.mxu0 0.0
    %3069 = vmatprep.mubr.f32.mxu0 0.0
    %3070 = vmatmul.mubr.f32.gmra.mxu0 %v3003
    %v3071 = vpop.f32.mrf.mxu0
    %v3072 = vadd.f32 0.0, %v3071
    %v3073 = vpop.f32.mrf.mxu0
    %3074 = vdwg.mxu0
    %v3076 = vsel %vm643, %v3001, 0
    %3078 = vmatprep.subr.mxu0 0.0
    %3079 = vmatpush1.msra.mxu0 0.0
    %3080 = vmatprep.subr.mxu0 0.0
    %3081 = vmatpush1.msra.mxu0 0.0
    %3082 = vmatprep.subr.mxu0 0.0
    %3083 = vmatpush1.msra.mxu0 0.0
    %3084 = vmatprep.subr.mxu0 0.0
    %3085 = vmatpush1.msra.mxu0 0.0
    %3086 = vmatprep.subr.mxu0 0.0
    %3087 = vmatpush1.msra.mxu0 0.0
    %3088 = vmatprep.subr.mxu0 0.0
    %3089 = vmatpush1.msra.mxu0 0.0
    %3090 = vmatprep.subr.mxu0 0.0
    %3091 = vmatpush1.msra.mxu0 0.0
    %3092 = vmatprep.subr.mxu0 0.0
    %3093 = vmatpush1.msra.mxu0 0.0
    %3094 = vmatprep.subr.mxu0 0.0
    %3095 = vmatpush1.msra.mxu0 0.0
    %3096 = vmatprep.subr.mxu0 0.0
    %3097 = vmatpush1.msra.mxu0 0.0
    %3098 = vmatprep.subr.mxu0 0.0
    %3099 = vmatpush1.msra.mxu0 0.0
    %3100 = vmatprep.subr.mxu0 0.0
    %3101 = vmatpush1.msra.mxu0 0.0
    %3102 = vmatprep.subr.mxu0 0.0
    %3103 = vmatpush1.msra.mxu0 0.0
    %3104 = vmatprep.subr.mxu0 0.0
    %3105 = vmatpush1.msra.mxu0 0.0
    %3106 = vmatprep.subr.mxu0 0.0
    %3107 = vmatpush1.msra.mxu0 0.0
    %3108 = vmatprep.subr.mxu0 0.0
    %3109 = vmatpush1.msra.mxu0 %v2503
    %3110 = vmatprep.subr.mxu0 0.0
    %3111 = vmatpush2.msra.mxu0 0.0
    %3112 = vmatprep.subr.mxu0 0.0
    %3113 = vmatpush2.msra.mxu0 0.0
    %3114 = vmatprep.subr.mxu0 0.0
    %3115 = vmatpush2.msra.mxu0 0.0
    %3116 = vmatprep.subr.mxu0 0.0
    %3117 = vmatpush2.msra.mxu0 0.0
    %3118 = vmatprep.subr.mxu0 0.0
    %3119 = vmatpush2.msra.mxu0 0.0
    %3120 = vmatprep.subr.mxu0 0.0
    %3121 = vmatpush2.msra.mxu0 0.0
    %3122 = vmatprep.subr.mxu0 0.0
    %3123 = vmatpush2.msra.mxu0 0.0
    %3124 = vmatprep.subr.mxu0 0.0
    %3125 = vmatpush2.msra.mxu0 0.0
    %3126 = vmatprep.subr.mxu0 0.0
    %3127 = vmatpush2.msra.mxu0 0.0
    %3128 = vmatprep.subr.mxu0 0.0
    %3129 = vmatpush2.msra.mxu0 0.0
    %3130 = vmatprep.subr.mxu0 0.0
    %3131 = vmatpush2.msra.mxu0 0.0
    %3132 = vmatprep.subr.mxu0 0.0
    %3133 = vmatpush2.msra.mxu0 0.0
    %3134 = vmatprep.subr.mxu0 0.0
    %3135 = vmatpush2.msra.mxu0 0.0
    %3136 = vmatprep.subr.mxu0 0.0
    %3137 = vmatpush2.msra.mxu0 0.0
    %3138 = vmatprep.subr.mxu0 0.0
    %3139 = vmatpush2.msra.mxu0 0.0
    %3140 = vmatprep.subr.mxu0 0.0
    %3141 = vmatpush2.msra.mxu0 0.0
    %3142 = vmatprep.mubr.f32.mxu0 0.0
    %3143 = vmatmul.mubr.f32.gmra.mxu0 %v3076
    %v3144 = vpop.f32.mrf.mxu0
    %v3145 = vadd.f32 0.0, %v3144
    %v3146 = vpop.f32.mrf.mxu0
    %3147 = vdwg.mxu0
    %v3148 = vmul.f32 %v3072, %v177
    %v3149 = vmul.f32 %v3145, %v177
    %v3150 = vadd.f32 %v2830, %v3148
    %v3151 = vadd.f32 %v2831, %v3149
    %v3152 = vmul.f32 %v2398, %v182
    %v3153 = vmul.f32 %v2403, %v182
    %v3155 = vsel %vm199, %v3152, 0
    %3157 = vmatprep.subr.mxu0 0.0
    %3158 = vmatpush1.xpose.msra.mxu0 0.0
    %3159 = vmatprep.subr.mxu0 0.0
    %3160 = vmatpush1.xpose.msra.mxu0 0.0
    %3161 = vmatprep.subr.mxu0 0.0
    %3162 = vmatpush1.xpose.msra.mxu0 0.0
    %3163 = vmatprep.subr.mxu0 0.0
    %3164 = vmatpush1.xpose.msra.mxu0 0.0
    %3165 = vmatprep.subr.mxu0 0.0
    %3166 = vmatpush1.xpose.msra.mxu0 0.0
    %3167 = vmatprep.subr.mxu0 0.0
    %3168 = vmatpush1.xpose.msra.mxu0 0.0
    %3169 = vmatprep.subr.mxu0 0.0
    %3170 = vmatpush1.xpose.msra.mxu0 0.0
    %3171 = vmatprep.subr.mxu0 0.0
    %3172 = vmatpush1.xpose.msra.mxu0 0.0
    %3173 = vmatprep.subr.mxu0 0.0
    %3174 = vmatpush1.xpose.msra.mxu0 0.0
    %3175 = vmatprep.subr.mxu0 0.0
    %3176 = vmatpush1.xpose.msra.mxu0 0.0
    %3177 = vmatprep.subr.mxu0 0.0
    %3178 = vmatpush1.xpose.msra.mxu0 0.0
    %3179 = vmatprep.subr.mxu0 0.0
    %3180 = vmatpush1.xpose.msra.mxu0 0.0
    %3181 = vmatprep.subr.mxu0 0.0
    %3182 = vmatpush1.xpose.msra.mxu0 0.0
    %3183 = vmatprep.subr.mxu0 0.0
    %3184 = vmatpush1.xpose.msra.mxu0 0.0
    %3185 = vmatprep.subr.mxu0 0.0
    %3186 = vmatpush1.xpose.msra.mxu0 0.0
    %3187 = vmatprep.subr.mxu0 0.0
    %3188 = vmatpush1.xpose.msra.mxu0 %v3155
    %3189 = vmatprep.subr.mxu0 0.0
    %3190 = vmatpush2.xpose.msra.mxu0 0.0
    %3191 = vmatprep.subr.mxu0 0.0
    %3192 = vmatpush2.xpose.msra.mxu0 0.0
    %3193 = vmatprep.subr.mxu0 0.0
    %3194 = vmatpush2.xpose.msra.mxu0 0.0
    %3195 = vmatprep.subr.mxu0 0.0
    %3196 = vmatpush2.xpose.msra.mxu0 0.0
    %3197 = vmatprep.subr.mxu0 0.0
    %3198 = vmatpush2.xpose.msra.mxu0 0.0
    %3199 = vmatprep.subr.mxu0 0.0
    %3200 = vmatpush2.xpose.msra.mxu0 0.0
    %3201 = vmatprep.subr.mxu0 0.0
    %3202 = vmatpush2.xpose.msra.mxu0 0.0
    %3203 = vmatprep.subr.mxu0 0.0
    %3204 = vmatpush2.xpose.msra.mxu0 0.0
    %3205 = vmatprep.subr.mxu0 0.0
    %3206 = vmatpush2.xpose.msra.mxu0 0.0
    %3207 = vmatprep.subr.mxu0 0.0
    %3208 = vmatpush2.xpose.msra.mxu0 0.0
    %3209 = vmatprep.subr.mxu0 0.0
    %3210 = vmatpush2.xpose.msra.mxu0 0.0
    %3211 = vmatprep.subr.mxu0 0.0
    %3212 = vmatpush2.xpose.msra.mxu0 0.0
    %3213 = vmatprep.subr.mxu0 0.0
    %3214 = vmatpush2.xpose.msra.mxu0 0.0
    %3215 = vmatprep.subr.mxu0 0.0
    %3216 = vmatpush2.xpose.msra.mxu0 0.0
    %3217 = vmatprep.subr.mxu0 0.0
    %3218 = vmatpush2.xpose.msra.mxu0 0.0
    %3219 = vmatprep.subr.mxu0 0.0
    %3220 = vmatpush2.xpose.msra.mxu0 0.0
    %3221 = vmatprep.mubr.f32.mxu0 0.0
    %3222 = vmatmul.mubr.f32.gmra.mxu0 %v2509
    %v3223 = vpop.f32.mrf.mxu0
    %v3224 = vadd.f32 0.0, %v3223
    %v3225 = vpop.f32.mrf.mxu0
    %3226 = vdwg.mxu0
    %v3228 = vsel %vm199, %v3153, 0
    %3230 = vmatprep.subr.mxu0 0.0
    %3231 = vmatpush1.xpose.msra.mxu0 0.0
    %3232 = vmatprep.subr.mxu0 0.0
    %3233 = vmatpush1.xpose.msra.mxu0 0.0
    %3234 = vmatprep.subr.mxu0 0.0
    %3235 = vmatpush1.xpose.msra.mxu0 0.0
    %3236 = vmatprep.subr.mxu0 0.0
    %3237 = vmatpush1.xpose.msra.mxu0 0.0
    %3238 = vmatprep.subr.mxu0 0.0
    %3239 = vmatpush1.xpose.msra.mxu0 0.0
    %3240 = vmatprep.subr.mxu0 0.0
    %3241 = vmatpush1.xpose.msra.mxu0 0.0
    %3242 = vmatprep.subr.mxu0 0.0
    %3243 = vmatpush1.xpose.msra.mxu0 0.0
    %3244 = vmatprep.subr.mxu0 0.0
    %3245 = vmatpush1.xpose.msra.mxu0 0.0
    %3246 = vmatprep.subr.mxu0 0.0
    %3247 = vmatpush1.xpose.msra.mxu0 0.0
    %3248 = vmatprep.subr.mxu0 0.0
    %3249 = vmatpush1.xpose.msra.mxu0 0.0
    %3250 = vmatprep.subr.mxu0 0.0
    %3251 = vmatpush1.xpose.msra.mxu0 0.0
    %3252 = vmatprep.subr.mxu0 0.0
    %3253 = vmatpush1.xpose.msra.mxu0 0.0
    %3254 = vmatprep.subr.mxu0 0.0
    %3255 = vmatpush1.xpose.msra.mxu0 0.0
    %3256 = vmatprep.subr.mxu0 0.0
    %3257 = vmatpush1.xpose.msra.mxu0 0.0
    %3258 = vmatprep.subr.mxu0 0.0
    %3259 = vmatpush1.xpose.msra.mxu0 0.0
    %3260 = vmatprep.subr.mxu0 0.0
    %3261 = vmatpush1.xpose.msra.mxu0 %v3228
    %3262 = vmatprep.subr.mxu0 0.0
    %3263 = vmatpush2.xpose.msra.mxu0 0.0
    %3264 = vmatprep.subr.mxu0 0.0
    %3265 = vmatpush2.xpose.msra.mxu0 0.0
    %3266 = vmatprep.subr.mxu0 0.0
    %3267 = vmatpush2.xpose.msra.mxu0 0.0
    %3268 = vmatprep.subr.mxu0 0.0
    %3269 = vmatpush2.xpose.msra.mxu0 0.0
    %3270 = vmatprep.subr.mxu0 0.0
    %3271 = vmatpush2.xpose.msra.mxu0 0.0
    %3272 = vmatprep.subr.mxu0 0.0
    %3273 = vmatpush2.xpose.msra.mxu0 0.0
    %3274 = vmatprep.subr.mxu0 0.0
    %3275 = vmatpush2.xpose.msra.mxu0 0.0
    %3276 = vmatprep.subr.mxu0 0.0
    %3277 = vmatpush2.xpose.msra.mxu0 0.0
    %3278 = vmatprep.subr.mxu0 0.0
    %3279 = vmatpush2.xpose.msra.mxu0 0.0
    %3280 = vmatprep.subr.mxu0 0.0
    %3281 = vmatpush2.xpose.msra.mxu0 0.0
    %3282 = vmatprep.subr.mxu0 0.0
    %3283 = vmatpush2.xpose.msra.mxu0 0.0
    %3284 = vmatprep.subr.mxu0 0.0
    %3285 = vmatpush2.xpose.msra.mxu0 0.0
    %3286 = vmatprep.subr.mxu0 0.0
    %3287 = vmatpush2.xpose.msra.mxu0 0.0
    %3288 = vmatprep.subr.mxu0 0.0
    %3289 = vmatpush2.xpose.msra.mxu0 0.0
    %3290 = vmatprep.subr.mxu0 0.0
    %3291 = vmatpush2.xpose.msra.mxu0 0.0
    %3292 = vmatprep.subr.mxu0 0.0
    %3293 = vmatpush2.xpose.msra.mxu0 0.0
    %3294 = vmatprep.mubr.f32.mxu0 0.0
    %3295 = vmatmul.mubr.f32.gmra.mxu0 %v2585
    %v3296 = vpop.f32.mrf.mxu0
    %v3297 = vadd.f32 0.0, %v3296
    %v3298 = vpop.f32.mrf.mxu0
    %3299 = vdwg.mxu0
    %v3300 = vsel %vm643, %v3224, -inf
    %3301 = vmax.xlane.f32.xlu0 %v3300
    %v3302 = vpop.xlane.xlu0 %3301
    %v3303 = vsel %vm643, %v3297, -inf
    %3304 = vmax.xlane.f32.xlu0 %v3303
    %v3305 = vpop.xlane.xlu0 %3304
    %v3306 = vsub.f32 %v3224, %v3302
    %v3307 = vsub.f32 %v3297, %v3305
    %v3308 = vmul.f32 %v3306, 1.442695
    %v3309 = vpow.pop %v3308
    %v3310 = vmul.f32 %v3307, 1.442695
    %v3311 = vpow.pop %v3310
    %v3312 = vsel %vm643, %v3309, 0.0
    %3313 = vadd.xlane.f32.xlu0 %v3312
    %v3314 = vpop.xlane.xlu0 %3313
    %v3315 = vsel %vm643, %v3311, 0.0
    %3316 = vadd.xlane.f32.xlu0 %v3315
    %v3317 = vpop.xlane.xlu0 %3316
    %v3318 = vrcp.pop %v3314
    %v3319 = vrcp.pop %v3317
    %v3320 = vmul.f32 %v3309, %v3318
    %v3321 = vmul.f32 %v3311, %v3319
    %v3323 = vsel %vm643, %v3320, 0
    %3325 = vmatprep.subr.mxu0 0.0
    %3326 = vmatpush1.msra.mxu0 0.0
    %3327 = vmatprep.subr.mxu0 0.0
    %3328 = vmatpush1.msra.mxu0 0.0
    %3329 = vmatprep.subr.mxu0 0.0
    %3330 = vmatpush1.msra.mxu0 0.0
    %3331 = vmatprep.subr.mxu0 0.0
    %3332 = vmatpush1.msra.mxu0 0.0
    %3333 = vmatprep.subr.mxu0 0.0
    %3334 = vmatpush1.msra.mxu0 0.0
    %3335 = vmatprep.subr.mxu0 0.0
    %3336 = vmatpush1.msra.mxu0 0.0
    %3337 = vmatprep.subr.mxu0 0.0
    %3338 = vmatpush1.msra.mxu0 0.0
    %3339 = vmatprep.subr.mxu0 0.0
    %3340 = vmatpush1.msra.mxu0 0.0
    %3341 = vmatprep.subr.mxu0 0.0
    %3342 = vmatpush1.msra.mxu0 0.0
    %3343 = vmatprep.subr.mxu0 0.0
    %3344 = vmatpush1.msra.mxu0 0.0
    %3345 = vmatprep.subr.mxu0 0.0
    %3346 = vmatpush1.msra.mxu0 0.0
    %3347 = vmatprep.subr.mxu0 0.0
    %3348 = vmatpush1.msra.mxu0 0.0
    %3349 = vmatprep.subr.mxu0 0.0
    %3350 = vmatpush1.msra.mxu0 0.0
    %3351 = vmatprep.subr.mxu0 0.0
    %3352 = vmatpush1.msra.mxu0 0.0
    %3353 = vmatprep.subr.mxu0 0.0
    %3354 = vmatpush1.msra.mxu0 0.0
    %3355 = vmatprep.subr.mxu0 0.0
    %3356 = vmatpush1.msra.mxu0 %v2498
    %3357 = vmatprep.subr.mxu0 0.0
    %3358 = vmatpush2.msra.mxu0 0.0
    %3359 = vmatprep.subr.mxu0 0.0
    %3360 = vmatpush2.msra.mxu0 0.0
    %3361 = vmatprep.subr.mxu0 0.0
    %3362 = vmatpush2.msra.mxu0 0.0
    %3363 = vmatprep.subr.mxu0 0.0
    %3364 = vmatpush2.msra.mxu0 0.0
    %3365 = vmatprep.subr.mxu0 0.0
    %3366 = vmatpush2.msra.mxu0 0.0
    %3367 = vmatprep.subr.mxu0 0.0
    %3368 = vmatpush2.msra.mxu0 0.0
    %3369 = vmatprep.subr.mxu0 0.0
    %3370 = vmatpush2.msra.mxu0 0.0
    %3371 = vmatprep.subr.mxu0 0.0
    %3372 = vmatpush2.msra.mxu0 0.0
    %3373 = vmatprep.subr.mxu0 0.0
    %3374 = vmatpush2.msra.mxu0 0.0
    %3375 = vmatprep.subr.mxu0 0.0
    %3376 = vmatpush2.msra.mxu0 0.0
    %3377 = vmatprep.subr.mxu0 0.0
    %3378 = vmatpush2.msra.mxu0 0.0
    %3379 = vmatprep.subr.mxu0 0.0
    %3380 = vmatpush2.msra.mxu0 0.0
    %3381 = vmatprep.subr.mxu0 0.0
    %3382 = vmatpush2.msra.mxu0 0.0
    %3383 = vmatprep.subr.mxu0 0.0
    %3384 = vmatpush2.msra.mxu0 0.0
    %3385 = vmatprep.subr.mxu0 0.0
    %3386 = vmatpush2.msra.mxu0 0.0
    %3387 = vmatprep.subr.mxu0 0.0
    %3388 = vmatpush2.msra.mxu0 0.0
    %3389 = vmatprep.mubr.f32.mxu0 0.0
    %3390 = vmatmul.mubr.f32.gmra.mxu0 %v3323
    %v3391 = vpop.f32.mrf.mxu0
    %v3392 = vadd.f32 0.0, %v3391
    %v3393 = vpop.f32.mrf.mxu0
    %3394 = vdwg.mxu0
    %v3396 = vsel %vm643, %v3321, 0
    %3398 = vmatprep.subr.mxu0 0.0
    %3399 = vmatpush1.msra.mxu0 0.0
    %3400 = vmatprep.subr.mxu0 0.0
    %3401 = vmatpush1.msra.mxu0 0.0
    %3402 = vmatprep.subr.mxu0 0.0
    %3403 = vmatpush1.msra.mxu0 0.0
    %3404 = vmatprep.subr.mxu0 0.0
    %3405 = vmatpush1.msra.mxu0 0.0
    %3406 = vmatprep.subr.mxu0 0.0
    %3407 = vmatpush1.msra.mxu0 0.0
    %3408 = vmatprep.subr.mxu0 0.0
    %3409 = vmatpush1.msra.mxu0 0.0
    %3410 = vmatprep.subr.mxu0 0.0
    %3411 = vmatpush1.msra.mxu0 0.0
    %3412 = vmatprep.subr.mxu0 0.0
    %3413 = vmatpush1.msra.mxu0 0.0
    %3414 = vmatprep.subr.mxu0 0.0
    %3415 = vmatpush1.msra.mxu0 0.0
    %3416 = vmatprep.subr.mxu0 0.0
    %3417 = vmatpush1.msra.mxu0 0.0
    %3418 = vmatprep.subr.mxu0 0.0
    %3419 = vmatpush1.msra.mxu0 0.0
    %3420 = vmatprep.subr.mxu0 0.0
    %3421 = vmatpush1.msra.mxu0 0.0
    %3422 = vmatprep.subr.mxu0 0.0
    %3423 = vmatpush1.msra.mxu0 0.0
    %3424 = vmatprep.subr.mxu0 0.0
    %3425 = vmatpush1.msra.mxu0 0.0
    %3426 = vmatprep.subr.mxu0 0.0
    %3427 = vmatpush1.msra.mxu0 0.0
    %3428 = vmatprep.subr.mxu0 0.0
    %3429 = vmatpush1.msra.mxu0 %v2503
    %3430 = vmatprep.subr.mxu0 0.0
    %3431 = vmatpush2.msra.mxu0 0.0
    %3432 = vmatprep.subr.mxu0 0.0
    %3433 = vmatpush2.msra.mxu0 0.0
    %3434 = vmatprep.subr.mxu0 0.0
    %3435 = vmatpush2.msra.mxu0 0.0
    %3436 = vmatprep.subr.mxu0 0.0
    %3437 = vmatpush2.msra.mxu0 0.0
    %3438 = vmatprep.subr.mxu0 0.0
    %3439 = vmatpush2.msra.mxu0 0.0
    %3440 = vmatprep.subr.mxu0 0.0
    %3441 = vmatpush2.msra.mxu0 0.0
    %3442 = vmatprep.subr.mxu0 0.0
    %3443 = vmatpush2.msra.mxu0 0.0
    %3444 = vmatprep.subr.mxu0 0.0
    %3445 = vmatpush2.msra.mxu0 0.0
    %3446 = vmatprep.subr.mxu0 0.0
    %3447 = vmatpush2.msra.mxu0 0.0
    %3448 = vmatprep.subr.mxu0 0.0
    %3449 = vmatpush2.msra.mxu0 0.0
    %3450 = vmatprep.subr.mxu0 0.0
    %3451 = vmatpush2.msra.mxu0 0.0
    %3452 = vmatprep.subr.mxu0 0.0
    %3453 = vmatpush2.msra.mxu0 0.0
    %3454 = vmatprep.subr.mxu0 0.0
    %3455 = vmatpush2.msra.mxu0 0.0
    %3456 = vmatprep.subr.mxu0 0.0
    %3457 = vmatpush2.msra.mxu0 0.0
    %3458 = vmatprep.subr.mxu0 0.0
    %3459 = vmatpush2.msra.mxu0 0.0
    %3460 = vmatprep.subr.mxu0 0.0
    %3461 = vmatpush2.msra.mxu0 0.0
    %3462 = vmatprep.mubr.f32.mxu0 0.0
    %3463 = vmatmul.mubr.f32.gmra.mxu0 %v3396
    %v3464 = vpop.f32.mrf.mxu0
    %v3465 = vadd.f32 0.0, %v3464
    %v3466 = vpop.f32.mrf.mxu0
    %3467 = vdwg.mxu0
    %v3468 = vmul.f32 %v3392, %v182
    %v3469 = vmul.f32 %v3465, %v182
    %v3470 = vadd.f32 %v3150, %v3468
    %v3471 = vadd.f32 %v3151, %v3469
    %v3472 = vmul.f32 %v2398, %v187
    %v3473 = vmul.f32 %v2403, %v187
    %v3475 = vsel %vm199, %v3472, 0
    %3477 = vmatprep.subr.mxu0 0.0
    %3478 = vmatpush1.xpose.msra.mxu0 0.0
    %3479 = vmatprep.subr.mxu0 0.0
    %3480 = vmatpush1.xpose.msra.mxu0 0.0
    %3481 = vmatprep.subr.mxu0 0.0
    %3482 = vmatpush1.xpose.msra.mxu0 0.0
    %3483 = vmatprep.subr.mxu0 0.0
    %3484 = vmatpush1.xpose.msra.mxu0 0.0
    %3485 = vmatprep.subr.mxu0 0.0
    %3486 = vmatpush1.xpose.msra.mxu0 0.0
    %3487 = vmatprep.subr.mxu0 0.0
    %3488 = vmatpush1.xpose.msra.mxu0 0.0
    %3489 = vmatprep.subr.mxu0 0.0
    %3490 = vmatpush1.xpose.msra.mxu0 0.0
    %3491 = vmatprep.subr.mxu0 0.0
    %3492 = vmatpush1.xpose.msra.mxu0 0.0
    %3493 = vmatprep.subr.mxu0 0.0
    %3494 = vmatpush1.xpose.msra.mxu0 0.0
    %3495 = vmatprep.subr.mxu0 0.0
    %3496 = vmatpush1.xpose.msra.mxu0 0.0
    %3497 = vmatprep.subr.mxu0 0.0
    %3498 = vmatpush1.xpose.msra.mxu0 0.0
    %3499 = vmatprep.subr.mxu0 0.0
    %3500 = vmatpush1.xpose.msra.mxu0 0.0
    %3501 = vmatprep.subr.mxu0 0.0
    %3502 = vmatpush1.xpose.msra.mxu0 0.0
    %3503 = vmatprep.subr.mxu0 0.0
    %3504 = vmatpush1.xpose.msra.mxu0 0.0
    %3505 = vmatprep.subr.mxu0 0.0
    %3506 = vmatpush1.xpose.msra.mxu0 0.0
    %3507 = vmatprep.subr.mxu0 0.0
    %3508 = vmatpush1.xpose.msra.mxu0 %v3475
    %3509 = vmatprep.subr.mxu0 0.0
    %3510 = vmatpush2.xpose.msra.mxu0 0.0
    %3511 = vmatprep.subr.mxu0 0.0
    %3512 = vmatpush2.xpose.msra.mxu0 0.0
    %3513 = vmatprep.subr.mxu0 0.0
    %3514 = vmatpush2.xpose.msra.mxu0 0.0
    %3515 = vmatprep.subr.mxu0 0.0
    %3516 = vmatpush2.xpose.msra.mxu0 0.0
    %3517 = vmatprep.subr.mxu0 0.0
    %3518 = vmatpush2.xpose.msra.mxu0 0.0
    %3519 = vmatprep.subr.mxu0 0.0
    %3520 = vmatpush2.xpose.msra.mxu0 0.0
    %3521 = vmatprep.subr.mxu0 0.0
    %3522 = vmatpush2.xpose.msra.mxu0 0.0
    %3523 = vmatprep.subr.mxu0 0.0
    %3524 = vmatpush2.xpose.msra.mxu0 0.0
    %3525 = vmatprep.subr.mxu0 0.0
    %3526 = vmatpush2.xpose.msra.mxu0 0.0
    %3527 = vmatprep.subr.mxu0 0.0
    %3528 = vmatpush2.xpose.msra.mxu0 0.0
    %3529 = vmatprep.subr.mxu0 0.0
    %3530 = vmatpush2.xpose.msra.mxu0 0.0
    %3531 = vmatprep.subr.mxu0 0.0
    %3532 = vmatpush2.xpose.msra.mxu0 0.0
    %3533 = vmatprep.subr.mxu0 0.0
    %3534 = vmatpush2.xpose.msra.mxu0 0.0
    %3535 = vmatprep.subr.mxu0 0.0
    %3536 = vmatpush2.xpose.msra.mxu0 0.0
    %3537 = vmatprep.subr.mxu0 0.0
    %3538 = vmatpush2.xpose.msra.mxu0 0.0
    %3539 = vmatprep.subr.mxu0 0.0
    %3540 = vmatpush2.xpose.msra.mxu0 0.0
    %3541 = vmatprep.mubr.f32.mxu0 0.0
    %3542 = vmatmul.mubr.f32.gmra.mxu0 %v2509
    %v3543 = vpop.f32.mrf.mxu0
    %v3544 = vadd.f32 0.0, %v3543
    %v3545 = vpop.f32.mrf.mxu0
    %3546 = vdwg.mxu0
    %v3548 = vsel %vm199, %v3473, 0
    %3550 = vmatprep.subr.mxu0 0.0
    %3551 = vmatpush1.xpose.msra.mxu0 0.0
    %3552 = vmatprep.subr.mxu0 0.0
    %3553 = vmatpush1.xpose.msra.mxu0 0.0
    %3554 = vmatprep.subr.mxu0 0.0
    %3555 = vmatpush1.xpose.msra.mxu0 0.0
    %3556 = vmatprep.subr.mxu0 0.0
    %3557 = vmatpush1.xpose.msra.mxu0 0.0
    %3558 = vmatprep.subr.mxu0 0.0
    %3559 = vmatpush1.xpose.msra.mxu0 0.0
    %3560 = vmatprep.subr.mxu0 0.0
    %3561 = vmatpush1.xpose.msra.mxu0 0.0
    %3562 = vmatprep.subr.mxu0 0.0
    %3563 = vmatpush1.xpose.msra.mxu0 0.0
    %3564 = vmatprep.subr.mxu0 0.0
    %3565 = vmatpush1.xpose.msra.mxu0 0.0
    %3566 = vmatprep.subr.mxu0 0.0
    %3567 = vmatpush1.xpose.msra.mxu0 0.0
    %3568 = vmatprep.subr.mxu0 0.0
    %3569 = vmatpush1.xpose.msra.mxu0 0.0
    %3570 = vmatprep.subr.mxu0 0.0
    %3571 = vmatpush1.xpose.msra.mxu0 0.0
    %3572 = vmatprep.subr.mxu0 0.0
    %3573 = vmatpush1.xpose.msra.mxu0 0.0
    %3574 = vmatprep.subr.mxu0 0.0
    %3575 = vmatpush1.xpose.msra.mxu0 0.0
    %3576 = vmatprep.subr.mxu0 0.0
    %3577 = vmatpush1.xpose.msra.mxu0 0.0
    %3578 = vmatprep.subr.mxu0 0.0
    %3579 = vmatpush1.xpose.msra.mxu0 0.0
    %3580 = vmatprep.subr.mxu0 0.0
    %3581 = vmatpush1.xpose.msra.mxu0 %v3548
    %3582 = vmatprep.subr.mxu0 0.0
    %3583 = vmatpush2.xpose.msra.mxu0 0.0
    %3584 = vmatprep.subr.mxu0 0.0
    %3585 = vmatpush2.xpose.msra.mxu0 0.0
    %3586 = vmatprep.subr.mxu0 0.0
    %3587 = vmatpush2.xpose.msra.mxu0 0.0
    %3588 = vmatprep.subr.mxu0 0.0
    %3589 = vmatpush2.xpose.msra.mxu0 0.0
    %3590 = vmatprep.subr.mxu0 0.0
    %3591 = vmatpush2.xpose.msra.mxu0 0.0
    %3592 = vmatprep.subr.mxu0 0.0
    %3593 = vmatpush2.xpose.msra.mxu0 0.0
    %3594 = vmatprep.subr.mxu0 0.0
    %3595 = vmatpush2.xpose.msra.mxu0 0.0
    %3596 = vmatprep.subr.mxu0 0.0
    %3597 = vmatpush2.xpose.msra.mxu0 0.0
    %3598 = vmatprep.subr.mxu0 0.0
    %3599 = vmatpush2.xpose.msra.mxu0 0.0
    %3600 = vmatprep.subr.mxu0 0.0
    %3601 = vmatpush2.xpose.msra.mxu0 0.0
    %3602 = vmatprep.subr.mxu0 0.0
    %3603 = vmatpush2.xpose.msra.mxu0 0.0
    %3604 = vmatprep.subr.mxu0 0.0
    %3605 = vmatpush2.xpose.msra.mxu0 0.0
    %3606 = vmatprep.subr.mxu0 0.0
    %3607 = vmatpush2.xpose.msra.mxu0 0.0
    %3608 = vmatprep.subr.mxu0 0.0
    %3609 = vmatpush2.xpose.msra.mxu0 0.0
    %3610 = vmatprep.subr.mxu0 0.0
    %3611 = vmatpush2.xpose.msra.mxu0 0.0
    %3612 = vmatprep.subr.mxu0 0.0
    %3613 = vmatpush2.xpose.msra.mxu0 0.0
    %3614 = vmatprep.mubr.f32.mxu0 0.0
    %3615 = vmatmul.mubr.f32.gmra.mxu0 %v2585
    %v3616 = vpop.f32.mrf.mxu0
    %v3617 = vadd.f32 0.0, %v3616
    %v3618 = vpop.f32.mrf.mxu0
    %3619 = vdwg.mxu0
    %v3620 = vsel %vm643, %v3544, -inf
    %3621 = vmax.xlane.f32.xlu0 %v3620
    %v3622 = vpop.xlane.xlu0 %3621
    %v3623 = vsel %vm643, %v3617, -inf
    %3624 = vmax.xlane.f32.xlu0 %v3623
    %v3625 = vpop.xlane.xlu0 %3624
    %v3626 = vsub.f32 %v3544, %v3622
    %v3627 = vsub.f32 %v3617, %v3625
    %v3628 = vmul.f32 %v3626, 1.442695
    %v3629 = vpow.pop %v3628
    %v3630 = vmul.f32 %v3627, 1.442695
    %v3631 = vpow.pop %v3630
    %v3632 = vsel %vm643, %v3629, 0.0
    %3633 = vadd.xlane.f32.xlu0 %v3632
    %v3634 = vpop.xlane.xlu0 %3633
    %v3635 = vsel %vm643, %v3631, 0.0
    %3636 = vadd.xlane.f32.xlu0 %v3635
    %v3637 = vpop.xlane.xlu0 %3636
    %v3638 = vrcp.pop %v3634
    %v3639 = vrcp.pop %v3637
    %v3640 = vmul.f32 %v3629, %v3638
    %v3641 = vmul.f32 %v3631, %v3639
    %v3643 = vsel %vm643, %v3640, 0
    %3645 = vmatprep.subr.mxu0 0.0
    %3646 = vmatpush1.msra.mxu0 0.0
    %3647 = vmatprep.subr.mxu0 0.0
    %3648 = vmatpush1.msra.mxu0 0.0
    %3649 = vmatprep.subr.mxu0 0.0
    %3650 = vmatpush1.msra.mxu0 0.0
    %3651 = vmatprep.subr.mxu0 0.0
    %3652 = vmatpush1.msra.mxu0 0.0
    %3653 = vmatprep.subr.mxu0 0.0
    %3654 = vmatpush1.msra.mxu0 0.0
    %3655 = vmatprep.subr.mxu0 0.0
    %3656 = vmatpush1.msra.mxu0 0.0
    %3657 = vmatprep.subr.mxu0 0.0
    %3658 = vmatpush1.msra.mxu0 0.0
    %3659 = vmatprep.subr.mxu0 0.0
    %3660 = vmatpush1.msra.mxu0 0.0
    %3661 = vmatprep.subr.mxu0 0.0
    %3662 = vmatpush1.msra.mxu0 0.0
    %3663 = vmatprep.subr.mxu0 0.0
    %3664 = vmatpush1.msra.mxu0 0.0
    %3665 = vmatprep.subr.mxu0 0.0
    %3666 = vmatpush1.msra.mxu0 0.0
    %3667 = vmatprep.subr.mxu0 0.0
    %3668 = vmatpush1.msra.mxu0 0.0
    %3669 = vmatprep.subr.mxu0 0.0
    %3670 = vmatpush1.msra.mxu0 0.0
    %3671 = vmatprep.subr.mxu0 0.0
    %3672 = vmatpush1.msra.mxu0 0.0
    %3673 = vmatprep.subr.mxu0 0.0
    %3674 = vmatpush1.msra.mxu0 0.0
    %3675 = vmatprep.subr.mxu0 0.0
    %3676 = vmatpush1.msra.mxu0 %v2498
    %3677 = vmatprep.subr.mxu0 0.0
    %3678 = vmatpush2.msra.mxu0 0.0
    %3679 = vmatprep.subr.mxu0 0.0
    %3680 = vmatpush2.msra.mxu0 0.0
    %3681 = vmatprep.subr.mxu0 0.0
    %3682 = vmatpush2.msra.mxu0 0.0
    %3683 = vmatprep.subr.mxu0 0.0
    %3684 = vmatpush2.msra.mxu0 0.0
    %3685 = vmatprep.subr.mxu0 0.0
    %3686 = vmatpush2.msra.mxu0 0.0
    %3687 = vmatprep.subr.mxu0 0.0
    %3688 = vmatpush2.msra.mxu0 0.0
    %3689 = vmatprep.subr.mxu0 0.0
    %3690 = vmatpush2.msra.mxu0 0.0
    %3691 = vmatprep.subr.mxu0 0.0
    %3692 = vmatpush2.msra.mxu0 0.0
    %3693 = vmatprep.subr.mxu0 0.0
    %3694 = vmatpush2.msra.mxu0 0.0
    %3695 = vmatprep.subr.mxu0 0.0
    %3696 = vmatpush2.msra.mxu0 0.0
    %3697 = vmatprep.subr.mxu0 0.0
    %3698 = vmatpush2.msra.mxu0 0.0
    %3699 = vmatprep.subr.mxu0 0.0
    %3700 = vmatpush2.msra.mxu0 0.0
    %3701 = vmatprep.subr.mxu0 0.0
    %3702 = vmatpush2.msra.mxu0 0.0
    %3703 = vmatprep.subr.mxu0 0.0
    %3704 = vmatpush2.msra.mxu0 0.0
    %3705 = vmatprep.subr.mxu0 0.0
    %3706 = vmatpush2.msra.mxu0 0.0
    %3707 = vmatprep.subr.mxu0 0.0
    %3708 = vmatpush2.msra.mxu0 0.0
    %3709 = vmatprep.mubr.f32.mxu0 0.0
    %3710 = vmatmul.mubr.f32.gmra.mxu0 %v3643
    %v3711 = vpop.f32.mrf.mxu0
    %v3712 = vadd.f32 0.0, %v3711
    %v3713 = vpop.f32.mrf.mxu0
    %3714 = vdwg.mxu0
    %v3716 = vsel %vm643, %v3641, 0
    %3718 = vmatprep.subr.mxu0 0.0
    %3719 = vmatpush1.msra.mxu0 0.0
    %3720 = vmatprep.subr.mxu0 0.0
    %3721 = vmatpush1.msra.mxu0 0.0
    %3722 = vmatprep.subr.mxu0 0.0
    %3723 = vmatpush1.msra.mxu0 0.0
    %3724 = vmatprep.subr.mxu0 0.0
    %3725 = vmatpush1.msra.mxu0 0.0
    %3726 = vmatprep.subr.mxu0 0.0
    %3727 = vmatpush1.msra.mxu0 0.0
    %3728 = vmatprep.subr.mxu0 0.0
    %3729 = vmatpush1.msra.mxu0 0.0
    %3730 = vmatprep.subr.mxu0 0.0
    %3731 = vmatpush1.msra.mxu0 0.0
    %3732 = vmatprep.subr.mxu0 0.0
    %3733 = vmatpush1.msra.mxu0 0.0
    %3734 = vmatprep.subr.mxu0 0.0
    %3735 = vmatpush1.msra.mxu0 0.0
    %3736 = vmatprep.subr.mxu0 0.0
    %3737 = vmatpush1.msra.mxu0 0.0
    %3738 = vmatprep.subr.mxu0 0.0
    %3739 = vmatpush1.msra.mxu0 0.0
    %3740 = vmatprep.subr.mxu0 0.0
    %3741 = vmatpush1.msra.mxu0 0.0
    %3742 = vmatprep.subr.mxu0 0.0
    %3743 = vmatpush1.msra.mxu0 0.0
    %3744 = vmatprep.subr.mxu0 0.0
    %3745 = vmatpush1.msra.mxu0 0.0
    %3746 = vmatprep.subr.mxu0 0.0
    %3747 = vmatpush1.msra.mxu0 0.0
    %3748 = vmatprep.subr.mxu0 0.0
    %3749 = vmatpush1.msra.mxu0 %v2503
    %3750 = vmatprep.subr.mxu0 0.0
    %3751 = vmatpush2.msra.mxu0 0.0
    %3752 = vmatprep.subr.mxu0 0.0
    %3753 = vmatpush2.msra.mxu0 0.0
    %3754 = vmatprep.subr.mxu0 0.0
    %3755 = vmatpush2.msra.mxu0 0.0
    %3756 = vmatprep.subr.mxu0 0.0
    %3757 = vmatpush2.msra.mxu0 0.0
    %3758 = vmatprep.subr.mxu0 0.0
    %3759 = vmatpush2.msra.mxu0 0.0
    %3760 = vmatprep.subr.mxu0 0.0
    %3761 = vmatpush2.msra.mxu0 0.0
    %3762 = vmatprep.subr.mxu0 0.0
    %3763 = vmatpush2.msra.mxu0 0.0
    %3764 = vmatprep.subr.mxu0 0.0
    %3765 = vmatpush2.msra.mxu0 0.0
    %3766 = vmatprep.subr.mxu0 0.0
    %3767 = vmatpush2.msra.mxu0 0.0
    %3768 = vmatprep.subr.mxu0 0.0
    %3769 = vmatpush2.msra.mxu0 0.0
    %3770 = vmatprep.subr.mxu0 0.0
    %3771 = vmatpush2.msra.mxu0 0.0
    %3772 = vmatprep.subr.mxu0 0.0
    %3773 = vmatpush2.msra.mxu0 0.0
    %3774 = vmatprep.subr.mxu0 0.0
    %3775 = vmatpush2.msra.mxu0 0.0
    %3776 = vmatprep.subr.mxu0 0.0
    %3777 = vmatpush2.msra.mxu0 0.0
    %3778 = vmatprep.subr.mxu0 0.0
    %3779 = vmatpush2.msra.mxu0 0.0
    %3780 = vmatprep.subr.mxu0 0.0
    %3781 = vmatpush2.msra.mxu0 0.0
    %3782 = vmatprep.mubr.f32.mxu0 0.0
    %3783 = vmatmul.mubr.f32.gmra.mxu0 %v3716
    %v3784 = vpop.f32.mrf.mxu0
    %v3785 = vadd.f32 0.0, %v3784
    %v3786 = vpop.f32.mrf.mxu0
    %3787 = vdwg.mxu0
    %v3788 = vmul.f32 %v3712, %v187
    %v3789 = vmul.f32 %v3785, %v187
    %v3790 = vadd.f32 %v3470, %v3788
    %v3791 = vadd.f32 %v3471, %v3789
    %s3792 = scalar_lea.vmem [#allocation8], 32
    %v3793 = vld [vmem:[%s3792] sm:$0xff]
    %v3794 = vld [vmem:[%s3792 + $0x8] sm:$0xff]
    %v3795 = vld [vmem:[%s3792 + $0x10] sm:$0xff]
    %v3796 = vld [vmem:[%s3792 + $0x18] sm:$0xff]
    %s3797 = scalar_lea.vmem [#allocation10], 1
    %v3798 = vld [vmem:[%s3797] sm:$0x1]
    %v3800 = vlaneseq
    %v3801 = vshrl.u32 %v3800, 7
    %v3802 = vsub.s32 0, %v3801
    %v3803 = vrot.slane %v3798, %v3802
    %v3806 = vsel %vm199, %v3790, 0
    %v3809 = vsel %vm199, %v3791, 0
    %v3812 = vsel %vm199, %v3793, 0
    %v3815 = vsel %vm199, %v3794, 0
    %v3818 = vsel %vm199, %v3795, 0
    %v3821 = vsel %vm199, %v3796, 0
    %3823 = vmatprep.subr.mxu0 0.0
    %3824 = vmatpush1.xpose.msra.mxu0 0.0
    %3825 = vmatprep.subr.mxu0 0.0
    %3826 = vmatpush1.xpose.msra.mxu0 0.0
    %3827 = vmatprep.subr.mxu0 0.0
    %3828 = vmatpush1.xpose.msra.mxu0 0.0
    %3829 = vmatprep.subr.mxu0 0.0
    %3830 = vmatpush1.xpose.msra.mxu0 0.0
    %3831 = vmatprep.subr.mxu0 0.0
    %3832 = vmatpush1.xpose.msra.mxu0 0.0
    %3833 = vmatprep.subr.mxu0 0.0
    %3834 = vmatpush1.xpose.msra.mxu0 0.0
    %3835 = vmatprep.subr.mxu0 0.0
    %3836 = vmatpush1.xpose.msra.mxu0 0.0
    %3837 = vmatprep.subr.mxu0 0.0
    %3838 = vmatpush1.xpose.msra.mxu0 0.0
    %3839 = vmatprep.subr.mxu0 0.0
    %3840 = vmatpush1.xpose.msra.mxu0 0.0
    %3841 = vmatprep.subr.mxu0 0.0
    %3842 = vmatpush1.xpose.msra.mxu0 0.0
    %3843 = vmatprep.subr.mxu0 0.0
    %3844 = vmatpush1.xpose.msra.mxu0 0.0
    %3845 = vmatprep.subr.mxu0 0.0
    %3846 = vmatpush1.xpose.msra.mxu0 0.0
    %3847 = vmatprep.subr.mxu0 0.0
    %3848 = vmatpush1.xpose.msra.mxu0 %v3821
    %3849 = vmatprep.subr.mxu0 0.0
    %3850 = vmatpush1.xpose.msra.mxu0 %v3818
    %3851 = vmatprep.subr.mxu0 0.0
    %3852 = vmatpush1.xpose.msra.mxu0 %v3815
    %3853 = vmatprep.subr.mxu0 0.0
    %3854 = vmatpush1.xpose.msra.mxu0 %v3812
    %3855 = vmatprep.subr.mxu0 0.0
    %3856 = vmatpush2.xpose.msra.mxu0 0.0
    %3857 = vmatprep.subr.mxu0 0.0
    %3858 = vmatpush2.xpose.msra.mxu0 0.0
    %3859 = vmatprep.subr.mxu0 0.0
    %3860 = vmatpush2.xpose.msra.mxu0 0.0
    %3861 = vmatprep.subr.mxu0 0.0
    %3862 = vmatpush2.xpose.msra.mxu0 0.0
    %3863 = vmatprep.subr.mxu0 0.0
    %3864 = vmatpush2.xpose.msra.mxu0 0.0
    %3865 = vmatprep.subr.mxu0 0.0
    %3866 = vmatpush2.xpose.msra.mxu0 0.0
    %3867 = vmatprep.subr.mxu0 0.0
    %3868 = vmatpush2.xpose.msra.mxu0 0.0
    %3869 = vmatprep.subr.mxu0 0.0
    %3870 = vmatpush2.xpose.msra.mxu0 0.0
    %3871 = vmatprep.subr.mxu0 0.0
    %3872 = vmatpush2.xpose.msra.mxu0 0.0
    %3873 = vmatprep.subr.mxu0 0.0
    %3874 = vmatpush2.xpose.msra.mxu0 0.0
    %3875 = vmatprep.subr.mxu0 0.0
    %3876 = vmatpush2.xpose.msra.mxu0 0.0
    %3877 = vmatprep.subr.mxu0 0.0
    %3878 = vmatpush2.xpose.msra.mxu0 0.0
    %3879 = vmatprep.subr.mxu0 0.0
    %3880 = vmatpush2.xpose.msra.mxu0 0.0
    %3881 = vmatprep.subr.mxu0 0.0
    %3882 = vmatpush2.xpose.msra.mxu0 0.0
    %3883 = vmatprep.subr.mxu0 0.0
    %3884 = vmatpush2.xpose.msra.mxu0 0.0
    %3885 = vmatprep.subr.mxu0 0.0
    %3886 = vmatpush2.xpose.msra.mxu0 0.0
    %3887 = vmatprep.mubr.f32.mxu0 0.0
    %3888 = vmatmul.mubr.f32.gmra.mxu0 %v3806
    %v3889 = vpop.f32.mrf.mxu0
    %v3890 = vadd.f32 %v3803, %v3889
    %v3891 = vpop.f32.mrf.mxu0
    %3892 = vmatprep.mubr.f32.mxu0 0.0
    %3893 = vmatmul.mubr.f32.gmra.mxu0 %v3809
    %v3894 = vpop.f32.mrf.mxu0
    %v3895 = vadd.f32 %v3803, %v3894
    %v3896 = vpop.f32.mrf.mxu0
    %3897 = vdwg.mxu0
    %v3898 = vadd.f32 %v2198, %v3890
    %v3899 = vadd.f32 %v2199, %v3895
    %s3900 = scalar_lea.vmem [#allocation11], 1
    %v3901 = vld [vmem:[%s3900] sm:$0x1]
    %s3902 = scalar_lea.vmem %s10, 1
    %v3903 = vld [vmem:[%s3902] sm:$0x1]
    %v3904 = vsel %vm199, %v3898, 0.0
    %3905 = vadd.xlane.f32.xlu0 %v3904
    %v3906 = vpop.xlane.xlu0 %3905
    %v3907 = vsel %vm199, %v3899, 0.0
    %3908 = vadd.xlane.f32.xlu0 %v3907
    %v3909 = vpop.xlane.xlu0 %3908
    %v3910 = vmul.f32 %v3906, %v1890
    %v3911 = vmul.f32 %v3909, %v1890
    %v3912 = vsub.f32 %v3898, %v3910
    %v3913 = vsub.f32 %v3899, %v3911
    %v3914 = vmul.f32 %v3912, %v3912
    %v3915 = vmul.f32 %v3913, %v3913
    %v3916 = vsel %vm199, %v3914, 0.0
    %3917 = vadd.xlane.f32.xlu0 %v3916
    %v3918 = vpop.xlane.xlu0 %3917
    %v3919 = vsel %vm199, %v3915, 0.0
    %3920 = vadd.xlane.f32.xlu0 %v3919
    %v3921 = vpop.xlane.xlu0 %3920
    %v3922 = vmul.f32 %v3918, %v1890
    %v3923 = vmul.f32 %v3921, %v1890
    %v3924 = vadd.f32 %v3922, 1e-05
    %v3925 = vadd.f32 %v3923, 1e-05
    %v3926 = vrsqrt.pop %v3924
    %v3927 = vrsqrt.pop %v3925
    %v3928 = vmul.f32 %v3912, %v3926
    %v3929 = vmul.f32 %v3913, %v3927
    %v3931 = vlaneseq
    %v3932 = vshrl.u32 %v3931, 7
    %v3933 = vsub.s32 0, %v3932
    %v3934 = vrot.slane %v3901, %v3933
    %v3936 = vmul.f32 %v3928, %v3934
    %v3937 = vmul.f32 %v3929, %v3934
    %v3939 = vlaneseq
    %v3940 = vshrl.u32 %v3939, 7
    %v3941 = vsub.s32 0, %v3940
    %v3942 = vrot.slane %v3903, %v3941
    %v3944 = vadd.f32 %v3936, %v3942
    %v3945 = vadd.f32 %v3937, %v3942
    %s3946 = scalar_lea.vmem %s13, 64
    %v3947 = vld [vmem:[%s3946] sm:$0xff]
    %v3948 = vld [vmem:[%s3946 + $0x8] sm:$0xff]
    %v3949 = vld [vmem:[%s3946 + $0x10] sm:$0xff]
    %v3950 = vld [vmem:[%s3946 + $0x18] sm:$0xff]
    %v3951 = vld [vmem:[%s3946 + $0x20] sm:$0xff]
    %v3952 = vld [vmem:[%s3946 + $0x28] sm:$0xff]
    %v3953 = vld [vmem:[%s3946 + $0x30] sm:$0xff]
    %v3954 = vld [vmem:[%s3946 + $0x38] sm:$0xff]
    %s3955 = scalar_lea.vmem %s14, 1
    %v3956 = vld [vmem:[%s3955] sm:$0x1]
    %v3958 = vlaneseq
    %v3959 = vshrl.u32 %v3958, 7
    %v3960 = vsub.s32 0, %v3959
    %v3961 = vrot.slane %v3956, %v3960
    %v3964 = vsel %vm199, %v3944, 0
    %v3967 = vsel %vm199, %v3945, 0
    %v3970 = vsel %vm199, %v3947, 0
    %v3973 = vsel %vm199, %v3948, 0
    %v3976 = vsel %vm199, %v3949, 0
    %v3979 = vsel %vm199, %v3950, 0
    %v3982 = vsel %vm199, %v3951, 0
    %v3985 = vsel %vm199, %v3952, 0
    %v3988 = vsel %vm199, %v3953, 0
    %v3991 = vsel %vm199, %v3954, 0
    %3993 = vmatprep.subr.mxu0 0.0
    %3994 = vmatpush1.xpose.msra.mxu0 0.0
    %3995 = vmatprep.subr.mxu0 0.0
    %3996 = vmatpush1.xpose.msra.mxu0 0.0
    %3997 = vmatprep.subr.mxu0 0.0
    %3998 = vmatpush1.xpose.msra.mxu0 0.0
    %3999 = vmatprep.subr.mxu0 0.0
    %4000 = vmatpush1.xpose.msra.mxu0 0.0
    %4001 = vmatprep.subr.mxu0 0.0
    %4002 = vmatpush1.xpose.msra.mxu0 0.0
    %4003 = vmatprep.subr.mxu0 0.0
    %4004 = vmatpush1.xpose.msra.mxu0 0.0
    %4005 = vmatprep.subr.mxu0 0.0
    %4006 = vmatpush1.xpose.msra.mxu0 0.0
    %4007 = vmatprep.subr.mxu0 0.0
    %4008 = vmatpush1.xpose.msra.mxu0 0.0
    %4009 = vmatprep.subr.mxu0 0.0
    %4010 = vmatpush1.xpose.msra.mxu0 %v3991
    %4011 = vmatprep.subr.mxu0 0.0
    %4012 = vmatpush1.xpose.msra.mxu0 %v3988
    %4013 = vmatprep.subr.mxu0 0.0
    %4014 = vmatpush1.xpose.msra.mxu0 %v3985
    %4015 = vmatprep.subr.mxu0 0.0
    %4016 = vmatpush1.xpose.msra.mxu0 %v3982
    %4017 = vmatprep.subr.mxu0 0.0
    %4018 = vmatpush1.xpose.msra.mxu0 %v3979
    %4019 = vmatprep.subr.mxu0 0.0
    %4020 = vmatpush1.xpose.msra.mxu0 %v3976
    %4021 = vmatprep.subr.mxu0 0.0
    %4022 = vmatpush1.xpose.msra.mxu0 %v3973
    %4023 = vmatprep.subr.mxu0 0.0
    %4024 = vmatpush1.xpose.msra.mxu0 %v3970
    %4025 = vmatprep.subr.mxu0 0.0
    %4026 = vmatpush2.xpose.msra.mxu0 0.0
    %4027 = vmatprep.subr.mxu0 0.0
    %4028 = vmatpush2.xpose.msra.mxu0 0.0
    %4029 = vmatprep.subr.mxu0 0.0
    %4030 = vmatpush2.xpose.msra.mxu0 0.0
    %4031 = vmatprep.subr.mxu0 0.0
    %4032 = vmatpush2.xpose.msra.mxu0 0.0
    %4033 = vmatprep.subr.mxu0 0.0
    %4034 = vmatpush2.xpose.msra.mxu0 0.0
    %4035 = vmatprep.subr.mxu0 0.0
    %4036 = vmatpush2.xpose.msra.mxu0 0.0
    %4037 = vmatprep.subr.mxu0 0.0
    %4038 = vmatpush2.xpose.msra.mxu0 0.0
    %4039 = vmatprep.subr.mxu0 0.0
    %4040 = vmatpush2.xpose.msra.mxu0 0.0
    %4041 = vmatprep.subr.mxu0 0.0
    %4042 = vmatpush2.xpose.msra.mxu0 0.0
    %4043 = vmatprep.subr.mxu0 0.0
    %4044 = vmatpush2.xpose.msra.mxu0 0.0
    %4045 = vmatprep.subr.mxu0 0.0
    %4046 = vmatpush2.xpose.msra.mxu0 0.0
    %4047 = vmatprep.subr.mxu0 0.0
    %4048 = vmatpush2.xpose.msra.mxu0 0.0
    %4049 = vmatprep.subr.mxu0 0.0
    %4050 = vmatpush2.xpose.msra.mxu0 0.0
    %4051 = vmatprep.subr.mxu0 0.0
    %4052 = vmatpush2.xpose.msra.mxu0 0.0
    %4053 = vmatprep.subr.mxu0 0.0
    %4054 = vmatpush2.xpose.msra.mxu0 0.0
    %4055 = vmatprep.subr.mxu0 0.0
    %4056 = vmatpush2.xpose.msra.mxu0 0.0
    %4057 = vmatprep.mubr.f32.mxu0 0.0
    %4058 = vmatmul.mubr.f32.gmra.mxu0 %v3964
    %v4059 = vpop.f32.mrf.mxu0
    %v4060 = vadd.f32 %v3961, %v4059
    %v4061 = vpop.f32.mrf.mxu0
    %4062 = vmatprep.mubr.f32.mxu0 0.0
    %4063 = vmatmul.mubr.f32.gmra.mxu0 %v3967
    %v4064 = vpop.f32.mrf.mxu0
    %v4065 = vadd.f32 %v3961, %v4064
    %v4066 = vpop.f32.mrf.mxu0
    %4067 = vdwg.mxu0
    %v4068 = vmax.f32 %v4060, 0.0
    %v4069 = vmax.f32 %v4065, 0.0
    %s4070 = scalar_lea.vmem [#allocation13], 32
    %v4071 = vld [vmem:[%s4070] sm:$0xff]
    %v4072 = vld [vmem:[%s4070 + $0x8] sm:$0xff]
    %v4073 = vld [vmem:[%s4070 + $0x10] sm:$0xff]
    %v4074 = vld [vmem:[%s4070 + $0x18] sm:$0xff]
    %s4075 = scalar_lea.vmem %s16, 1
    %v4076 = vld [vmem:[%s4075] sm:$0x1]
    %v4078 = vlaneseq
    %v4079 = vshrl.u32 %v4078, 7
    %v4080 = vsub.s32 0, %v4079
    %v4081 = vrot.slane %v4076, %v4080
    %v4084 = vsel %vm2060, %v4068, 0
    %v4087 = vsel %vm2060, %v4069, 0
    %v4090 = vsel %vm2060, %v4071, 0
    %v4093 = vsel %vm2060, %v4072, 0
    %v4096 = vsel %vm2060, %v4073, 0
    %v4099 = vsel %vm2060, %v4074, 0
    %4101 = vmatprep.subr.mxu0 0.0
    %4102 = vmatpush1.xpose.msra.mxu0 0.0
    %4103 = vmatprep.subr.mxu0 0.0
    %4104 = vmatpush1.xpose.msra.mxu0 0.0
    %4105 = vmatprep.subr.mxu0 0.0
    %4106 = vmatpush1.xpose.msra.mxu0 0.0
    %4107 = vmatprep.subr.mxu0 0.0
    %4108 = vmatpush1.xpose.msra.mxu0 0.0
    %4109 = vmatprep.subr.mxu0 0.0
    %4110 = vmatpush1.xpose.msra.mxu0 0.0
    %4111 = vmatprep.subr.mxu0 0.0
    %4112 = vmatpush1.xpose.msra.mxu0 0.0
    %4113 = vmatprep.subr.mxu0 0.0
    %4114 = vmatpush1.xpose.msra.mxu0 0.0
    %4115 = vmatprep.subr.mxu0 0.0
    %4116 = vmatpush1.xpose.msra.mxu0 0.0
    %4117 = vmatprep.subr.mxu0 0.0
    %4118 = vmatpush1.xpose.msra.mxu0 0.0
    %4119 = vmatprep.subr.mxu0 0.0
    %4120 = vmatpush1.xpose.msra.mxu0 0.0
    %4121 = vmatprep.subr.mxu0 0.0
    %4122 = vmatpush1.xpose.msra.mxu0 0.0
    %4123 = vmatprep.subr.mxu0 0.0
    %4124 = vmatpush1.xpose.msra.mxu0 0.0
    %4125 = vmatprep.subr.mxu0 0.0
    %4126 = vmatpush1.xpose.msra.mxu0 %v4099
    %4127 = vmatprep.subr.mxu0 0.0
    %4128 = vmatpush1.xpose.msra.mxu0 %v4096
    %4129 = vmatprep.subr.mxu0 0.0
    %4130 = vmatpush1.xpose.msra.mxu0 %v4093
    %4131 = vmatprep.subr.mxu0 0.0
    %4132 = vmatpush1.xpose.msra.mxu0 %v4090
    %4133 = vmatprep.subr.mxu0 0.0
    %4134 = vmatpush2.xpose.msra.mxu0 0.0
    %4135 = vmatprep.subr.mxu0 0.0
    %4136 = vmatpush2.xpose.msra.mxu0 0.0
    %4137 = vmatprep.subr.mxu0 0.0
    %4138 = vmatpush2.xpose.msra.mxu0 0.0
    %4139 = vmatprep.subr.mxu0 0.0
    %4140 = vmatpush2.xpose.msra.mxu0 0.0
    %4141 = vmatprep.subr.mxu0 0.0
    %4142 = vmatpush2.xpose.msra.mxu0 0.0
    %4143 = vmatprep.subr.mxu0 0.0
    %4144 = vmatpush2.xpose.msra.mxu0 0.0
    %4145 = vmatprep.subr.mxu0 0.0
    %4146 = vmatpush2.xpose.msra.mxu0 0.0
    %4147 = vmatprep.subr.mxu0 0.0
    %4148 = vmatpush2.xpose.msra.mxu0 0.0
    %4149 = vmatprep.subr.mxu0 0.0
    %4150 = vmatpush2.xpose.msra.mxu0 0.0
    %4151 = vmatprep.subr.mxu0 0.0
    %4152 = vmatpush2.xpose.msra.mxu0 0.0
    %4153 = vmatprep.subr.mxu0 0.0
    %4154 = vmatpush2.xpose.msra.mxu0 0.0
    %4155 = vmatprep.subr.mxu0 0.0
    %4156 = vmatpush2.xpose.msra.mxu0 0.0
    %4157 = vmatprep.subr.mxu0 0.0
    %4158 = vmatpush2.xpose.msra.mxu0 0.0
    %4159 = vmatprep.subr.mxu0 0.0
    %4160 = vmatpush2.xpose.msra.mxu0 0.0
    %4161 = vmatprep.subr.mxu0 0.0
    %4162 = vmatpush2.xpose.msra.mxu0 0.0
    %4163 = vmatprep.subr.mxu0 0.0
    %4164 = vmatpush2.xpose.msra.mxu0 0.0
    %4165 = vmatprep.mubr.f32.mxu0 0.0
    %4166 = vmatmul.mubr.f32.gmra.mxu0 %v4084
    %v4167 = vpop.f32.mrf.mxu0
    %v4168 = vadd.f32 %v4081, %v4167
    %v4169 = vpop.f32.mrf.mxu0
    %4170 = vmatprep.mubr.f32.mxu0 0.0
    %4171 = vmatmul.mubr.f32.gmra.mxu0 %v4087
    %v4172 = vpop.f32.mrf.mxu0
    %v4173 = vadd.f32 %v4081, %v4172
    %v4174 = vpop.f32.mrf.mxu0
    %4175 = vdwg.mxu0
    %v4176 = vadd.f32 %v3944, %v4168
    %v4177 = vadd.f32 %v3945, %v4173
    %s4178 = scalar_lea.vmem %s11, 1
    %v4179 = vld [vmem:[%s4178] sm:$0x1]
    %s4180 = scalar_lea.vmem %s12, 1
    %v4181 = vld [vmem:[%s4180] sm:$0x1]
    %v4182 = vsel %vm199, %v4176, 0.0
    %4183 = vadd.xlane.f32.xlu0 %v4182
    %v4184 = vpop.xlane.xlu0 %4183
    %v4185 = vsel %vm199, %v4177, 0.0
    %4186 = vadd.xlane.f32.xlu0 %v4185
    %v4187 = vpop.xlane.xlu0 %4186
    %v4188 = vmul.f32 %v4184, %v1890
    %v4189 = vmul.f32 %v4187, %v1890
    %v4190 = vsub.f32 %v4176, %v4188
    %v4191 = vsub.f32 %v4177, %v4189
    %v4192 = vmul.f32 %v4190, %v4190
    %v4193 = vmul.f32 %v4191, %v4191
    %v4194 = vsel %vm199, %v4192, 0.0
    %4195 = vadd.xlane.f32.xlu0 %v4194
    %v4196 = vpop.xlane.xlu0 %4195
    %v4197 = vsel %vm199, %v4193, 0.0
    %4198 = vadd.xlane.f32.xlu0 %v4197
    %v4199 = vpop.xlane.xlu0 %4198
    %v4200 = vmul.f32 %v4196, %v1890
    %v4201 = vmul.f32 %v4199, %v1890
    %v4202 = vadd.f32 %v4200, 1e-05
    %v4203 = vadd.f32 %v4201, 1e-05
    %v4204 = vrsqrt.pop %v4202
    %v4205 = vrsqrt.pop %v4203
    %v4206 = vmul.f32 %v4190, %v4204
    %v4207 = vmul.f32 %v4191, %v4205
    %v4209 = vlaneseq
    %v4210 = vshrl.u32 %v4209, 7
    %v4211 = vsub.s32 0, %v4210
    %v4212 = vrot.slane %v4179, %v4211
    %v4214 = vmul.f32 %v4206, %v4212
    %v4215 = vmul.f32 %v4207, %v4212
    %v4217 = vlaneseq
    %v4218 = vshrl.u32 %v4217, 7
    %v4219 = vsub.s32 0, %v4218
    %v4220 = vrot.slane %v4181, %v4219
    %v4222 = vadd.f32 %v4214, %v4220
    %v4223 = vadd.f32 %v4215, %v4220
    %v4224 = vsel %vm199, %v4222, 0.0
    %v4225 = vrot.slane %v4224, 4
    %v4226 = vadd.f32 %v4224, %v4225
    %v4227 = vrot.slane %v4226, 2
    %v4228 = vadd.f32 %v4226, %v4227
    %v4229 = vrot.slane %v4228, 1
    %v4230 = vadd.f32 %v4228, %v4229
    %v4231 = vsel %vm199, %v4223, 0.0
    %v4232 = vrot.slane %v4231, 4
    %v4233 = vadd.f32 %v4231, %v4232
    %v4234 = vrot.slane %v4233, 2
    %v4235 = vadd.f32 %v4233, %v4234
    %v4236 = vrot.slane %v4235, 1
    %v4237 = vadd.f32 %v4235, %v4236
    %v4238 = vrcp.pop 8.0
    %v4239 = vmul.f32 %v4230, %v4238
    %v4240 = vmul.f32 %v4237, %v4238
    %v4241 = vld [vmem:[%s17] sm:$0x3f]
    %v4242 = vld [vmem:[%s18] sm:$0x1]
    %v4244 = vlaneseq
    %v4245 = vshrl.u32 %v4244, 7
    %v4246 = vsub.s32 0, %v4245
    %v4247 = vrot.slane %v4242, %v4246
    %vm4251 = vcmask 1041409
    %v4252 = vsel %vm4251, %v4240, %v4239
    %v4253 = vsel %vm199, %v4252, 0
    %v4256 = vsel %vm199, %v4241, 0
    %4258 = vmatprep.subr.mxu0 0.0
    %4259 = vmatpush1.xpose.msra.mxu0 0.0
    %4260 = vmatprep.subr.mxu0 0.0
    %4261 = vmatpush1.xpose.msra.mxu0 0.0
    %4262 = vmatprep.subr.mxu0 0.0
    %4263 = vmatpush1.xpose.msra.mxu0 0.0
    %4264 = vmatprep.subr.mxu0 0.0
    %4265 = vmatpush1.xpose.msra.mxu0 0.0
    %4266 = vmatprep.subr.mxu0 0.0
    %4267 = vmatpush1.xpose.msra.mxu0 0.0
    %4268 = vmatprep.subr.mxu0 0.0
    %4269 = vmatpush1.xpose.msra.mxu0 0.0
    %4270 = vmatprep.subr.mxu0 0.0
    %4271 = vmatpush1.xpose.msra.mxu0 0.0
    %4272 = vmatprep.subr.mxu0 0.0
    %4273 = vmatpush1.xpose.msra.mxu0 0.0
    %4274 = vmatprep.subr.mxu0 0.0
    %4275 = vmatpush1.xpose.msra.mxu0 0.0
    %4276 = vmatprep.subr.mxu0 0.0
    %4277 = vmatpush1.xpose.msra.mxu0 0.0
    %4278 = vmatprep.subr.mxu0 0.0
    %4279 = vmatpush1.xpose.msra.mxu0 0.0
    %4280 = vmatprep.subr.mxu0 0.0
    %4281 = vmatpush1.xpose.msra.mxu0 0.0
    %4282 = vmatprep.subr.mxu0 0.0
    %4283 = vmatpush1.xpose.msra.mxu0 0.0
    %4284 = vmatprep.subr.mxu0 0.0
    %4285 = vmatpush1.xpose.msra.mxu0 0.0
    %4286 = vmatprep.subr.mxu0 0.0
    %4287 = vmatpush1.xpose.msra.mxu0 0.0
    %4288 = vmatprep.subr.mxu0 0.0
    %4289 = vmatpush1.xpose.msra.mxu0 %v4256
    %4290 = vmatprep.subr.mxu0 0.0
    %4291 = vmatpush2.xpose.msra.mxu0 0.0
    %4292 = vmatprep.subr.mxu0 0.0
    %4293 = vmatpush2.xpose.msra.mxu0 0.0
    %4294 = vmatprep.subr.mxu0 0.0
    %4295 = vmatpush2.xpose.msra.mxu0 0.0
    %4296 = vmatprep.subr.mxu0 0.0
    %4297 = vmatpush2.xpose.msra.mxu0 0.0
    %4298 = vmatprep.subr.mxu0 0.0
    %4299 = vmatpush2.xpose.msra.mxu0 0.0
    %4300 = vmatprep.subr.mxu0 0.0
    %4301 = vmatpush2.xpose.msra.mxu0 0.0
    %4302 = vmatprep.subr.mxu0 0.0
    %4303 = vmatpush2.xpose.msra.mxu0 0.0
    %4304 = vmatprep.subr.mxu0 0.0
    %4305 = vmatpush2.xpose.msra.mxu0 0.0
    %4306 = vmatprep.subr.mxu0 0.0
    %4307 = vmatpush2.xpose.msra.mxu0 0.0
    %4308 = vmatprep.subr.mxu0 0.0
    %4309 = vmatpush2.xpose.msra.mxu0 0.0
    %4310 = vmatprep.subr.mxu0 0.0
    %4311 = vmatpush2.xpose.msra.mxu0 0.0
    %4312 = vmatprep.subr.mxu0 0.0
    %4313 = vmatpush2.xpose.msra.mxu0 0.0
    %4314 = vmatprep.subr.mxu0 0.0
    %4315 = vmatpush2.xpose.msra.mxu0 0.0
    %4316 = vmatprep.subr.mxu0 0.0
    %4317 = vmatpush2.xpose.msra.mxu0 0.0
    %4318 = vmatprep.subr.mxu0 0.0
    %4319 = vmatpush2.xpose.msra.mxu0 0.0
    %4320 = vmatprep.subr.mxu0 0.0
    %4321 = vmatpush2.xpose.msra.mxu0 0.0
    %4322 = vmatprep.mubr.f32.mxu0 0.0
    %4323 = vmatmul.mubr.f32.gmra.mxu0 %v4253
    %v4324 = vpop.f32.mrf.mxu0
    %v4325 = vadd.f32 %v4247, %v4324
    %v4326 = vpop.f32.mrf.mxu0
    %4327 = vdwg.mxu0
    %vm4328 = vcmp.gt.f32.partialorder %v4325, 0.0
    %v4329 = vmul.f32 %v4325, 0.01
    %v4330 = vsel %vm4328, %v4325, %v4329
    %v4331 = vld [vmem:[%s19] sm:$0x7]
    %v4332 = vld [vmem:[%s20] sm:$0x1]
    %v4334 = vlaneseq
    %v4335 = vshrl.u32 %v4334, 7
    %v4336 = vsub.s32 0, %v4335
    %v4337 = vrot.slane %v4332, %v4336
    %vm4339 = vcmask 48128
    %v4341 = vsel %vm4339, %v4330, 0
    %v4344 = vsel %vm4339, %v4331, 0
    %4346 = vmatprep.subr.mxu0 0.0
    %4347 = vmatpush1.xpose.msra.mxu0 0.0
    %4348 = vmatprep.subr.mxu0 0.0
    %4349 = vmatpush1.xpose.msra.mxu0 0.0
    %4350 = vmatprep.subr.mxu0 0.0
    %4351 = vmatpush1.xpose.msra.mxu0 0.0
    %4352 = vmatprep.subr.mxu0 0.0
    %4353 = vmatpush1.xpose.msra.mxu0 0.0
    %4354 = vmatprep.subr.mxu0 0.0
    %4355 = vmatpush1.xpose.msra.mxu0 0.0
    %4356 = vmatprep.subr.mxu0 0.0
    %4357 = vmatpush1.xpose.msra.mxu0 0.0
    %4358 = vmatprep.subr.mxu0 0.0
    %4359 = vmatpush1.xpose.msra.mxu0 0.0
    %4360 = vmatprep.subr.mxu0 0.0
    %4361 = vmatpush1.xpose.msra.mxu0 0.0
    %4362 = vmatprep.subr.mxu0 0.0
    %4363 = vmatpush1.xpose.msra.mxu0 0.0
    %4364 = vmatprep.subr.mxu0 0.0
    %4365 = vmatpush1.xpose.msra.mxu0 0.0
    %4366 = vmatprep.subr.mxu0 0.0
    %4367 = vmatpush1.xpose.msra.mxu0 0.0
    %4368 = vmatprep.subr.mxu0 0.0
    %4369 = vmatpush1.xpose.msra.mxu0 0.0
    %4370 = vmatprep.subr.mxu0 0.0
    %4371 = vmatpush1.xpose.msra.mxu0 0.0
    %4372 = vmatprep.subr.mxu0 0.0
    %4373 = vmatpush1.xpose.msra.mxu0 0.0
    %4374 = vmatprep.subr.mxu0 0.0
    %4375 = vmatpush1.xpose.msra.mxu0 0.0
    %4376 = vmatprep.subr.mxu0 0.0
    %4377 = vmatpush1.xpose.msra.mxu0 %v4344
    %4378 = vmatprep.subr.mxu0 0.0
    %4379 = vmatpush2.xpose.msra.mxu0 0.0
    %4380 = vmatprep.subr.mxu0 0.0
    %4381 = vmatpush2.xpose.msra.mxu0 0.0
    %4382 = vmatprep.subr.mxu0 0.0
    %4383 = vmatpush2.xpose.msra.mxu0 0.0
    %4384 = vmatprep.subr.mxu0 0.0
    %4385 = vmatpush2.xpose.msra.mxu0 0.0
    %4386 = vmatprep.subr.mxu0 0.0
    %4387 = vmatpush2.xpose.msra.mxu0 0.0
    %4388 = vmatprep.subr.mxu0 0.0
    %4389 = vmatpush2.xpose.msra.mxu0 0.0
    %4390 = vmatprep.subr.mxu0 0.0
    %4391 = vmatpush2.xpose.msra.mxu0 0.0
    %4392 = vmatprep.subr.mxu0 0.0
    %4393 = vmatpush2.xpose.msra.mxu0 0.0
    %4394 = vmatprep.subr.mxu0 0.0
    %4395 = vmatpush2.xpose.msra.mxu0 0.0
    %4396 = vmatprep.subr.mxu0 0.0
    %4397 = vmatpush2.xpose.msra.mxu0 0.0
    %4398 = vmatprep.subr.mxu0 0.0
    %4399 = vmatpush2.xpose.msra.mxu0 0.0
    %4400 = vmatprep.subr.mxu0 0.0
    %4401 = vmatpush2.xpose.msra.mxu0 0.0
    %4402 = vmatprep.subr.mxu0 0.0
    %4403 = vmatpush2.xpose.msra.mxu0 0.0
    %4404 = vmatprep.subr.mxu0 0.0
    %4405 = vmatpush2.xpose.msra.mxu0 0.0
    %4406 = vmatprep.subr.mxu0 0.0
    %4407 = vmatpush2.xpose.msra.mxu0 0.0
    %4408 = vmatprep.subr.mxu0 0.0
    %4409 = vmatpush2.xpose.msra.mxu0 0.0
    %4410 = vmatprep.mubr.f32.mxu0 0.0
    %4411 = vmatmul.mubr.f32.gmra.mxu0 %v4341
    %v4412 = vpop.f32.mrf.mxu0
    %v4413 = vadd.f32 %v4337, %v4412
    %v4414 = vpop.f32.mrf.mxu0
    %4415 = vdwg.mxu0
    %v4416 = vand.u32 2147483647, %v4413
    %v4417 = vsub.f32 0.0, %v4416
    %v4418 = vmul.f32 %v4417, 1.442695
    %v4419 = vpow.pop %v4418
    %v4420 = vadd.f32 %v4419, 1.0
    %v4421 = vrcp.pop %v4420
    %v4422 = vmul.f32 1.0, %v4421
    %vm4423 = vcmp.ge.f32.partialorder %v4413, 0.0
    %v4424 = vmul.f32 %v4419, %v4422
    %v4425 = vsel %vm4423, %v4422, %v4424
    %vm4426 = vcmask 17408
    %4427 = vst.msk [vmem:[#allocation14] sm:$0x3] %vm4426, %v4425
    // Predicated region
    $region114: #{tpu_custom_call.1} parent=1 // pred_check
      _
    $region115: #{tpu_custom_call.1} parent=1 // pred_check_branch
      %4429 = sbr.rel (0) target = $region117
    $region116: #{tpu_custom_call.1} parent=1 // pred_region
      %s4431 = ssub.s32 32, 32
      %4432 = vsyncadd [#allocation4], %s4431
      %s4434 = sshll.u32 [#allocation14], 4
      %s4435 = int_to_ptr.vmem [resolvable:$true] %s4434
      %4437 = dma.vmem_to_hbm [thread:$0]  %s4435, 32, %s21, [#allocation4]
    $region117: #{tpu_custom_call.1} parent=1 // pred_fallthru
      _
    // Predicated region
    $region118: #{tpu_custom_call.1} parent=1 // pred_check
      _
    $region119: #{tpu_custom_call.1} parent=1 // pred_check_branch
      %4439 = sbr.rel (0) target = $region121
    $region120: #{tpu_custom_call.1} parent=1 // pred_region
      %4440 = dma.done [#allocation4], 32
    $region121: #{tpu_custom_call.1} parent=1 // pred_fallthru
      _
    %4441 = vsyncpa [#allocation3], 1
    %4442 = vsyncpa [#allocation6], 1
    %4443 = vsyncpa [#allocation9], 1
    %4444 = vsyncpa [#allocation12], 1
    %4445 = vsyncpa [#allocation4], 1

</llo_original>
